<compile_context>
chip_gen: v7x
topology: tpu7x:2x2x1
jax: 0.10.0
libtpu: 0.0.40
codegen_flags: <defaults>
</compile_context>

<pallas_src>
import functools

import jax
import jax.numpy as jnp
from jax.experimental import pallas as pl
from jax.experimental.pallas import tpu as pltpu

# ----------------------------- small config ---------------------------------
B = 2            # batch
CHUNK = 8        # chunk_size (== max sequence length T)
H = 128          # hidden size          (4096 in the real model)
NH = 4           # attention heads
D = H // NH      # head dim
FFN = 256        # MLP intermediate     (11008 in the real model)
VOCAB = 256      # vocab size
L = 2            # decoder layers == number of memory slabs (32 in real model)
EOS_ID = 3
RMS_EPS = 1e-6


# --------------------------- fused decoder-layer kernel ----------------------
def _layer_kernel(h_ref, an_ref, mn_ref, wqkv_ref, wo_ref, wgu_ref, wd_ref,
                  *rest, b, t, mem_len, nh, d, ffn):
    """Full decoder layer on a (b*t, H) residual slab (single block)."""
    if mem_len > 0:
        mem_ref, o_ref = rest
    else:
        (o_ref,) = rest
    hd = nh * d

    h = h_ref[...].astype(jnp.float32)                        # (b*t, H) residual

    # ---------------- attention block ----------------
    gamma_a = an_ref[...].astype(jnp.float32)                 # (1, H)
    var = jnp.mean(h * h, axis=-1, keepdims=True)
    x16 = (h * jax.lax.rsqrt(var + RMS_EPS) * gamma_a).astype(jnp.bfloat16)

    wqkv = wqkv_ref[...]                                      # (H, 3H) bf16 (wq pre-scaled)
    qkv = jnp.dot(x16, wqkv, preferred_element_type=jnp.float32)   # (b*t, 3H) f32
    q_all = qkv[:, :hd]
    k_sfx = qkv[:, hd:2 * hd]
    v_sfx = qkv[:, 2 * hd:]

    # Memory K/V: projected ONCE per layer (shared across batch); no HBM concat.
    if mem_len > 0:
        mem16 = mem_ref[...]                                   # (M, H) bf16 (not rms-normed)
        wkv = wqkv[:, hd:]                                     # (H, 2H) bf16
        mem_kv = jnp.dot(mem16, wkv, preferred_element_type=jnp.float32)
        mem_k = mem_kv[:, :hd]
        mem_v = mem_kv[:, hd:]

    s_len = mem_len + t
    q_pos = jax.lax.broadcasted_iota(jnp.int32, (t, s_len), 0) + mem_len
    k_pos = jax.lax.broadcasted_iota(jnp.int32, (t, s_len), 1)
    vis = k_pos <= q_pos                   # memory always visible; suffix causal

    # TODO(synk): RoPE would be applied to the per-head q / suffix-k here.
    batch_rows = []
    for bi in range(b):                                        # static unroll
        r0 = bi * t
        head_outs = []
        for hi in range(nh):                                   # static unroll
            c0 = hi * d
            qh = q_all[r0:r0 + t, c0:c0 + d].astype(jnp.bfloat16)      # (t, d)
            k_h = k_sfx[r0:r0 + t, c0:c0 + d]
            v_h = v_sfx[r0:r0 + t, c0:c0 + d]
            if mem_len > 0:
                k_h = jnp.concatenate([mem_k[:, c0:c0 + d], k_h], axis=0)   # (S, d)
                v_h = jnp.concatenate([mem_v[:, c0:c0 + d], v_h], axis=0)
            kh16 = k_h.astype(jnp.bfloat16)
            vh16 = v_h.astype(jnp.bfloat16)
            s = jax.lax.dot_general(                                        # (t, S) f32
                qh, kh16, (((1,), (1,)), ((), ())),
                preferred_element_type=jnp.float32)
            s = jnp.where(vis, s, -1e30)
            m = jnp.max(s, axis=-1, keepdims=True)
            p = jnp.exp(s - m)
            denom = jnp.sum(p, axis=-1, keepdims=True)
            oh = jnp.dot(p.astype(jnp.bfloat16), vh16,
                         preferred_element_type=jnp.float32)
            oh = oh * pl.reciprocal(denom, approx=True)
            head_outs.append(oh)
        batch_rows.append(jnp.concatenate(head_outs, axis=1))               # (t, H)
    attn_out = jnp.concatenate(batch_rows, axis=0)             # (b*t, H) lane-dense

    h = h + jnp.dot(attn_out.astype(jnp.bfloat16), wo_ref[...],
                    preferred_element_type=jnp.float32)        # O-proj + residual (fused)

    # ---------------- MLP block (SwiGLU) ----------------
    gamma_m = mn_ref[...].astype(jnp.float32)
    var2 = jnp.mean(h * h, axis=-1, keepdims=True)
    x2 = (h * jax.lax.rsqrt(var2 + RMS_EPS) * gamma_m).astype(jnp.bfloat16)
    gu = jnp.dot(x2, wgu_ref[...], preferred_element_type=jnp.float32)      # (b*t, 2F)
    g = gu[:, :ffn]
    u = gu[:, ffn:]
    act = (g * jax.lax.logistic(g) * u).astype(jnp.bfloat16)                # silu(g)*u (f32 VPU)
    h = h + jnp.dot(act, wd_ref[...], preferred_element_type=jnp.float32)   # down-proj + residual

    o_ref[...] = h.astype(o_ref.dtype)


def fused_layer(h, lp, mem_l, b, t):
    """h: (b*t, H) f32 residual; mem_l: (M, H) bf16 or None -> (b*t, H) f32."""
    rows, hdim = h.shape
    in_specs = [
        pl.BlockSpec((rows, hdim), lambda i: (0, 0)),
        pl.BlockSpec((1, hdim), lambda i: (0, 0)),
        pl.BlockSpec((1, hdim), lambda i: (0, 0)),
        pl.BlockSpec((hdim, 3 * hdim), lambda i: (0, 0)),
        pl.BlockSpec((hdim, hdim), lambda i: (0, 0)),
        pl.BlockSpec((hdim, 2 * FFN), lambda i: (0, 0)),
        pl.BlockSpec((FFN, hdim), lambda i: (0, 0)),
    ]
    args = [h,
            lp["attn_norm"].reshape(1, hdim),
            lp["mlp_norm"].reshape(1, hdim),
            lp["wqkv"], lp["wo"], lp["wgu"], lp["wd"]]
    mem_len = 0
    if mem_l is not None:
        mem_len = mem_l.shape[0]
        in_specs.append(pl.BlockSpec((mem_len, hdim), lambda i: (0, 0)))
        args.append(mem_l)
    kern = functools.partial(_layer_kernel, b=b, t=t, mem_len=mem_len,
                             nh=NH, d=D, ffn=FFN)
    return pl.pallas_call(
        kern,
        out_shape=jax.ShapeDtypeStruct((rows, hdim), jnp.float32),
        grid=(1,),
        in_specs=in_specs,
        out_specs=pl.BlockSpec((rows, hdim), lambda i: (0, 0)),
        compiler_params=pltpu.CompilerParams(dimension_semantics=("arbitrary",)),
    )(*args)


# ----------------------- fused final-norm + LM head kernel -------------------
def _head_kernel(h_ref, fn_ref, w_ref, o_ref):
    h = h_ref[...].astype(jnp.float32)
    var = jnp.mean(h * h, axis=-1, keepdims=True)
    x = (h * jax.lax.rsqrt(var + RMS_EPS)
         * fn_ref[...].astype(jnp.float32)).astype(jnp.bfloat16)
    o_ref[...] = jnp.dot(x, w_ref[...],
                         preferred_element_type=jnp.float32).astype(o_ref.dtype)


def lm_head(h, fn_w, w):
    rows, hdim = h.shape
    n = w.shape[1]
    return pl.pallas_call(
        _head_kernel,
        out_shape=jax.ShapeDtypeStruct((rows, n), jnp.float32),
        grid=(1,),
        in_specs=[pl.BlockSpec((rows, hdim), lambda i: (0, 0)),
                  pl.BlockSpec((1, hdim), lambda i: (0, 0)),
                  pl.BlockSpec((hdim, n), lambda i: (0, 0))],
        out_specs=pl.BlockSpec((rows, n), lambda i: (0, 0)),
        compiler_params=pltpu.CompilerParams(dimension_semantics=("arbitrary",)),
    )(h, fn_w.reshape(1, hdim), w)


# --------------------------- parameter construction --------------------------
def init_params(key):
    keys = jax.random.split(key, 2 + 7 * L)
    scale = 0.02
    attn_scale = 1.0 / (D ** 0.5)
    embed = scale * jax.random.normal(keys[0], (VOCAB, H), jnp.float32)
    params = {
        "embed": embed,
        "final_norm": jnp.ones((H,), jnp.float32),
        "lm_head": (scale * jax.random.normal(keys[1], (H, VOCAB),
                                              jnp.float32)).astype(jnp.bfloat16),
        "layers": [],
    }
    for l in range(L):
        k = keys[2 + 7 * l: 2 + 7 * (l + 1)]
        # fold 1/sqrt(D) into wq so no per-token scale is needed in-kernel
        wq = scale * jax.random.normal(k[0], (H, H), jnp.float32) * attn_scale
        wk = scale * jax.random.normal(k[1], (H, H), jnp.float32)
        wv = scale * jax.random.normal(k[2], (H, H), jnp.float32)
        wo = scale * jax.random.normal(k[3], (H, H), jnp.float32)
        wg = scale * jax.random.normal(k[4], (H, FFN), jnp.float32)
        wu = scale * jax.random.normal(k[5], (H, FFN), jnp.float32)
        wd = scale * jax.random.normal(k[6], (FFN, H), jnp.float32)
        params["layers"].append({
            "attn_norm": jnp.ones((H,), jnp.float32),
            "mlp_norm": jnp.ones((H,), jnp.float32),
            "wqkv": jnp.concatenate([wq, wk, wv], axis=1).astype(jnp.bfloat16),
            "wo": wo.astype(jnp.bfloat16),
            "wgu": jnp.concatenate([wg, wu], axis=1).astype(jnp.bfloat16),
            "wd": wd.astype(jnp.bfloat16),
        })
    # Model-level parameters: init_memory / merge_tokens are the EOS embedding
    # expanded to (L, chunk, H) and (1, chunk, H), exactly as in __init__.
    eos_token = embed[EOS_ID]
    params["init_memory"] = jnp.broadcast_to(eos_token[None, None, :], (L, CHUNK, H))
    params["merge_tokens"] = jnp.broadcast_to(eos_token[None, None, :], (1, CHUNK, H))
    return params


# ------------------------------ decoder forward -------------------------------
def model_forward(params, input_ids, memory=None, labels=None):
    """Mirrors Model.forward: assert chunk bound, run the memory decoder."""
    b, t = input_ids.shape
    assert t <= CHUNK
    assert memory is None or memory.shape == (L, CHUNK, H)

    h = params["embed"][input_ids].reshape(b * t, H)     # (B*T, H) embedding gather (glue)
    mem16 = None if memory is None else memory.astype(jnp.bfloat16)

    for l in range(L):
        mem_l = None if mem16 is None else mem16[l]
        h = fused_layer(h, params["layers"][l], mem_l, b, t)

    logits = lm_head(h, params["final_norm"], params["lm_head"]).reshape(b, t, VOCAB)

    loss = None
    if labels is not None:
        # shifted next-token cross entropy (glue; small reduction)
        shift_logits = logits[:, :-1, :].reshape(-1, VOCAB)
        shift_labels = labels[:, 1:].reshape(-1)
        logp = jax.nn.log_softmax(shift_logits, axis=-1)
        nll = -jnp.take_along_axis(
            logp, jnp.clip(shift_labels, 0, VOCAB - 1)[:, None], axis=-1
        )[:, 0]
        valid = (shift_labels != -100).astype(jnp.float32)
        loss = jnp.sum(nll * valid) / jnp.maximum(jnp.sum(valid), 1.0)

    return {"logits": logits, "loss": loss}


# ----------------------------------- main -------------------------------------
if __name__ == "__main__":
    key = jax.random.PRNGKey(0)
    pkey, ikey, lkey = jax.random.split(key, 3)
    params = init_params(pkey)

    input_ids = jax.random.randint(ikey, (B, CHUNK), 0, VOCAB, dtype=jnp.int32)
    labels = jax.random.randint(lkey, (B, CHUNK), 0, VOCAB, dtype=jnp.int32)
    # memory defaults to the module's init_memory parameter (L, CHUNK, H)
    memory = params["init_memory"]

    fwd = jax.jit(model_forward)

    out = fwd(params, input_ids, memory=memory, labels=labels)
    jax.block_until_ready(out["logits"])
    jax.block_until_ready(out["loss"])

    # also exercise the memory=None path (decoder without memory prefix)
    out2 = fwd(params, input_ids, memory=None, labels=None)
    jax.block_until_ready(out2["logits"])

    assert out["logits"].shape == (B, CHUNK, VOCAB)
    assert out["loss"].shape == ()
    assert out2["logits"].shape == (B, CHUNK, VOCAB)
    print("KERNEL_OK")
</pallas_src>

<mosaic_0001>
module attributes {stable_mosaic.version = 11 : i64} {
  func.func @_head_kernel(%arg0: i32, %arg1: memref<16x128xf32, #tpu.memory_space<vmem>>, %arg2: memref<1x128xf32, #tpu.memory_space<vmem>>, %arg3: memref<128x256xbf16, #tpu.memory_space<vmem>>, %arg4: memref<16x256xf32, #tpu.memory_space<vmem>>) attributes {dimension_semantics = [#tpu.dimension_semantics<arbitrary>], iteration_bounds = array<i64: 1>, scalar_prefetch = 0 : i64, scratch_operands = 0 : i64, tpu.core_type = #tpu.core_type<tc>, window_params = [{pipeline_mode = #tpu.pipeline_mode<synchronous>, transform_indices = @transform_0, window_bounds = array<i64: 16, 128>}, {pipeline_mode = #tpu.pipeline_mode<synchronous>, transform_indices = @transform_1, window_bounds = array<i64: 1, 128>}, {pipeline_mode = #tpu.pipeline_mode<synchronous>, transform_indices = @transform_2, window_bounds = array<i64: 128, 256>}, {pipeline_mode = #tpu.pipeline_mode<synchronous>, transform_indices = @transform_3, window_bounds = array<i64: 16, 256>}]} {
    %c0 = arith.constant 0 : index
    %c0_0 = arith.constant 0 : index
    %0 = vector.load %arg1[%c0, %c0_0] : memref<16x128xf32, #tpu.memory_space<vmem>>, vector<16x128xf32>
    %1 = arith.mulf %0, %0 : vector<16x128xf32>
    %cst = arith.constant dense<0.000000e+00> : vector<16xf32>
    %2 = vector.multi_reduction <add>, %1, %cst [1] : vector<16x128xf32> to vector<16xf32>
    %3 = vector.shape_cast %2 : vector<16xf32> to vector<16x1xf32>
    %cst_1 = arith.constant 1.280000e+02 : f32
    %4 = vector.broadcast %cst_1 : f32 to vector<16x1xf32>
    %5 = arith.divf %3, %4 : vector<16x1xf32>
    %cst_2 = arith.constant 9.99999997E-7 : f32
    %6 = vector.broadcast %cst_2 : f32 to vector<16x1xf32>
    %7 = arith.addf %5, %6 : vector<16x1xf32>
    %8 = math.rsqrt %7 : vector<16x1xf32>
    %9 = vector.broadcast %8 : vector<16x1xf32> to vector<16x128xf32>
    %10 = arith.mulf %0, %9 : vector<16x128xf32>
    %c0_3 = arith.constant 0 : index
    %c0_4 = arith.constant 0 : index
    %11 = vector.load %arg2[%c0_3, %c0_4] : memref<1x128xf32, #tpu.memory_space<vmem>>, vector<1x128xf32>
    %12 = vector.broadcast %11 : vector<1x128xf32> to vector<16x128xf32>
    %13 = arith.mulf %10, %12 : vector<16x128xf32>
    %14 = arith.truncf %13 : vector<16x128xf32> to vector<16x128xbf16>
    %c0_5 = arith.constant 0 : index
    %c0_6 = arith.constant 0 : index
    %15 = vector.load %arg3[%c0_5, %c0_6] : memref<128x256xbf16, #tpu.memory_space<vmem>>, vector<128x256xbf16>
    %cst_7 = arith.constant dense<0.000000e+00> : vector<16x256xf32>
    %16 = tpu.matmul %14, %15, %cst_7 {dimension_numbers = #tpu.dot_dimension_numbers<[1], [0], [0], [1], [0, 0, 1, 1], [], []>} : vector<16x128xbf16>, vector<128x256xbf16>, vector<16x256xf32> -> vector<16x256xf32>
    %c0_8 = arith.constant 0 : index
    %c0_9 = arith.constant 0 : index
    %17 = vector.load %arg4[%c0_8, %c0_9] : memref<16x256xf32, #tpu.memory_space<vmem>>, vector<16x256xf32>
    tpu.vector_store %arg4[%c0_8, %c0_9], %16 {strides = array<i32>} : memref<16x256xf32, #tpu.memory_space<vmem>>, vector<16x256xf32>,
    return
  }
  func.func @transform_0(%arg0: i32) -> (i32, i32) {
    %c0_i32 = arith.constant 0 : i32
    %c0_i32_0 = arith.constant 0 : i32
    %c0_i32_1 = arith.constant 0 : i32
    return %c0_i32, %c0_i32_0 : i32, i32
  }
  func.func @transform_1(%arg0: i32) -> (i32, i32) {
    %c0_i32 = arith.constant 0 : i32
    %c0_i32_0 = arith.constant 0 : i32
    %c0_i32_1 = arith.constant 0 : i32
    return %c0_i32, %c0_i32_0 : i32, i32
  }
  func.func @transform_2(%arg0: i32) -> (i32, i32) {
    %c0_i32 = arith.constant 0 : i32
    %c0_i32_0 = arith.constant 0 : i32
    %c0_i32_1 = arith.constant 0 : i32
    return %c0_i32, %c0_i32_0 : i32, i32
  }
  func.func @transform_3(%arg0: i32) -> (i32, i32) {
    %c0_i32 = arith.constant 0 : i32
    %c0_i32_0 = arith.constant 0 : i32
    %c0_i32_1 = arith.constant 0 : i32
    return %c0_i32, %c0_i32_0 : i32, i32
  }
}

module attributes {stable_mosaic.version = 11 : i64} {
  func.func @_layer_kernel(%arg0: i32, %arg1: memref<16x128xf32, #tpu.memory_space<vmem>>, %arg2: memref<1x128xf32, #tpu.memory_space<vmem>>, %arg3: memref<1x128xf32, #tpu.memory_space<vmem>>, %arg4: memref<128x384xbf16, #tpu.memory_space<vmem>>, %arg5: memref<128x128xbf16, #tpu.memory_space<vmem>>, %arg6: memref<128x512xbf16, #tpu.memory_space<vmem>>, %arg7: memref<256x128xbf16, #tpu.memory_space<vmem>>, %arg8: memref<8x128xbf16, #tpu.memory_space<vmem>>, %arg9: memref<16x128xf32, #tpu.memory_space<vmem>>) attributes {dimension_semantics = [#tpu.dimension_semantics<arbitrary>], iteration_bounds = array<i64: 1>, scalar_prefetch = 0 : i64, scratch_operands = 0 : i64, tpu.core_type = #tpu.core_type<tc>, window_params = [{pipeline_mode = #tpu.pipeline_mode<synchronous>, transform_indices = @transform_0, window_bounds = array<i64: 16, 128>}, {pipeline_mode = #tpu.pipeline_mode<synchronous>, transform_indices = @transform_1, window_bounds = array<i64: 1, 128>}, {pipeline_mode = #tpu.pipeline_mode<synchronous>, transform_indices = @transform_2, window_bounds = array<i64: 1, 128>}, {pipeline_mode = #tpu.pipeline_mode<synchronous>, transform_indices = @transform_3, window_bounds = array<i64: 128, 384>}, {pipeline_mode = #tpu.pipeline_mode<synchronous>, transform_indices = @transform_4, window_bounds = array<i64: 128, 128>}, {pipeline_mode = #tpu.pipeline_mode<synchronous>, transform_indices = @transform_5, window_bounds = array<i64: 128, 512>}, {pipeline_mode = #tpu.pipeline_mode<synchronous>, transform_indices = @transform_6, window_bounds = array<i64: 256, 128>}, {pipeline_mode = #tpu.pipeline_mode<synchronous>, transform_indices = @transform_7, window_bounds = array<i64: 8, 128>}, {pipeline_mode = #tpu.pipeline_mode<synchronous>, transform_indices = @transform_8, window_bounds = array<i64: 16, 128>}]} {
    %c0 = arith.constant 0 : index
    %c0_0 = arith.constant 0 : index
    %0 = vector.load %arg1[%c0, %c0_0] : memref<16x128xf32, #tpu.memory_space<vmem>>, vector<16x128xf32>
    %c0_1 = arith.constant 0 : index
    %c0_2 = arith.constant 0 : index
    %1 = vector.load %arg2[%c0_1, %c0_2] : memref<1x128xf32, #tpu.memory_space<vmem>>, vector<1x128xf32>
    %2 = arith.mulf %0, %0 : vector<16x128xf32>
    %cst = arith.constant dense<0.000000e+00> : vector<16xf32>
    %3 = vector.multi_reduction <add>, %2, %cst [1] : vector<16x128xf32> to vector<16xf32>
    %4 = vector.shape_cast %3 : vector<16xf32> to vector<16x1xf32>
    %cst_3 = arith.constant 1.280000e+02 : f32
    %5 = vector.broadcast %cst_3 : f32 to vector<16x1xf32>
    %6 = arith.divf %4, %5 : vector<16x1xf32>
    %cst_4 = arith.constant 9.99999997E-7 : f32
    %7 = vector.broadcast %cst_4 : f32 to vector<16x1xf32>
    %8 = arith.addf %6, %7 : vector<16x1xf32>
    %9 = math.rsqrt %8 : vector<16x1xf32>
    %10 = vector.broadcast %9 : vector<16x1xf32> to vector<16x128xf32>
    %11 = arith.mulf %0, %10 : vector<16x128xf32>
    %12 = vector.broadcast %1 : vector<1x128xf32> to vector<16x128xf32>
    %13 = arith.mulf %11, %12 : vector<16x128xf32>
    %14 = arith.truncf %13 : vector<16x128xf32> to vector<16x128xbf16>
    %c0_5 = arith.constant 0 : index
    %c0_6 = arith.constant 0 : index
    %15 = vector.load %arg4[%c0_5, %c0_6] : memref<128x384xbf16, #tpu.memory_space<vmem>>, vector<128x384xbf16>
    %cst_7 = arith.constant dense<0.000000e+00> : vector<16x384xf32>
    %16 = tpu.matmul %14, %15, %cst_7 {dimension_numbers = #tpu.dot_dimension_numbers<[1], [0], [0], [1], [0, 0, 1, 1], [], []>} : vector<16x128xbf16>, vector<128x384xbf16>, vector<16x384xf32> -> vector<16x384xf32>
    %17 = vector.extract_strided_slice %16 {offsets = [0, 0], sizes = [16, 128], strides = [1, 1]} : vector<16x384xf32> to vector<16x128xf32>
    %18 = vector.extract_strided_slice %16 {offsets = [0, 128], sizes = [16, 128], strides = [1, 1]} : vector<16x384xf32> to vector<16x128xf32>
    %19 = vector.extract_strided_slice %16 {offsets = [0, 256], sizes = [16, 128], strides = [1, 1]} : vector<16x384xf32> to vector<16x128xf32>
    %c0_8 = arith.constant 0 : index
    %c0_9 = arith.constant 0 : index
    %20 = vector.load %arg8[%c0_8, %c0_9] : memref<8x128xbf16, #tpu.memory_space<vmem>>, vector<8x128xbf16>
    %21 = vector.extract_strided_slice %15 {offsets = [0, 128], sizes = [128, 256], strides = [1, 1]} : vector<128x384xbf16> to vector<128x256xbf16>
    %cst_10 = arith.constant dense<0.000000e+00> : vector<8x256xf32>
    %22 = tpu.matmul %20, %21, %cst_10 {dimension_numbers = #tpu.dot_dimension_numbers<[1], [0], [0], [1], [0, 0, 1, 1], [], []>} : vector<8x128xbf16>, vector<128x256xbf16>, vector<8x256xf32> -> vector<8x256xf32>
    %23 = vector.extract_strided_slice %22 {offsets = [0, 0], sizes = [8, 128], strides = [1, 1]} : vector<8x256xf32> to vector<8x128xf32>
    %24 = vector.extract_strided_slice %22 {offsets = [0, 128], sizes = [8, 128], strides = [1, 1]} : vector<8x256xf32> to vector<8x128xf32>
    %25 = tpu.iota {dimensions = array<i32: 0>} : vector<8x16xi32>
    %c8_i32 = arith.constant 8 : i32
    %26 = vector.broadcast %c8_i32 : i32 to vector<8x16xi32>
    %27 = arith.addi %25, %26 : vector<8x16xi32>
    %28 = tpu.iota {dimensions = array<i32: 1>} : vector<8x16xi32>
    %29 = arith.cmpi sle, %28, %27 : vector<8x16xi32>
    %30 = vector.extract_strided_slice %17 {offsets = [0, 0], sizes = [8, 32], strides = [1, 1]} : vector<16x128xf32> to vector<8x32xf32>
    %31 = arith.truncf %30 : vector<8x32xf32> to vector<8x32xbf16>
    %32 = vector.extract_strided_slice %18 {offsets = [0, 0], sizes = [8, 32], strides = [1, 1]} : vector<16x128xf32> to vector<8x32xf32>
    %33 = vector.extract_strided_slice %19 {offsets = [0, 0], sizes = [8, 32], strides = [1, 1]} : vector<16x128xf32> to vector<8x32xf32>
    %34 = vector.extract_strided_slice %23 {offsets = [0, 0], sizes = [8, 32], strides = [1, 1]} : vector<8x128xf32> to vector<8x32xf32>
    %35 = tpu.concatenate %34, %32 in 0 : vector<8x32xf32>, vector<8x32xf32> -> vector<16x32xf32>
    %36 = vector.extract_strided_slice %24 {offsets = [0, 0], sizes = [8, 32], strides = [1, 1]} : vector<8x128xf32> to vector<8x32xf32>
    %37 = tpu.concatenate %36, %33 in 0 : vector<8x32xf32>, vector<8x32xf32> -> vector<16x32xf32>
    %38 = arith.truncf %35 : vector<16x32xf32> to vector<16x32xbf16>
    %39 = arith.truncf %37 : vector<16x32xf32> to vector<16x32xbf16>
    %cst_11 = arith.constant dense<0.000000e+00> : vector<8x16xf32>
    %40 = tpu.matmul %31, %38, %cst_11 {dimension_numbers = #tpu.dot_dimension_numbers<[1], [1], [0], [0], [0, 0, 1, 0], [], []>} : vector<8x32xbf16>, vector<16x32xbf16>, vector<8x16xf32> -> vector<8x16xf32>
    %cst_12 = arith.constant -1.000000e+30 : f32
    %41 = vector.broadcast %cst_12 : f32 to vector<8x16xf32>
    %42 = arith.select %29, %40, %41 : vector<8x16xi1>, vector<8x16xf32>
    %cst_13 = arith.constant dense<0xFF800000> : vector<8xf32>
    %43 = vector.multi_reduction <maximumf>, %42, %cst_13 [1] : vector<8x16xf32> to vector<8xf32>
    %44 = vector.shape_cast %43 : vector<8xf32> to vector<8x1xf32>
    %45 = vector.broadcast %44 : vector<8x1xf32> to vector<8x16xf32>
    %46 = arith.subf %42, %45 : vector<8x16xf32>
    %47 = math.exp %46 : vector<8x16xf32>
    %cst_14 = arith.constant dense<0.000000e+00> : vector<8xf32>
    %48 = vector.multi_reduction <add>, %47, %cst_14 [1] : vector<8x16xf32> to vector<8xf32>
    %49 = vector.shape_cast %48 : vector<8xf32> to vector<8x1xf32>
    %50 = arith.truncf %47 : vector<8x16xf32> to vector<8x16xbf16>
    %cst_15 = arith.constant dense<0.000000e+00> : vector<8x32xf32>
    %51 = tpu.matmul %50, %39, %cst_15 {dimension_numbers = #tpu.dot_dimension_numbers<[1], [0], [0], [1], [0, 0, 1, 1], [], []>} : vector<8x16xbf16>, vector<16x32xbf16>, vector<8x32xf32> -> vector<8x32xf32>
    %52 = tpu.reciprocal %49 {approx = true} : vector<8x1xf32> -> vector<8x1xf32>
    %53 = vector.broadcast %52 : vector<8x1xf32> to vector<8x32xf32>
    %54 = arith.mulf %51, %53 : vector<8x32xf32>
    %55 = vector.extract_strided_slice %17 {offsets = [0, 32], sizes = [8, 32], strides = [1, 1]} : vector<16x128xf32> to vector<8x32xf32>
    %56 = arith.truncf %55 : vector<8x32xf32> to vector<8x32xbf16>
    %57 = vector.extract_strided_slice %18 {offsets = [0, 32], sizes = [8, 32], strides = [1, 1]} : vector<16x128xf32> to vector<8x32xf32>
    %58 = vector.extract_strided_slice %19 {offsets = [0, 32], sizes = [8, 32], strides = [1, 1]} : vector<16x128xf32> to vector<8x32xf32>
    %59 = vector.extract_strided_slice %23 {offsets = [0, 32], sizes = [8, 32], strides = [1, 1]} : vector<8x128xf32> to vector<8x32xf32>
    %60 = tpu.concatenate %59, %57 in 0 : vector<8x32xf32>, vector<8x32xf32> -> vector<16x32xf32>
    %61 = vector.extract_strided_slice %24 {offsets = [0, 32], sizes = [8, 32], strides = [1, 1]} : vector<8x128xf32> to vector<8x32xf32>
    %62 = tpu.concatenate %61, %58 in 0 : vector<8x32xf32>, vector<8x32xf32> -> vector<16x32xf32>
    %63 = arith.truncf %60 : vector<16x32xf32> to vector<16x32xbf16>
    %64 = arith.truncf %62 : vector<16x32xf32> to vector<16x32xbf16>
    %cst_16 = arith.constant dense<0.000000e+00> : vector<8x16xf32>
    %65 = tpu.matmul %56, %63, %cst_16 {dimension_numbers = #tpu.dot_dimension_numbers<[1], [1], [0], [0], [0, 0, 1, 0], [], []>} : vector<8x32xbf16>, vector<16x32xbf16>, vector<8x16xf32> -> vector<8x16xf32>
    %cst_17 = arith.constant -1.000000e+30 : f32
    %66 = vector.broadcast %cst_17 : f32 to vector<8x16xf32>
    %67 = arith.select %29, %65, %66 : vector<8x16xi1>, vector<8x16xf32>
    %cst_18 = arith.constant dense<0xFF800000> : vector<8xf32>
    %68 = vector.multi_reduction <maximumf>, %67, %cst_18 [1] : vector<8x16xf32> to vector<8xf32>
    %69 = vector.shape_cast %68 : vector<8xf32> to vector<8x1xf32>
    %70 = vector.broadcast %69 : vector<8x1xf32> to vector<8x16xf32>
    %71 = arith.subf %67, %70 : vector<8x16xf32>
    %72 = math.exp %71 : vector<8x16xf32>
    %cst_19 = arith.constant dense<0.000000e+00> : vector<8xf32>
    %73 = vector.multi_reduction <add>, %72, %cst_19 [1] : vector<8x16xf32> to vector<8xf32>
    %74 = vector.shape_cast %73 : vector<8xf32> to vector<8x1xf32>
    %75 = arith.truncf %72 : vector<8x16xf32> to vector<8x16xbf16>
    %cst_20 = arith.constant dense<0.000000e+00> : vector<8x32xf32>
    %76 = tpu.matmul %75, %64, %cst_20 {dimension_numbers = #tpu.dot_dimension_numbers<[1], [0], [0], [1], [0, 0, 1, 1], [], []>} : vector<8x16xbf16>, vector<16x32xbf16>, vector<8x32xf32> -> vector<8x32xf32>
    %77 = tpu.reciprocal %74 {approx = true} : vector<8x1xf32> -> vector<8x1xf32>
    %78 = vector.broadcast %77 : vector<8x1xf32> to vector<8x32xf32>
    %79 = arith.mulf %76, %78 : vector<8x32xf32>
    %80 = vector.extract_strided_slice %17 {offsets = [0, 64], sizes = [8, 32], strides = [1, 1]} : vector<16x128xf32> to vector<8x32xf32>
    %81 = arith.truncf %80 : vector<8x32xf32> to vector<8x32xbf16>
    %82 = vector.extract_strided_slice %18 {offsets = [0, 64], sizes = [8, 32], strides = [1, 1]} : vector<16x128xf32> to vector<8x32xf32>
    %83 = vector.extract_strided_slice %19 {offsets = [0, 64], sizes = [8, 32], strides = [1, 1]} : vector<16x128xf32> to vector<8x32xf32>
    %84 = vector.extract_strided_slice %23 {offsets = [0, 64], sizes = [8, 32], strides = [1, 1]} : vector<8x128xf32> to vector<8x32xf32>
    %85 = tpu.concatenate %84, %82 in 0 : vector<8x32xf32>, vector<8x32xf32> -> vector<16x32xf32>
    %86 = vector.extract_strided_slice %24 {offsets = [0, 64], sizes = [8, 32], strides = [1, 1]} : vector<8x128xf32> to vector<8x32xf32>
    %87 = tpu.concatenate %86, %83 in 0 : vector<8x32xf32>, vector<8x32xf32> -> vector<16x32xf32>
    %88 = arith.truncf %85 : vector<16x32xf32> to vector<16x32xbf16>
    %89 = arith.truncf %87 : vector<16x32xf32> to vector<16x32xbf16>
    %cst_21 = arith.constant dense<0.000000e+00> : vector<8x16xf32>
    %90 = tpu.matmul %81, %88, %cst_21 {dimension_numbers = #tpu.dot_dimension_numbers<[1], [1], [0], [0], [0, 0, 1, 0], [], []>} : vector<8x32xbf16>, vector<16x32xbf16>, vector<8x16xf32> -> vector<8x16xf32>
    %cst_22 = arith.constant -1.000000e+30 : f32
    %91 = vector.broadcast %cst_22 : f32 to vector<8x16xf32>
    %92 = arith.select %29, %90, %91 : vector<8x16xi1>, vector<8x16xf32>
    %cst_23 = arith.constant dense<0xFF800000> : vector<8xf32>
    %93 = vector.multi_reduction <maximumf>, %92, %cst_23 [1] : vector<8x16xf32> to vector<8xf32>
    %94 = vector.shape_cast %93 : vector<8xf32> to vector<8x1xf32>
    %95 = vector.broadcast %94 : vector<8x1xf32> to vector<8x16xf32>
    %96 = arith.subf %92, %95 : vector<8x16xf32>
    %97 = math.exp %96 : vector<8x16xf32>
    %cst_24 = arith.constant dense<0.000000e+00> : vector<8xf32>
    %98 = vector.multi_reduction <add>, %97, %cst_24 [1] : vector<8x16xf32> to vector<8xf32>
    %99 = vector.shape_cast %98 : vector<8xf32> to vector<8x1xf32>
    %100 = arith.truncf %97 : vector<8x16xf32> to vector<8x16xbf16>
    %cst_25 = arith.constant dense<0.000000e+00> : vector<8x32xf32>
    %101 = tpu.matmul %100, %89, %cst_25 {dimension_numbers = #tpu.dot_dimension_numbers<[1], [0], [0], [1], [0, 0, 1, 1], [], []>} : vector<8x16xbf16>, vector<16x32xbf16>, vector<8x32xf32> -> vector<8x32xf32>
    %102 = tpu.reciprocal %99 {approx = true} : vector<8x1xf32> -> vector<8x1xf32>
    %103 = vector.broadcast %102 : vector<8x1xf32> to vector<8x32xf32>
    %104 = arith.mulf %101, %103 : vector<8x32xf32>
    %105 = vector.extract_strided_slice %17 {offsets = [0, 96], sizes = [8, 32], strides = [1, 1]} : vector<16x128xf32> to vector<8x32xf32>
    %106 = arith.truncf %105 : vector<8x32xf32> to vector<8x32xbf16>
    %107 = vector.extract_strided_slice %18 {offsets = [0, 96], sizes = [8, 32], strides = [1, 1]} : vector<16x128xf32> to vector<8x32xf32>
    %108 = vector.extract_strided_slice %19 {offsets = [0, 96], sizes = [8, 32], strides = [1, 1]} : vector<16x128xf32> to vector<8x32xf32>
    %109 = vector.extract_strided_slice %23 {offsets = [0, 96], sizes = [8, 32], strides = [1, 1]} : vector<8x128xf32> to vector<8x32xf32>
    %110 = tpu.concatenate %109, %107 in 0 : vector<8x32xf32>, vector<8x32xf32> -> vector<16x32xf32>
    %111 = vector.extract_strided_slice %24 {offsets = [0, 96], sizes = [8, 32], strides = [1, 1]} : vector<8x128xf32> to vector<8x32xf32>
    %112 = tpu.concatenate %111, %108 in 0 : vector<8x32xf32>, vector<8x32xf32> -> vector<16x32xf32>
    %113 = arith.truncf %110 : vector<16x32xf32> to vector<16x32xbf16>
    %114 = arith.truncf %112 : vector<16x32xf32> to vector<16x32xbf16>
    %cst_26 = arith.constant dense<0.000000e+00> : vector<8x16xf32>
    %115 = tpu.matmul %106, %113, %cst_26 {dimension_numbers = #tpu.dot_dimension_numbers<[1], [1], [0], [0], [0, 0, 1, 0], [], []>} : vector<8x32xbf16>, vector<16x32xbf16>, vector<8x16xf32> -> vector<8x16xf32>
    %cst_27 = arith.constant -1.000000e+30 : f32
    %116 = vector.broadcast %cst_27 : f32 to vector<8x16xf32>
    %117 = arith.select %29, %115, %116 : vector<8x16xi1>, vector<8x16xf32>
    %cst_28 = arith.constant dense<0xFF800000> : vector<8xf32>
    %118 = vector.multi_reduction <maximumf>, %117, %cst_28 [1] : vector<8x16xf32> to vector<8xf32>
    %119 = vector.shape_cast %118 : vector<8xf32> to vector<8x1xf32>
    %120 = vector.broadcast %119 : vector<8x1xf32> to vector<8x16xf32>
    %121 = arith.subf %117, %120 : vector<8x16xf32>
    %122 = math.exp %121 : vector<8x16xf32>
    %cst_29 = arith.constant dense<0.000000e+00> : vector<8xf32>
    %123 = vector.multi_reduction <add>, %122, %cst_29 [1] : vector<8x16xf32> to vector<8xf32>
    %124 = vector.shape_cast %123 : vector<8xf32> to vector<8x1xf32>
    %125 = arith.truncf %122 : vector<8x16xf32> to vector<8x16xbf16>
    %cst_30 = arith.constant dense<0.000000e+00> : vector<8x32xf32>
    %126 = tpu.matmul %125, %114, %cst_30 {dimension_numbers = #tpu.dot_dimension_numbers<[1], [0], [0], [1], [0, 0, 1, 1], [], []>} : vector<8x16xbf16>, vector<16x32xbf16>, vector<8x32xf32> -> vector<8x32xf32>
    %127 = tpu.reciprocal %124 {approx = true} : vector<8x1xf32> -> vector<8x1xf32>
    %128 = vector.broadcast %127 : vector<8x1xf32> to vector<8x32xf32>
    %129 = arith.mulf %126, %128 : vector<8x32xf32>
    %130 = tpu.concatenate %54, %79, %104, %129 in 1 : vector<8x32xf32>, vector<8x32xf32>, vector<8x32xf32>, vector<8x32xf32> -> vector<8x128xf32>
    %131 = vector.extract_strided_slice %17 {offsets = [8, 0], sizes = [8, 32], strides = [1, 1]} : vector<16x128xf32> to vector<8x32xf32>
    %132 = arith.truncf %131 : vector<8x32xf32> to vector<8x32xbf16>
    %133 = vector.extract_strided_slice %18 {offsets = [8, 0], sizes = [8, 32], strides = [1, 1]} : vector<16x128xf32> to vector<8x32xf32>
    %134 = vector.extract_strided_slice %19 {offsets = [8, 0], sizes = [8, 32], strides = [1, 1]} : vector<16x128xf32> to vector<8x32xf32>
    %135 = vector.extract_strided_slice %23 {offsets = [0, 0], sizes = [8, 32], strides = [1, 1]} : vector<8x128xf32> to vector<8x32xf32>
    %136 = tpu.concatenate %135, %133 in 0 : vector<8x32xf32>, vector<8x32xf32> -> vector<16x32xf32>
    %137 = vector.extract_strided_slice %24 {offsets = [0, 0], sizes = [8, 32], strides = [1, 1]} : vector<8x128xf32> to vector<8x32xf32>
    %138 = tpu.concatenate %137, %134 in 0 : vector<8x32xf32>, vector<8x32xf32> -> vector<16x32xf32>
    %139 = arith.truncf %136 : vector<16x32xf32> to vector<16x32xbf16>
    %140 = arith.truncf %138 : vector<16x32xf32> to vector<16x32xbf16>
    %cst_31 = arith.constant dense<0.000000e+00> : vector<8x16xf32>
    %141 = tpu.matmul %132, %139, %cst_31 {dimension_numbers = #tpu.dot_dimension_numbers<[1], [1], [0], [0], [0, 0, 1, 0], [], []>} : vector<8x32xbf16>, vector<16x32xbf16>, vector<8x16xf32> -> vector<8x16xf32>
    %cst_32 = arith.constant -1.000000e+30 : f32
    %142 = vector.broadcast %cst_32 : f32 to vector<8x16xf32>
    %143 = arith.select %29, %141, %142 : vector<8x16xi1>, vector<8x16xf32>
    %cst_33 = arith.constant dense<0xFF800000> : vector<8xf32>
    %144 = vector.multi_reduction <maximumf>, %143, %cst_33 [1] : vector<8x16xf32> to vector<8xf32>
    %145 = vector.shape_cast %144 : vector<8xf32> to vector<8x1xf32>
    %146 = vector.broadcast %145 : vector<8x1xf32> to vector<8x16xf32>
    %147 = arith.subf %143, %146 : vector<8x16xf32>
    %148 = math.exp %147 : vector<8x16xf32>
    %cst_34 = arith.constant dense<0.000000e+00> : vector<8xf32>
    %149 = vector.multi_reduction <add>, %148, %cst_34 [1] : vector<8x16xf32> to vector<8xf32>
    %150 = vector.shape_cast %149 : vector<8xf32> to vector<8x1xf32>
    %151 = arith.truncf %148 : vector<8x16xf32> to vector<8x16xbf16>
    %cst_35 = arith.constant dense<0.000000e+00> : vector<8x32xf32>
    %152 = tpu.matmul %151, %140, %cst_35 {dimension_numbers = #tpu.dot_dimension_numbers<[1], [0], [0], [1], [0, 0, 1, 1], [], []>} : vector<8x16xbf16>, vector<16x32xbf16>, vector<8x32xf32> -> vector<8x32xf32>
    %153 = tpu.reciprocal %150 {approx = true} : vector<8x1xf32> -> vector<8x1xf32>
    %154 = vector.broadcast %153 : vector<8x1xf32> to vector<8x32xf32>
    %155 = arith.mulf %152, %154 : vector<8x32xf32>
    %156 = vector.extract_strided_slice %17 {offsets = [8, 32], sizes = [8, 32], strides = [1, 1]} : vector<16x128xf32> to vector<8x32xf32>
    %157 = arith.truncf %156 : vector<8x32xf32> to vector<8x32xbf16>
    %158 = vector.extract_strided_slice %18 {offsets = [8, 32], sizes = [8, 32], strides = [1, 1]} : vector<16x128xf32> to vector<8x32xf32>
    %159 = vector.extract_strided_slice %19 {offsets = [8, 32], sizes = [8, 32], strides = [1, 1]} : vector<16x128xf32> to vector<8x32xf32>
    %160 = vector.extract_strided_slice %23 {offsets = [0, 32], sizes = [8, 32], strides = [1, 1]} : vector<8x128xf32> to vector<8x32xf32>
    %161 = tpu.concatenate %160, %158 in 0 : vector<8x32xf32>, vector<8x32xf32> -> vector<16x32xf32>
    %162 = vector.extract_strided_slice %24 {offsets = [0, 32], sizes = [8, 32], strides = [1, 1]} : vector<8x128xf32> to vector<8x32xf32>
    %163 = tpu.concatenate %162, %159 in 0 : vector<8x32xf32>, vector<8x32xf32> -> vector<16x32xf32>
    %164 = arith.truncf %161 : vector<16x32xf32> to vector<16x32xbf16>
    %165 = arith.truncf %163 : vector<16x32xf32> to vector<16x32xbf16>
    %cst_36 = arith.constant dense<0.000000e+00> : vector<8x16xf32>
    %166 = tpu.matmul %157, %164, %cst_36 {dimension_numbers = #tpu.dot_dimension_numbers<[1], [1], [0], [0], [0, 0, 1, 0], [], []>} : vector<8x32xbf16>, vector<16x32xbf16>, vector<8x16xf32> -> vector<8x16xf32>
    %cst_37 = arith.constant -1.000000e+30 : f32
    %167 = vector.broadcast %cst_37 : f32 to vector<8x16xf32>
    %168 = arith.select %29, %166, %167 : vector<8x16xi1>, vector<8x16xf32>
    %cst_38 = arith.constant dense<0xFF800000> : vector<8xf32>
    %169 = vector.multi_reduction <maximumf>, %168, %cst_38 [1] : vector<8x16xf32> to vector<8xf32>
    %170 = vector.shape_cast %169 : vector<8xf32> to vector<8x1xf32>
    %171 = vector.broadcast %170 : vector<8x1xf32> to vector<8x16xf32>
    %172 = arith.subf %168, %171 : vector<8x16xf32>
    %173 = math.exp %172 : vector<8x16xf32>
    %cst_39 = arith.constant dense<0.000000e+00> : vector<8xf32>
    %174 = vector.multi_reduction <add>, %173, %cst_39 [1] : vector<8x16xf32> to vector<8xf32>
    %175 = vector.shape_cast %174 : vector<8xf32> to vector<8x1xf32>
    %176 = arith.truncf %173 : vector<8x16xf32> to vector<8x16xbf16>
    %cst_40 = arith.constant dense<0.000000e+00> : vector<8x32xf32>
    %177 = tpu.matmul %176, %165, %cst_40 {dimension_numbers = #tpu.dot_dimension_numbers<[1], [0], [0], [1], [0, 0, 1, 1], [], []>} : vector<8x16xbf16>, vector<16x32xbf16>, vector<8x32xf32> -> vector<8x32xf32>
    %178 = tpu.reciprocal %175 {approx = true} : vector<8x1xf32> -> vector<8x1xf32>
    %179 = vector.broadcast %178 : vector<8x1xf32> to vector<8x32xf32>
    %180 = arith.mulf %177, %179 : vector<8x32xf32>
    %181 = vector.extract_strided_slice %17 {offsets = [8, 64], sizes = [8, 32], strides = [1, 1]} : vector<16x128xf32> to vector<8x32xf32>
    %182 = arith.truncf %181 : vector<8x32xf32> to vector<8x32xbf16>
    %183 = vector.extract_strided_slice %18 {offsets = [8, 64], sizes = [8, 32], strides = [1, 1]} : vector<16x128xf32> to vector<8x32xf32>
    %184 = vector.extract_strided_slice %19 {offsets = [8, 64], sizes = [8, 32], strides = [1, 1]} : vector<16x128xf32> to vector<8x32xf32>
    %185 = vector.extract_strided_slice %23 {offsets = [0, 64], sizes = [8, 32], strides = [1, 1]} : vector<8x128xf32> to vector<8x32xf32>
    %186 = tpu.concatenate %185, %183 in 0 : vector<8x32xf32>, vector<8x32xf32> -> vector<16x32xf32>
    %187 = vector.extract_strided_slice %24 {offsets = [0, 64], sizes = [8, 32], strides = [1, 1]} : vector<8x128xf32> to vector<8x32xf32>
    %188 = tpu.concatenate %187, %184 in 0 : vector<8x32xf32>, vector<8x32xf32> -> vector<16x32xf32>
    %189 = arith.truncf %186 : vector<16x32xf32> to vector<16x32xbf16>
    %190 = arith.truncf %188 : vector<16x32xf32> to vector<16x32xbf16>
    %cst_41 = arith.constant dense<0.000000e+00> : vector<8x16xf32>
    %191 = tpu.matmul %182, %189, %cst_41 {dimension_numbers = #tpu.dot_dimension_numbers<[1], [1], [0], [0], [0, 0, 1, 0], [], []>} : vector<8x32xbf16>, vector<16x32xbf16>, vector<8x16xf32> -> vector<8x16xf32>
    %cst_42 = arith.constant -1.000000e+30 : f32
    %192 = vector.broadcast %cst_42 : f32 to vector<8x16xf32>
    %193 = arith.select %29, %191, %192 : vector<8x16xi1>, vector<8x16xf32>
    %cst_43 = arith.constant dense<0xFF800000> : vector<8xf32>
    %194 = vector.multi_reduction <maximumf>, %193, %cst_43 [1] : vector<8x16xf32> to vector<8xf32>
    %195 = vector.shape_cast %194 : vector<8xf32> to vector<8x1xf32>
    %196 = vector.broadcast %195 : vector<8x1xf32> to vector<8x16xf32>
    %197 = arith.subf %193, %196 : vector<8x16xf32>
    %198 = math.exp %197 : vector<8x16xf32>
    %cst_44 = arith.constant dense<0.000000e+00> : vector<8xf32>
    %199 = vector.multi_reduction <add>, %198, %cst_44 [1] : vector<8x16xf32> to vector<8xf32>
    %200 = vector.shape_cast %199 : vector<8xf32> to vector<8x1xf32>
    %201 = arith.truncf %198 : vector<8x16xf32> to vector<8x16xbf16>
    %cst_45 = arith.constant dense<0.000000e+00> : vector<8x32xf32>
    %202 = tpu.matmul %201, %190, %cst_45 {dimension_numbers = #tpu.dot_dimension_numbers<[1], [0], [0], [1], [0, 0, 1, 1], [], []>} : vector<8x16xbf16>, vector<16x32xbf16>, vector<8x32xf32> -> vector<8x32xf32>
    %203 = tpu.reciprocal %200 {approx = true} : vector<8x1xf32> -> vector<8x1xf32>
    %204 = vector.broadcast %203 : vector<8x1xf32> to vector<8x32xf32>
    %205 = arith.mulf %202, %204 : vector<8x32xf32>
    %206 = vector.extract_strided_slice %17 {offsets = [8, 96], sizes = [8, 32], strides = [1, 1]} : vector<16x128xf32> to vector<8x32xf32>
    %207 = arith.truncf %206 : vector<8x32xf32> to vector<8x32xbf16>
    %208 = vector.extract_strided_slice %18 {offsets = [8, 96], sizes = [8, 32], strides = [1, 1]} : vector<16x128xf32> to vector<8x32xf32>
    %209 = vector.extract_strided_slice %19 {offsets = [8, 96], sizes = [8, 32], strides = [1, 1]} : vector<16x128xf32> to vector<8x32xf32>
    %210 = vector.extract_strided_slice %23 {offsets = [0, 96], sizes = [8, 32], strides = [1, 1]} : vector<8x128xf32> to vector<8x32xf32>
    %211 = tpu.concatenate %210, %208 in 0 : vector<8x32xf32>, vector<8x32xf32> -> vector<16x32xf32>
    %212 = vector.extract_strided_slice %24 {offsets = [0, 96], sizes = [8, 32], strides = [1, 1]} : vector<8x128xf32> to vector<8x32xf32>
    %213 = tpu.concatenate %212, %209 in 0 : vector<8x32xf32>, vector<8x32xf32> -> vector<16x32xf32>
    %214 = arith.truncf %211 : vector<16x32xf32> to vector<16x32xbf16>
    %215 = arith.truncf %213 : vector<16x32xf32> to vector<16x32xbf16>
    %cst_46 = arith.constant dense<0.000000e+00> : vector<8x16xf32>
    %216 = tpu.matmul %207, %214, %cst_46 {dimension_numbers = #tpu.dot_dimension_numbers<[1], [1], [0], [0], [0, 0, 1, 0], [], []>} : vector<8x32xbf16>, vector<16x32xbf16>, vector<8x16xf32> -> vector<8x16xf32>
    %cst_47 = arith.constant -1.000000e+30 : f32
    %217 = vector.broadcast %cst_47 : f32 to vector<8x16xf32>
    %218 = arith.select %29, %216, %217 : vector<8x16xi1>, vector<8x16xf32>
    %cst_48 = arith.constant dense<0xFF800000> : vector<8xf32>
    %219 = vector.multi_reduction <maximumf>, %218, %cst_48 [1] : vector<8x16xf32> to vector<8xf32>
    %220 = vector.shape_cast %219 : vector<8xf32> to vector<8x1xf32>
    %221 = vector.broadcast %220 : vector<8x1xf32> to vector<8x16xf32>
    %222 = arith.subf %218, %221 : vector<8x16xf32>
    %223 = math.exp %222 : vector<8x16xf32>
    %cst_49 = arith.constant dense<0.000000e+00> : vector<8xf32>
    %224 = vector.multi_reduction <add>, %223, %cst_49 [1] : vector<8x16xf32> to vector<8xf32>
    %225 = vector.shape_cast %224 : vector<8xf32> to vector<8x1xf32>
    %226 = arith.truncf %223 : vector<8x16xf32> to vector<8x16xbf16>
    %cst_50 = arith.constant dense<0.000000e+00> : vector<8x32xf32>
    %227 = tpu.matmul %226, %215, %cst_50 {dimension_numbers = #tpu.dot_dimension_numbers<[1], [0], [0], [1], [0, 0, 1, 1], [], []>} : vector<8x16xbf16>, vector<16x32xbf16>, vector<8x32xf32> -> vector<8x32xf32>
    %228 = tpu.reciprocal %225 {approx = true} : vector<8x1xf32> -> vector<8x1xf32>
    %229 = vector.broadcast %228 : vector<8x1xf32> to vector<8x32xf32>
    %230 = arith.mulf %227, %229 : vector<8x32xf32>
    %231 = tpu.concatenate %155, %180, %205, %230 in 1 : vector<8x32xf32>, vector<8x32xf32>, vector<8x32xf32>, vector<8x32xf32> -> vector<8x128xf32>
    %232 = tpu.concatenate %130, %231 in 0 : vector<8x128xf32>, vector<8x128xf32> -> vector<16x128xf32>
    %233 = arith.truncf %232 : vector<16x128xf32> to vector<16x128xbf16>
    %c0_51 = arith.constant 0 : index
    %c0_52 = arith.constant 0 : index
    %234 = vector.load %arg5[%c0_51, %c0_52] : memref<128x128xbf16, #tpu.memory_space<vmem>>, vector<128x128xbf16>
    %cst_53 = arith.constant dense<0.000000e+00> : vector<16x128xf32>
    %235 = tpu.matmul %233, %234, %cst_53 {dimension_numbers = #tpu.dot_dimension_numbers<[1], [0], [0], [1], [0, 0, 1, 1], [], []>} : vector<16x128xbf16>, vector<128x128xbf16>, vector<16x128xf32> -> vector<16x128xf32>
    %236 = arith.addf %0, %235 : vector<16x128xf32>
    %c0_54 = arith.constant 0 : index
    %c0_55 = arith.constant 0 : index
    %237 = vector.load %arg3[%c0_54, %c0_55] : memref<1x128xf32, #tpu.memory_space<vmem>>, vector<1x128xf32>
    %238 = arith.mulf %236, %236 : vector<16x128xf32>
    %cst_56 = arith.constant dense<0.000000e+00> : vector<16xf32>
    %239 = vector.multi_reduction <add>, %238, %cst_56 [1] : vector<16x128xf32> to vector<16xf32>
    %240 = vector.shape_cast %239 : vector<16xf32> to vector<16x1xf32>
    %cst_57 = arith.constant 1.280000e+02 : f32
    %241 = vector.broadcast %cst_57 : f32 to vector<16x1xf32>
    %242 = arith.divf %240, %241 : vector<16x1xf32>
    %cst_58 = arith.constant 9.99999997E-7 : f32
    %243 = vector.broadcast %cst_58 : f32 to vector<16x1xf32>
    %244 = arith.addf %242, %243 : vector<16x1xf32>
    %245 = math.rsqrt %244 : vector<16x1xf32>
    %246 = vector.broadcast %245 : vector<16x1xf32> to vector<16x128xf32>
    %247 = arith.mulf %236, %246 : vector<16x128xf32>
    %248 = vector.broadcast %237 : vector<1x128xf32> to vector<16x128xf32>
    %249 = arith.mulf %247, %248 : vector<16x128xf32>
    %250 = arith.truncf %249 : vector<16x128xf32> to vector<16x128xbf16>
    %c0_59 = arith.constant 0 : index
    %c0_60 = arith.constant 0 : index
    %251 = vector.load %arg6[%c0_59, %c0_60] : memref<128x512xbf16, #tpu.memory_space<vmem>>, vector<128x512xbf16>
    %cst_61 = arith.constant dense<0.000000e+00> : vector<16x512xf32>
    %252 = tpu.matmul %250, %251, %cst_61 {dimension_numbers = #tpu.dot_dimension_numbers<[1], [0], [0], [1], [0, 0, 1, 1], [], []>} : vector<16x128xbf16>, vector<128x512xbf16>, vector<16x512xf32> -> vector<16x512xf32>
    %253 = vector.extract_strided_slice %252 {offsets = [0, 0], sizes = [16, 256], strides = [1, 1]} : vector<16x512xf32> to vector<16x256xf32>
    %254 = vector.extract_strided_slice %252 {offsets = [0, 256], sizes = [16, 256], strides = [1, 1]} : vector<16x512xf32> to vector<16x256xf32>
    %255 = arith.negf %253 : vector<16x256xf32>
    %256 = math.exp %255 : vector<16x256xf32>
    %cst_62 = arith.constant 1.000000e+00 : f32
    %257 = vector.broadcast %cst_62 : f32 to vector<16x256xf32>
    %258 = arith.addf %257, %256 : vector<16x256xf32>
    %259 = arith.divf %257, %258 : vector<16x256xf32>
    %260 = arith.mulf %253, %259 : vector<16x256xf32>
    %261 = arith.mulf %260, %254 : vector<16x256xf32>
    %262 = arith.truncf %261 : vector<16x256xf32> to vector<16x256xbf16>
    %c0_63 = arith.constant 0 : index
    %c0_64 = arith.constant 0 : index
    %263 = vector.load %arg7[%c0_63, %c0_64] : memref<256x128xbf16, #tpu.memory_space<vmem>>, vector<256x128xbf16>
    %cst_65 = arith.constant dense<0.000000e+00> : vector<16x128xf32>
    %264 = tpu.matmul %262, %263, %cst_65 {dimension_numbers = #tpu.dot_dimension_numbers<[1], [0], [0], [1], [0, 0, 1, 1], [], []>} : vector<16x256xbf16>, vector<256x128xbf16>, vector<16x128xf32> -> vector<16x128xf32>
    %265 = arith.addf %236, %264 : vector<16x128xf32>
    %c0_66 = arith.constant 0 : index
    %c0_67 = arith.constant 0 : index
    %266 = vector.load %arg9[%c0_66, %c0_67] : memref<16x128xf32, #tpu.memory_space<vmem>>, vector<16x128xf32>
    tpu.vector_store %arg9[%c0_66, %c0_67], %265 {strides = array<i32>} : memref<16x128xf32, #tpu.memory_space<vmem>>, vector<16x128xf32>,
    return
  }
  func.func @transform_0(%arg0: i32) -> (i32, i32) {
    %c0_i32 = arith.constant 0 : i32
    %c0_i32_0 = arith.constant 0 : i32
    %c0_i32_1 = arith.constant 0 : i32
    return %c0_i32, %c0_i32_0 : i32, i32
  }
  func.func @transform_1(%arg0: i32) -> (i32, i32) {
    %c0_i32 = arith.constant 0 : i32
    %c0_i32_0 = arith.constant 0 : i32
    %c0_i32_1 = arith.constant 0 : i32
    return %c0_i32, %c0_i32_0 : i32, i32
  }
  func.func @transform_2(%arg0: i32) -> (i32, i32) {
    %c0_i32 = arith.constant 0 : i32
    %c0_i32_0 = arith.constant 0 : i32
    %c0_i32_1 = arith.constant 0 : i32
    return %c0_i32, %c0_i32_0 : i32, i32
  }
  func.func @transform_3(%arg0: i32) -> (i32, i32) {
    %c0_i32 = arith.constant 0 : i32
    %c0_i32_0 = arith.constant 0 : i32
    %c0_i32_1 = arith.constant 0 : i32
    return %c0_i32, %c0_i32_0 : i32, i32
  }
  func.func @transform_4(%arg0: i32) -> (i32, i32) {
    %c0_i32 = arith.constant 0 : i32
    %c0_i32_0 = arith.constant 0 : i32
    %c0_i32_1 = arith.constant 0 : i32
    return %c0_i32, %c0_i32_0 : i32, i32
  }
  func.func @transform_5(%arg0: i32) -> (i32, i32) {
    %c0_i32 = arith.constant 0 : i32
    %c0_i32_0 = arith.constant 0 : i32
    %c0_i32_1 = arith.constant 0 : i32
    return %c0_i32, %c0_i32_0 : i32, i32
  }
  func.func @transform_6(%arg0: i32) -> (i32, i32) {
    %c0_i32 = arith.constant 0 : i32
    %c0_i32_0 = arith.constant 0 : i32
    %c0_i32_1 = arith.constant 0 : i32
    return %c0_i32, %c0_i32_0 : i32, i32
  }
  func.func @transform_7(%arg0: i32) -> (i32, i32) {
    %c0_i32 = arith.constant 0 : i32
    %c0_i32_0 = arith.constant 0 : i32
    %c0_i32_1 = arith.constant 0 : i32
    return %c0_i32, %c0_i32_0 : i32, i32
  }
  func.func @transform_8(%arg0: i32) -> (i32, i32) {
    %c0_i32 = arith.constant 0 : i32
    %c0_i32_0 = arith.constant 0 : i32
    %c0_i32_1 = arith.constant 0 : i32
    return %c0_i32, %c0_i32_0 : i32, i32
  }
}

module attributes {stable_mosaic.version = 11 : i64} {
  func.func @_layer_kernel(%arg0: i32, %arg1: memref<16x128xf32, #tpu.memory_space<vmem>>, %arg2: memref<1x128xf32, #tpu.memory_space<vmem>>, %arg3: memref<1x128xf32, #tpu.memory_space<vmem>>, %arg4: memref<128x384xbf16, #tpu.memory_space<vmem>>, %arg5: memref<128x128xbf16, #tpu.memory_space<vmem>>, %arg6: memref<128x512xbf16, #tpu.memory_space<vmem>>, %arg7: memref<256x128xbf16, #tpu.memory_space<vmem>>, %arg8: memref<8x128xbf16, #tpu.memory_space<vmem>>, %arg9: memref<16x128xf32, #tpu.memory_space<vmem>>) attributes {dimension_semantics = [#tpu.dimension_semantics<arbitrary>], iteration_bounds = array<i64: 1>, scalar_prefetch = 0 : i64, scratch_operands = 0 : i64, tpu.core_type = #tpu.core_type<tc>, window_params = [{pipeline_mode = #tpu.pipeline_mode<synchronous>, transform_indices = @transform_0, window_bounds = array<i64: 16, 128>}, {pipeline_mode = #tpu.pipeline_mode<synchronous>, transform_indices = @transform_1, window_bounds = array<i64: 1, 128>}, {pipeline_mode = #tpu.pipeline_mode<synchronous>, transform_indices = @transform_2, window_bounds = array<i64: 1, 128>}, {pipeline_mode = #tpu.pipeline_mode<synchronous>, transform_indices = @transform_3, window_bounds = array<i64: 128, 384>}, {pipeline_mode = #tpu.pipeline_mode<synchronous>, transform_indices = @transform_4, window_bounds = array<i64: 128, 128>}, {pipeline_mode = #tpu.pipeline_mode<synchronous>, transform_indices = @transform_5, window_bounds = array<i64: 128, 512>}, {pipeline_mode = #tpu.pipeline_mode<synchronous>, transform_indices = @transform_6, window_bounds = array<i64: 256, 128>}, {pipeline_mode = #tpu.pipeline_mode<synchronous>, transform_indices = @transform_7, window_bounds = array<i64: 8, 128>}, {pipeline_mode = #tpu.pipeline_mode<synchronous>, transform_indices = @transform_8, window_bounds = array<i64: 16, 128>}]} {
    %c0 = arith.constant 0 : index
    %c0_0 = arith.constant 0 : index
    %0 = vector.load %arg1[%c0, %c0_0] : memref<16x128xf32, #tpu.memory_space<vmem>>, vector<16x128xf32>
    %c0_1 = arith.constant 0 : index
    %c0_2 = arith.constant 0 : index
    %1 = vector.load %arg2[%c0_1, %c0_2] : memref<1x128xf32, #tpu.memory_space<vmem>>, vector<1x128xf32>
    %2 = arith.mulf %0, %0 : vector<16x128xf32>
    %cst = arith.constant dense<0.000000e+00> : vector<16xf32>
    %3 = vector.multi_reduction <add>, %2, %cst [1] : vector<16x128xf32> to vector<16xf32>
    %4 = vector.shape_cast %3 : vector<16xf32> to vector<16x1xf32>
    %cst_3 = arith.constant 1.280000e+02 : f32
    %5 = vector.broadcast %cst_3 : f32 to vector<16x1xf32>
    %6 = arith.divf %4, %5 : vector<16x1xf32>
    %cst_4 = arith.constant 9.99999997E-7 : f32
    %7 = vector.broadcast %cst_4 : f32 to vector<16x1xf32>
    %8 = arith.addf %6, %7 : vector<16x1xf32>
    %9 = math.rsqrt %8 : vector<16x1xf32>
    %10 = vector.broadcast %9 : vector<16x1xf32> to vector<16x128xf32>
    %11 = arith.mulf %0, %10 : vector<16x128xf32>
    %12 = vector.broadcast %1 : vector<1x128xf32> to vector<16x128xf32>
    %13 = arith.mulf %11, %12 : vector<16x128xf32>
    %14 = arith.truncf %13 : vector<16x128xf32> to vector<16x128xbf16>
    %c0_5 = arith.constant 0 : index
    %c0_6 = arith.constant 0 : index
    %15 = vector.load %arg4[%c0_5, %c0_6] : memref<128x384xbf16, #tpu.memory_space<vmem>>, vector<128x384xbf16>
    %cst_7 = arith.constant dense<0.000000e+00> : vector<16x384xf32>
    %16 = tpu.matmul %14, %15, %cst_7 {dimension_numbers = #tpu.dot_dimension_numbers<[1], [0], [0], [1], [0, 0, 1, 1], [], []>} : vector<16x128xbf16>, vector<128x384xbf16>, vector<16x384xf32> -> vector<16x384xf32>
    %17 = vector.extract_strided_slice %16 {offsets = [0, 0], sizes = [16, 128], strides = [1, 1]} : vector<16x384xf32> to vector<16x128xf32>
    %18 = vector.extract_strided_slice %16 {offsets = [0, 128], sizes = [16, 128], strides = [1, 1]} : vector<16x384xf32> to vector<16x128xf32>
    %19 = vector.extract_strided_slice %16 {offsets = [0, 256], sizes = [16, 128], strides = [1, 1]} : vector<16x384xf32> to vector<16x128xf32>
    %c0_8 = arith.constant 0 : index
    %c0_9 = arith.constant 0 : index
    %20 = vector.load %arg8[%c0_8, %c0_9] : memref<8x128xbf16, #tpu.memory_space<vmem>>, vector<8x128xbf16>
    %21 = vector.extract_strided_slice %15 {offsets = [0, 128], sizes = [128, 256], strides = [1, 1]} : vector<128x384xbf16> to vector<128x256xbf16>
    %cst_10 = arith.constant dense<0.000000e+00> : vector<8x256xf32>
    %22 = tpu.matmul %20, %21, %cst_10 {dimension_numbers = #tpu.dot_dimension_numbers<[1], [0], [0], [1], [0, 0, 1, 1], [], []>} : vector<8x128xbf16>, vector<128x256xbf16>, vector<8x256xf32> -> vector<8x256xf32>
    %23 = vector.extract_strided_slice %22 {offsets = [0, 0], sizes = [8, 128], strides = [1, 1]} : vector<8x256xf32> to vector<8x128xf32>
    %24 = vector.extract_strided_slice %22 {offsets = [0, 128], sizes = [8, 128], strides = [1, 1]} : vector<8x256xf32> to vector<8x128xf32>
    %25 = tpu.iota {dimensions = array<i32: 0>} : vector<8x16xi32>
    %c8_i32 = arith.constant 8 : i32
    %26 = vector.broadcast %c8_i32 : i32 to vector<8x16xi32>
    %27 = arith.addi %25, %26 : vector<8x16xi32>
    %28 = tpu.iota {dimensions = array<i32: 1>} : vector<8x16xi32>
    %29 = arith.cmpi sle, %28, %27 : vector<8x16xi32>
    %30 = vector.extract_strided_slice %17 {offsets = [0, 0], sizes = [8, 32], strides = [1, 1]} : vector<16x128xf32> to vector<8x32xf32>
    %31 = arith.truncf %30 : vector<8x32xf32> to vector<8x32xbf16>
    %32 = vector.extract_strided_slice %18 {offsets = [0, 0], sizes = [8, 32], strides = [1, 1]} : vector<16x128xf32> to vector<8x32xf32>
    %33 = vector.extract_strided_slice %19 {offsets = [0, 0], sizes = [8, 32], strides = [1, 1]} : vector<16x128xf32> to vector<8x32xf32>
    %34 = vector.extract_strided_slice %23 {offsets = [0, 0], sizes = [8, 32], strides = [1, 1]} : vector<8x128xf32> to vector<8x32xf32>
    %35 = tpu.concatenate %34, %32 in 0 : vector<8x32xf32>, vector<8x32xf32> -> vector<16x32xf32>
    %36 = vector.extract_strided_slice %24 {offsets = [0, 0], sizes = [8, 32], strides = [1, 1]} : vector<8x128xf32> to vector<8x32xf32>
    %37 = tpu.concatenate %36, %33 in 0 : vector<8x32xf32>, vector<8x32xf32> -> vector<16x32xf32>
    %38 = arith.truncf %35 : vector<16x32xf32> to vector<16x32xbf16>
    %39 = arith.truncf %37 : vector<16x32xf32> to vector<16x32xbf16>
    %cst_11 = arith.constant dense<0.000000e+00> : vector<8x16xf32>
    %40 = tpu.matmul %31, %38, %cst_11 {dimension_numbers = #tpu.dot_dimension_numbers<[1], [1], [0], [0], [0, 0, 1, 0], [], []>} : vector<8x32xbf16>, vector<16x32xbf16>, vector<8x16xf32> -> vector<8x16xf32>
    %cst_12 = arith.constant -1.000000e+30 : f32
    %41 = vector.broadcast %cst_12 : f32 to vector<8x16xf32>
    %42 = arith.select %29, %40, %41 : vector<8x16xi1>, vector<8x16xf32>
    %cst_13 = arith.constant dense<0xFF800000> : vector<8xf32>
    %43 = vector.multi_reduction <maximumf>, %42, %cst_13 [1] : vector<8x16xf32> to vector<8xf32>
    %44 = vector.shape_cast %43 : vector<8xf32> to vector<8x1xf32>
    %45 = vector.broadcast %44 : vector<8x1xf32> to vector<8x16xf32>
    %46 = arith.subf %42, %45 : vector<8x16xf32>
    %47 = math.exp %46 : vector<8x16xf32>
    %cst_14 = arith.constant dense<0.000000e+00> : vector<8xf32>
    %48 = vector.multi_reduction <add>, %47, %cst_14 [1] : vector<8x16xf32> to vector<8xf32>
    %49 = vector.shape_cast %48 : vector<8xf32> to vector<8x1xf32>
    %50 = arith.truncf %47 : vector<8x16xf32> to vector<8x16xbf16>
    %cst_15 = arith.constant dense<0.000000e+00> : vector<8x32xf32>
    %51 = tpu.matmul %50, %39, %cst_15 {dimension_numbers = #tpu.dot_dimension_numbers<[1], [0], [0], [1], [0, 0, 1, 1], [], []>} : vector<8x16xbf16>, vector<16x32xbf16>, vector<8x32xf32> -> vector<8x32xf32>
    %52 = tpu.reciprocal %49 {approx = true} : vector<8x1xf32> -> vector<8x1xf32>
    %53 = vector.broadcast %52 : vector<8x1xf32> to vector<8x32xf32>
    %54 = arith.mulf %51, %53 : vector<8x32xf32>
    %55 = vector.extract_strided_slice %17 {offsets = [0, 32], sizes = [8, 32], strides = [1, 1]} : vector<16x128xf32> to vector<8x32xf32>
    %56 = arith.truncf %55 : vector<8x32xf32> to vector<8x32xbf16>
    %57 = vector.extract_strided_slice %18 {offsets = [0, 32], sizes = [8, 32], strides = [1, 1]} : vector<16x128xf32> to vector<8x32xf32>
    %58 = vector.extract_strided_slice %19 {offsets = [0, 32], sizes = [8, 32], strides = [1, 1]} : vector<16x128xf32> to vector<8x32xf32>
    %59 = vector.extract_strided_slice %23 {offsets = [0, 32], sizes = [8, 32], strides = [1, 1]} : vector<8x128xf32> to vector<8x32xf32>
    %60 = tpu.concatenate %59, %57 in 0 : vector<8x32xf32>, vector<8x32xf32> -> vector<16x32xf32>
    %61 = vector.extract_strided_slice %24 {offsets = [0, 32], sizes = [8, 32], strides = [1, 1]} : vector<8x128xf32> to vector<8x32xf32>
    %62 = tpu.concatenate %61, %58 in 0 : vector<8x32xf32>, vector<8x32xf32> -> vector<16x32xf32>
    %63 = arith.truncf %60 : vector<16x32xf32> to vector<16x32xbf16>
    %64 = arith.truncf %62 : vector<16x32xf32> to vector<16x32xbf16>
    %cst_16 = arith.constant dense<0.000000e+00> : vector<8x16xf32>
    %65 = tpu.matmul %56, %63, %cst_16 {dimension_numbers = #tpu.dot_dimension_numbers<[1], [1], [0], [0], [0, 0, 1, 0], [], []>} : vector<8x32xbf16>, vector<16x32xbf16>, vector<8x16xf32> -> vector<8x16xf32>
    %cst_17 = arith.constant -1.000000e+30 : f32
    %66 = vector.broadcast %cst_17 : f32 to vector<8x16xf32>
    %67 = arith.select %29, %65, %66 : vector<8x16xi1>, vector<8x16xf32>
    %cst_18 = arith.constant dense<0xFF800000> : vector<8xf32>
    %68 = vector.multi_reduction <maximumf>, %67, %cst_18 [1] : vector<8x16xf32> to vector<8xf32>
    %69 = vector.shape_cast %68 : vector<8xf32> to vector<8x1xf32>
    %70 = vector.broadcast %69 : vector<8x1xf32> to vector<8x16xf32>
    %71 = arith.subf %67, %70 : vector<8x16xf32>
    %72 = math.exp %71 : vector<8x16xf32>
    %cst_19 = arith.constant dense<0.000000e+00> : vector<8xf32>
    %73 = vector.multi_reduction <add>, %72, %cst_19 [1] : vector<8x16xf32> to vector<8xf32>
    %74 = vector.shape_cast %73 : vector<8xf32> to vector<8x1xf32>
    %75 = arith.truncf %72 : vector<8x16xf32> to vector<8x16xbf16>
    %cst_20 = arith.constant dense<0.000000e+00> : vector<8x32xf32>
    %76 = tpu.matmul %75, %64, %cst_20 {dimension_numbers = #tpu.dot_dimension_numbers<[1], [0], [0], [1], [0, 0, 1, 1], [], []>} : vector<8x16xbf16>, vector<16x32xbf16>, vector<8x32xf32> -> vector<8x32xf32>
    %77 = tpu.reciprocal %74 {approx = true} : vector<8x1xf32> -> vector<8x1xf32>
    %78 = vector.broadcast %77 : vector<8x1xf32> to vector<8x32xf32>
    %79 = arith.mulf %76, %78 : vector<8x32xf32>
    %80 = vector.extract_strided_slice %17 {offsets = [0, 64], sizes = [8, 32], strides = [1, 1]} : vector<16x128xf32> to vector<8x32xf32>
    %81 = arith.truncf %80 : vector<8x32xf32> to vector<8x32xbf16>
    %82 = vector.extract_strided_slice %18 {offsets = [0, 64], sizes = [8, 32], strides = [1, 1]} : vector<16x128xf32> to vector<8x32xf32>
    %83 = vector.extract_strided_slice %19 {offsets = [0, 64], sizes = [8, 32], strides = [1, 1]} : vector<16x128xf32> to vector<8x32xf32>
    %84 = vector.extract_strided_slice %23 {offsets = [0, 64], sizes = [8, 32], strides = [1, 1]} : vector<8x128xf32> to vector<8x32xf32>
    %85 = tpu.concatenate %84, %82 in 0 : vector<8x32xf32>, vector<8x32xf32> -> vector<16x32xf32>
    %86 = vector.extract_strided_slice %24 {offsets = [0, 64], sizes = [8, 32], strides = [1, 1]} : vector<8x128xf32> to vector<8x32xf32>
    %87 = tpu.concatenate %86, %83 in 0 : vector<8x32xf32>, vector<8x32xf32> -> vector<16x32xf32>
    %88 = arith.truncf %85 : vector<16x32xf32> to vector<16x32xbf16>
    %89 = arith.truncf %87 : vector<16x32xf32> to vector<16x32xbf16>
    %cst_21 = arith.constant dense<0.000000e+00> : vector<8x16xf32>
    %90 = tpu.matmul %81, %88, %cst_21 {dimension_numbers = #tpu.dot_dimension_numbers<[1], [1], [0], [0], [0, 0, 1, 0], [], []>} : vector<8x32xbf16>, vector<16x32xbf16>, vector<8x16xf32> -> vector<8x16xf32>
    %cst_22 = arith.constant -1.000000e+30 : f32
    %91 = vector.broadcast %cst_22 : f32 to vector<8x16xf32>
    %92 = arith.select %29, %90, %91 : vector<8x16xi1>, vector<8x16xf32>
    %cst_23 = arith.constant dense<0xFF800000> : vector<8xf32>
    %93 = vector.multi_reduction <maximumf>, %92, %cst_23 [1] : vector<8x16xf32> to vector<8xf32>
    %94 = vector.shape_cast %93 : vector<8xf32> to vector<8x1xf32>
    %95 = vector.broadcast %94 : vector<8x1xf32> to vector<8x16xf32>
    %96 = arith.subf %92, %95 : vector<8x16xf32>
    %97 = math.exp %96 : vector<8x16xf32>
    %cst_24 = arith.constant dense<0.000000e+00> : vector<8xf32>
    %98 = vector.multi_reduction <add>, %97, %cst_24 [1] : vector<8x16xf32> to vector<8xf32>
    %99 = vector.shape_cast %98 : vector<8xf32> to vector<8x1xf32>
    %100 = arith.truncf %97 : vector<8x16xf32> to vector<8x16xbf16>
    %cst_25 = arith.constant dense<0.000000e+00> : vector<8x32xf32>
    %101 = tpu.matmul %100, %89, %cst_25 {dimension_numbers = #tpu.dot_dimension_numbers<[1], [0], [0], [1], [0, 0, 1, 1], [], []>} : vector<8x16xbf16>, vector<16x32xbf16>, vector<8x32xf32> -> vector<8x32xf32>
    %102 = tpu.reciprocal %99 {approx = true} : vector<8x1xf32> -> vector<8x1xf32>
    %103 = vector.broadcast %102 : vector<8x1xf32> to vector<8x32xf32>
    %104 = arith.mulf %101, %103 : vector<8x32xf32>
    %105 = vector.extract_strided_slice %17 {offsets = [0, 96], sizes = [8, 32], strides = [1, 1]} : vector<16x128xf32> to vector<8x32xf32>
    %106 = arith.truncf %105 : vector<8x32xf32> to vector<8x32xbf16>
    %107 = vector.extract_strided_slice %18 {offsets = [0, 96], sizes = [8, 32], strides = [1, 1]} : vector<16x128xf32> to vector<8x32xf32>
    %108 = vector.extract_strided_slice %19 {offsets = [0, 96], sizes = [8, 32], strides = [1, 1]} : vector<16x128xf32> to vector<8x32xf32>
    %109 = vector.extract_strided_slice %23 {offsets = [0, 96], sizes = [8, 32], strides = [1, 1]} : vector<8x128xf32> to vector<8x32xf32>
    %110 = tpu.concatenate %109, %107 in 0 : vector<8x32xf32>, vector<8x32xf32> -> vector<16x32xf32>
    %111 = vector.extract_strided_slice %24 {offsets = [0, 96], sizes = [8, 32], strides = [1, 1]} : vector<8x128xf32> to vector<8x32xf32>
    %112 = tpu.concatenate %111, %108 in 0 : vector<8x32xf32>, vector<8x32xf32> -> vector<16x32xf32>
    %113 = arith.truncf %110 : vector<16x32xf32> to vector<16x32xbf16>
    %114 = arith.truncf %112 : vector<16x32xf32> to vector<16x32xbf16>
    %cst_26 = arith.constant dense<0.000000e+00> : vector<8x16xf32>
    %115 = tpu.matmul %106, %113, %cst_26 {dimension_numbers = #tpu.dot_dimension_numbers<[1], [1], [0], [0], [0, 0, 1, 0], [], []>} : vector<8x32xbf16>, vector<16x32xbf16>, vector<8x16xf32> -> vector<8x16xf32>
    %cst_27 = arith.constant -1.000000e+30 : f32
    %116 = vector.broadcast %cst_27 : f32 to vector<8x16xf32>
    %117 = arith.select %29, %115, %116 : vector<8x16xi1>, vector<8x16xf32>
    %cst_28 = arith.constant dense<0xFF800000> : vector<8xf32>
    %118 = vector.multi_reduction <maximumf>, %117, %cst_28 [1] : vector<8x16xf32> to vector<8xf32>
    %119 = vector.shape_cast %118 : vector<8xf32> to vector<8x1xf32>
    %120 = vector.broadcast %119 : vector<8x1xf32> to vector<8x16xf32>
    %121 = arith.subf %117, %120 : vector<8x16xf32>
    %122 = math.exp %121 : vector<8x16xf32>
    %cst_29 = arith.constant dense<0.000000e+00> : vector<8xf32>
    %123 = vector.multi_reduction <add>, %122, %cst_29 [1] : vector<8x16xf32> to vector<8xf32>
    %124 = vector.shape_cast %123 : vector<8xf32> to vector<8x1xf32>
    %125 = arith.truncf %122 : vector<8x16xf32> to vector<8x16xbf16>
    %cst_30 = arith.constant dense<0.000000e+00> : vector<8x32xf32>
    %126 = tpu.matmul %125, %114, %cst_30 {dimension_numbers = #tpu.dot_dimension_numbers<[1], [0], [0], [1], [0, 0, 1, 1], [], []>} : vector<8x16xbf16>, vector<16x32xbf16>, vector<8x32xf32> -> vector<8x32xf32>
    %127 = tpu.reciprocal %124 {approx = true} : vector<8x1xf32> -> vector<8x1xf32>
    %128 = vector.broadcast %127 : vector<8x1xf32> to vector<8x32xf32>
    %129 = arith.mulf %126, %128 : vector<8x32xf32>
    %130 = tpu.concatenate %54, %79, %104, %129 in 1 : vector<8x32xf32>, vector<8x32xf32>, vector<8x32xf32>, vector<8x32xf32> -> vector<8x128xf32>
    %131 = vector.extract_strided_slice %17 {offsets = [8, 0], sizes = [8, 32], strides = [1, 1]} : vector<16x128xf32> to vector<8x32xf32>
    %132 = arith.truncf %131 : vector<8x32xf32> to vector<8x32xbf16>
    %133 = vector.extract_strided_slice %18 {offsets = [8, 0], sizes = [8, 32], strides = [1, 1]} : vector<16x128xf32> to vector<8x32xf32>
    %134 = vector.extract_strided_slice %19 {offsets = [8, 0], sizes = [8, 32], strides = [1, 1]} : vector<16x128xf32> to vector<8x32xf32>
    %135 = vector.extract_strided_slice %23 {offsets = [0, 0], sizes = [8, 32], strides = [1, 1]} : vector<8x128xf32> to vector<8x32xf32>
    %136 = tpu.concatenate %135, %133 in 0 : vector<8x32xf32>, vector<8x32xf32> -> vector<16x32xf32>
    %137 = vector.extract_strided_slice %24 {offsets = [0, 0], sizes = [8, 32], strides = [1, 1]} : vector<8x128xf32> to vector<8x32xf32>
    %138 = tpu.concatenate %137, %134 in 0 : vector<8x32xf32>, vector<8x32xf32> -> vector<16x32xf32>
    %139 = arith.truncf %136 : vector<16x32xf32> to vector<16x32xbf16>
    %140 = arith.truncf %138 : vector<16x32xf32> to vector<16x32xbf16>
    %cst_31 = arith.constant dense<0.000000e+00> : vector<8x16xf32>
    %141 = tpu.matmul %132, %139, %cst_31 {dimension_numbers = #tpu.dot_dimension_numbers<[1], [1], [0], [0], [0, 0, 1, 0], [], []>} : vector<8x32xbf16>, vector<16x32xbf16>, vector<8x16xf32> -> vector<8x16xf32>
    %cst_32 = arith.constant -1.000000e+30 : f32
    %142 = vector.broadcast %cst_32 : f32 to vector<8x16xf32>
    %143 = arith.select %29, %141, %142 : vector<8x16xi1>, vector<8x16xf32>
    %cst_33 = arith.constant dense<0xFF800000> : vector<8xf32>
    %144 = vector.multi_reduction <maximumf>, %143, %cst_33 [1] : vector<8x16xf32> to vector<8xf32>
    %145 = vector.shape_cast %144 : vector<8xf32> to vector<8x1xf32>
    %146 = vector.broadcast %145 : vector<8x1xf32> to vector<8x16xf32>
    %147 = arith.subf %143, %146 : vector<8x16xf32>
    %148 = math.exp %147 : vector<8x16xf32>
    %cst_34 = arith.constant dense<0.000000e+00> : vector<8xf32>
    %149 = vector.multi_reduction <add>, %148, %cst_34 [1] : vector<8x16xf32> to vector<8xf32>
    %150 = vector.shape_cast %149 : vector<8xf32> to vector<8x1xf32>
    %151 = arith.truncf %148 : vector<8x16xf32> to vector<8x16xbf16>
    %cst_35 = arith.constant dense<0.000000e+00> : vector<8x32xf32>
    %152 = tpu.matmul %151, %140, %cst_35 {dimension_numbers = #tpu.dot_dimension_numbers<[1], [0], [0], [1], [0, 0, 1, 1], [], []>} : vector<8x16xbf16>, vector<16x32xbf16>, vector<8x32xf32> -> vector<8x32xf32>
    %153 = tpu.reciprocal %150 {approx = true} : vector<8x1xf32> -> vector<8x1xf32>
    %154 = vector.broadcast %153 : vector<8x1xf32> to vector<8x32xf32>
    %155 = arith.mulf %152, %154 : vector<8x32xf32>
    %156 = vector.extract_strided_slice %17 {offsets = [8, 32], sizes = [8, 32], strides = [1, 1]} : vector<16x128xf32> to vector<8x32xf32>
    %157 = arith.truncf %156 : vector<8x32xf32> to vector<8x32xbf16>
    %158 = vector.extract_strided_slice %18 {offsets = [8, 32], sizes = [8, 32], strides = [1, 1]} : vector<16x128xf32> to vector<8x32xf32>
    %159 = vector.extract_strided_slice %19 {offsets = [8, 32], sizes = [8, 32], strides = [1, 1]} : vector<16x128xf32> to vector<8x32xf32>
    %160 = vector.extract_strided_slice %23 {offsets = [0, 32], sizes = [8, 32], strides = [1, 1]} : vector<8x128xf32> to vector<8x32xf32>
    %161 = tpu.concatenate %160, %158 in 0 : vector<8x32xf32>, vector<8x32xf32> -> vector<16x32xf32>
    %162 = vector.extract_strided_slice %24 {offsets = [0, 32], sizes = [8, 32], strides = [1, 1]} : vector<8x128xf32> to vector<8x32xf32>
    %163 = tpu.concatenate %162, %159 in 0 : vector<8x32xf32>, vector<8x32xf32> -> vector<16x32xf32>
    %164 = arith.truncf %161 : vector<16x32xf32> to vector<16x32xbf16>
    %165 = arith.truncf %163 : vector<16x32xf32> to vector<16x32xbf16>
    %cst_36 = arith.constant dense<0.000000e+00> : vector<8x16xf32>
    %166 = tpu.matmul %157, %164, %cst_36 {dimension_numbers = #tpu.dot_dimension_numbers<[1], [1], [0], [0], [0, 0, 1, 0], [], []>} : vector<8x32xbf16>, vector<16x32xbf16>, vector<8x16xf32> -> vector<8x16xf32>
    %cst_37 = arith.constant -1.000000e+30 : f32
    %167 = vector.broadcast %cst_37 : f32 to vector<8x16xf32>
    %168 = arith.select %29, %166, %167 : vector<8x16xi1>, vector<8x16xf32>
    %cst_38 = arith.constant dense<0xFF800000> : vector<8xf32>
    %169 = vector.multi_reduction <maximumf>, %168, %cst_38 [1] : vector<8x16xf32> to vector<8xf32>
    %170 = vector.shape_cast %169 : vector<8xf32> to vector<8x1xf32>
    %171 = vector.broadcast %170 : vector<8x1xf32> to vector<8x16xf32>
    %172 = arith.subf %168, %171 : vector<8x16xf32>
    %173 = math.exp %172 : vector<8x16xf32>
    %cst_39 = arith.constant dense<0.000000e+00> : vector<8xf32>
    %174 = vector.multi_reduction <add>, %173, %cst_39 [1] : vector<8x16xf32> to vector<8xf32>
    %175 = vector.shape_cast %174 : vector<8xf32> to vector<8x1xf32>
    %176 = arith.truncf %173 : vector<8x16xf32> to vector<8x16xbf16>
    %cst_40 = arith.constant dense<0.000000e+00> : vector<8x32xf32>
    %177 = tpu.matmul %176, %165, %cst_40 {dimension_numbers = #tpu.dot_dimension_numbers<[1], [0], [0], [1], [0, 0, 1, 1], [], []>} : vector<8x16xbf16>, vector<16x32xbf16>, vector<8x32xf32> -> vector<8x32xf32>
    %178 = tpu.reciprocal %175 {approx = true} : vector<8x1xf32> -> vector<8x1xf32>
    %179 = vector.broadcast %178 : vector<8x1xf32> to vector<8x32xf32>
    %180 = arith.mulf %177, %179 : vector<8x32xf32>
    %181 = vector.extract_strided_slice %17 {offsets = [8, 64], sizes = [8, 32], strides = [1, 1]} : vector<16x128xf32> to vector<8x32xf32>
    %182 = arith.truncf %181 : vector<8x32xf32> to vector<8x32xbf16>
    %183 = vector.extract_strided_slice %18 {offsets = [8, 64], sizes = [8, 32], strides = [1, 1]} : vector<16x128xf32> to vector<8x32xf32>
    %184 = vector.extract_strided_slice %19 {offsets = [8, 64], sizes = [8, 32], strides = [1, 1]} : vector<16x128xf32> to vector<8x32xf32>
    %185 = vector.extract_strided_slice %23 {offsets = [0, 64], sizes = [8, 32], strides = [1, 1]} : vector<8x128xf32> to vector<8x32xf32>
    %186 = tpu.concatenate %185, %183 in 0 : vector<8x32xf32>, vector<8x32xf32> -> vector<16x32xf32>
    %187 = vector.extract_strided_slice %24 {offsets = [0, 64], sizes = [8, 32], strides = [1, 1]} : vector<8x128xf32> to vector<8x32xf32>
    %188 = tpu.concatenate %187, %184 in 0 : vector<8x32xf32>, vector<8x32xf32> -> vector<16x32xf32>
    %189 = arith.truncf %186 : vector<16x32xf32> to vector<16x32xbf16>
    %190 = arith.truncf %188 : vector<16x32xf32> to vector<16x32xbf16>
    %cst_41 = arith.constant dense<0.000000e+00> : vector<8x16xf32>
    %191 = tpu.matmul %182, %189, %cst_41 {dimension_numbers = #tpu.dot_dimension_numbers<[1], [1], [0], [0], [0, 0, 1, 0], [], []>} : vector<8x32xbf16>, vector<16x32xbf16>, vector<8x16xf32> -> vector<8x16xf32>
    %cst_42 = arith.constant -1.000000e+30 : f32
    %192 = vector.broadcast %cst_42 : f32 to vector<8x16xf32>
    %193 = arith.select %29, %191, %192 : vector<8x16xi1>, vector<8x16xf32>
    %cst_43 = arith.constant dense<0xFF800000> : vector<8xf32>
    %194 = vector.multi_reduction <maximumf>, %193, %cst_43 [1] : vector<8x16xf32> to vector<8xf32>
    %195 = vector.shape_cast %194 : vector<8xf32> to vector<8x1xf32>
    %196 = vector.broadcast %195 : vector<8x1xf32> to vector<8x16xf32>
    %197 = arith.subf %193, %196 : vector<8x16xf32>
    %198 = math.exp %197 : vector<8x16xf32>
    %cst_44 = arith.constant dense<0.000000e+00> : vector<8xf32>
    %199 = vector.multi_reduction <add>, %198, %cst_44 [1] : vector<8x16xf32> to vector<8xf32>
    %200 = vector.shape_cast %199 : vector<8xf32> to vector<8x1xf32>
    %201 = arith.truncf %198 : vector<8x16xf32> to vector<8x16xbf16>
    %cst_45 = arith.constant dense<0.000000e+00> : vector<8x32xf32>
    %202 = tpu.matmul %201, %190, %cst_45 {dimension_numbers = #tpu.dot_dimension_numbers<[1], [0], [0], [1], [0, 0, 1, 1], [], []>} : vector<8x16xbf16>, vector<16x32xbf16>, vector<8x32xf32> -> vector<8x32xf32>
    %203 = tpu.reciprocal %200 {approx = true} : vector<8x1xf32> -> vector<8x1xf32>
    %204 = vector.broadcast %203 : vector<8x1xf32> to vector<8x32xf32>
    %205 = arith.mulf %202, %204 : vector<8x32xf32>
    %206 = vector.extract_strided_slice %17 {offsets = [8, 96], sizes = [8, 32], strides = [1, 1]} : vector<16x128xf32> to vector<8x32xf32>
    %207 = arith.truncf %206 : vector<8x32xf32> to vector<8x32xbf16>
    %208 = vector.extract_strided_slice %18 {offsets = [8, 96], sizes = [8, 32], strides = [1, 1]} : vector<16x128xf32> to vector<8x32xf32>
    %209 = vector.extract_strided_slice %19 {offsets = [8, 96], sizes = [8, 32], strides = [1, 1]} : vector<16x128xf32> to vector<8x32xf32>
    %210 = vector.extract_strided_slice %23 {offsets = [0, 96], sizes = [8, 32], strides = [1, 1]} : vector<8x128xf32> to vector<8x32xf32>
    %211 = tpu.concatenate %210, %208 in 0 : vector<8x32xf32>, vector<8x32xf32> -> vector<16x32xf32>
    %212 = vector.extract_strided_slice %24 {offsets = [0, 96], sizes = [8, 32], strides = [1, 1]} : vector<8x128xf32> to vector<8x32xf32>
    %213 = tpu.concatenate %212, %209 in 0 : vector<8x32xf32>, vector<8x32xf32> -> vector<16x32xf32>
    %214 = arith.truncf %211 : vector<16x32xf32> to vector<16x32xbf16>
    %215 = arith.truncf %213 : vector<16x32xf32> to vector<16x32xbf16>
    %cst_46 = arith.constant dense<0.000000e+00> : vector<8x16xf32>
    %216 = tpu.matmul %207, %214, %cst_46 {dimension_numbers = #tpu.dot_dimension_numbers<[1], [1], [0], [0], [0, 0, 1, 0], [], []>} : vector<8x32xbf16>, vector<16x32xbf16>, vector<8x16xf32> -> vector<8x16xf32>
    %cst_47 = arith.constant -1.000000e+30 : f32
    %217 = vector.broadcast %cst_47 : f32 to vector<8x16xf32>
    %218 = arith.select %29, %216, %217 : vector<8x16xi1>, vector<8x16xf32>
    %cst_48 = arith.constant dense<0xFF800000> : vector<8xf32>
    %219 = vector.multi_reduction <maximumf>, %218, %cst_48 [1] : vector<8x16xf32> to vector<8xf32>
    %220 = vector.shape_cast %219 : vector<8xf32> to vector<8x1xf32>
    %221 = vector.broadcast %220 : vector<8x1xf32> to vector<8x16xf32>
    %222 = arith.subf %218, %221 : vector<8x16xf32>
    %223 = math.exp %222 : vector<8x16xf32>
    %cst_49 = arith.constant dense<0.000000e+00> : vector<8xf32>
    %224 = vector.multi_reduction <add>, %223, %cst_49 [1] : vector<8x16xf32> to vector<8xf32>
    %225 = vector.shape_cast %224 : vector<8xf32> to vector<8x1xf32>
    %226 = arith.truncf %223 : vector<8x16xf32> to vector<8x16xbf16>
    %cst_50 = arith.constant dense<0.000000e+00> : vector<8x32xf32>
    %227 = tpu.matmul %226, %215, %cst_50 {dimension_numbers = #tpu.dot_dimension_numbers<[1], [0], [0], [1], [0, 0, 1, 1], [], []>} : vector<8x16xbf16>, vector<16x32xbf16>, vector<8x32xf32> -> vector<8x32xf32>
    %228 = tpu.reciprocal %225 {approx = true} : vector<8x1xf32> -> vector<8x1xf32>
    %229 = vector.broadcast %228 : vector<8x1xf32> to vector<8x32xf32>
    %230 = arith.mulf %227, %229 : vector<8x32xf32>
    %231 = tpu.concatenate %155, %180, %205, %230 in 1 : vector<8x32xf32>, vector<8x32xf32>, vector<8x32xf32>, vector<8x32xf32> -> vector<8x128xf32>
    %232 = tpu.concatenate %130, %231 in 0 : vector<8x128xf32>, vector<8x128xf32> -> vector<16x128xf32>
    %233 = arith.truncf %232 : vector<16x128xf32> to vector<16x128xbf16>
    %c0_51 = arith.constant 0 : index
    %c0_52 = arith.constant 0 : index
    %234 = vector.load %arg5[%c0_51, %c0_52] : memref<128x128xbf16, #tpu.memory_space<vmem>>, vector<128x128xbf16>
    %cst_53 = arith.constant dense<0.000000e+00> : vector<16x128xf32>
    %235 = tpu.matmul %233, %234, %cst_53 {dimension_numbers = #tpu.dot_dimension_numbers<[1], [0], [0], [1], [0, 0, 1, 1], [], []>} : vector<16x128xbf16>, vector<128x128xbf16>, vector<16x128xf32> -> vector<16x128xf32>
    %236 = arith.addf %0, %235 : vector<16x128xf32>
    %c0_54 = arith.constant 0 : index
    %c0_55 = arith.constant 0 : index
    %237 = vector.load %arg3[%c0_54, %c0_55] : memref<1x128xf32, #tpu.memory_space<vmem>>, vector<1x128xf32>
    %238 = arith.mulf %236, %236 : vector<16x128xf32>
    %cst_56 = arith.constant dense<0.000000e+00> : vector<16xf32>
    %239 = vector.multi_reduction <add>, %238, %cst_56 [1] : vector<16x128xf32> to vector<16xf32>
    %240 = vector.shape_cast %239 : vector<16xf32> to vector<16x1xf32>
    %cst_57 = arith.constant 1.280000e+02 : f32
    %241 = vector.broadcast %cst_57 : f32 to vector<16x1xf32>
    %242 = arith.divf %240, %241 : vector<16x1xf32>
    %cst_58 = arith.constant 9.99999997E-7 : f32
    %243 = vector.broadcast %cst_58 : f32 to vector<16x1xf32>
    %244 = arith.addf %242, %243 : vector<16x1xf32>
    %245 = math.rsqrt %244 : vector<16x1xf32>
    %246 = vector.broadcast %245 : vector<16x1xf32> to vector<16x128xf32>
    %247 = arith.mulf %236, %246 : vector<16x128xf32>
    %248 = vector.broadcast %237 : vector<1x128xf32> to vector<16x128xf32>
    %249 = arith.mulf %247, %248 : vector<16x128xf32>
    %250 = arith.truncf %249 : vector<16x128xf32> to vector<16x128xbf16>
    %c0_59 = arith.constant 0 : index
    %c0_60 = arith.constant 0 : index
    %251 = vector.load %arg6[%c0_59, %c0_60] : memref<128x512xbf16, #tpu.memory_space<vmem>>, vector<128x512xbf16>
    %cst_61 = arith.constant dense<0.000000e+00> : vector<16x512xf32>
    %252 = tpu.matmul %250, %251, %cst_61 {dimension_numbers = #tpu.dot_dimension_numbers<[1], [0], [0], [1], [0, 0, 1, 1], [], []>} : vector<16x128xbf16>, vector<128x512xbf16>, vector<16x512xf32> -> vector<16x512xf32>
    %253 = vector.extract_strided_slice %252 {offsets = [0, 0], sizes = [16, 256], strides = [1, 1]} : vector<16x512xf32> to vector<16x256xf32>
    %254 = vector.extract_strided_slice %252 {offsets = [0, 256], sizes = [16, 256], strides = [1, 1]} : vector<16x512xf32> to vector<16x256xf32>
    %255 = arith.negf %253 : vector<16x256xf32>
    %256 = math.exp %255 : vector<16x256xf32>
    %cst_62 = arith.constant 1.000000e+00 : f32
    %257 = vector.broadcast %cst_62 : f32 to vector<16x256xf32>
    %258 = arith.addf %257, %256 : vector<16x256xf32>
    %259 = arith.divf %257, %258 : vector<16x256xf32>
    %260 = arith.mulf %253, %259 : vector<16x256xf32>
    %261 = arith.mulf %260, %254 : vector<16x256xf32>
    %262 = arith.truncf %261 : vector<16x256xf32> to vector<16x256xbf16>
    %c0_63 = arith.constant 0 : index
    %c0_64 = arith.constant 0 : index
    %263 = vector.load %arg7[%c0_63, %c0_64] : memref<256x128xbf16, #tpu.memory_space<vmem>>, vector<256x128xbf16>
    %cst_65 = arith.constant dense<0.000000e+00> : vector<16x128xf32>
    %264 = tpu.matmul %262, %263, %cst_65 {dimension_numbers = #tpu.dot_dimension_numbers<[1], [0], [0], [1], [0, 0, 1, 1], [], []>} : vector<16x256xbf16>, vector<256x128xbf16>, vector<16x128xf32> -> vector<16x128xf32>
    %265 = arith.addf %236, %264 : vector<16x128xf32>
    %c0_66 = arith.constant 0 : index
    %c0_67 = arith.constant 0 : index
    %266 = vector.load %arg9[%c0_66, %c0_67] : memref<16x128xf32, #tpu.memory_space<vmem>>, vector<16x128xf32>
    tpu.vector_store %arg9[%c0_66, %c0_67], %265 {strides = array<i32>} : memref<16x128xf32, #tpu.memory_space<vmem>>, vector<16x128xf32>,
    return
  }
  func.func @transform_0(%arg0: i32) -> (i32, i32) {
    %c0_i32 = arith.constant 0 : i32
    %c0_i32_0 = arith.constant 0 : i32
    %c0_i32_1 = arith.constant 0 : i32
    return %c0_i32, %c0_i32_0 : i32, i32
  }
  func.func @transform_1(%arg0: i32) -> (i32, i32) {
    %c0_i32 = arith.constant 0 : i32
    %c0_i32_0 = arith.constant 0 : i32
    %c0_i32_1 = arith.constant 0 : i32
    return %c0_i32, %c0_i32_0 : i32, i32
  }
  func.func @transform_2(%arg0: i32) -> (i32, i32) {
    %c0_i32 = arith.constant 0 : i32
    %c0_i32_0 = arith.constant 0 : i32
    %c0_i32_1 = arith.constant 0 : i32
    return %c0_i32, %c0_i32_0 : i32, i32
  }
  func.func @transform_3(%arg0: i32) -> (i32, i32) {
    %c0_i32 = arith.constant 0 : i32
    %c0_i32_0 = arith.constant 0 : i32
    %c0_i32_1 = arith.constant 0 : i32
    return %c0_i32, %c0_i32_0 : i32, i32
  }
  func.func @transform_4(%arg0: i32) -> (i32, i32) {
    %c0_i32 = arith.constant 0 : i32
    %c0_i32_0 = arith.constant 0 : i32
    %c0_i32_1 = arith.constant 0 : i32
    return %c0_i32, %c0_i32_0 : i32, i32
  }
  func.func @transform_5(%arg0: i32) -> (i32, i32) {
    %c0_i32 = arith.constant 0 : i32
    %c0_i32_0 = arith.constant 0 : i32
    %c0_i32_1 = arith.constant 0 : i32
    return %c0_i32, %c0_i32_0 : i32, i32
  }
  func.func @transform_6(%arg0: i32) -> (i32, i32) {
    %c0_i32 = arith.constant 0 : i32
    %c0_i32_0 = arith.constant 0 : i32
    %c0_i32_1 = arith.constant 0 : i32
    return %c0_i32, %c0_i32_0 : i32, i32
  }
  func.func @transform_7(%arg0: i32) -> (i32, i32) {
    %c0_i32 = arith.constant 0 : i32
    %c0_i32_0 = arith.constant 0 : i32
    %c0_i32_1 = arith.constant 0 : i32
    return %c0_i32, %c0_i32_0 : i32, i32
  }
  func.func @transform_8(%arg0: i32) -> (i32, i32) {
    %c0_i32 = arith.constant 0 : i32
    %c0_i32_0 = arith.constant 0 : i32
    %c0_i32_1 = arith.constant 0 : i32
    return %c0_i32, %c0_i32_0 : i32, i32
  }
}

</mosaic_0001>

<llo_original>
// kernel: sub.1
$region0: #{sub.1}
  %s0 = inlined_call_operand.vmem [shape: f32[2,7], index: 0, kind: input, shape index: {}]
  %s1 = inlined_call_operand.vmem [shape: f32[14], index: 1, kind: output, shape index: {}]
  $region1: #{sub.1} parent=0
    #allocation0 [shape = 'u8[4096]{0}', space=vmem, size = 0x1000, scoped, tag = 'scoped mem for output reshape']
    #allocation1 [shape = 'u8[4096]{0}', space=vmem, size = 0x1000, scoped, tag = 'scoped mem for input reshape']
    %s3 = sshllo.u32 0, 2
    %v4 = vld [vmem:[%s0] sm:%s3]
    %5 = vst [vmem:[#allocation1] sm:%s3] %v4
    %v6 = vld [vmem:[#allocation1] sm:$0x1]
    %vm7 = vcmask 56320
    %8 = vst.msk [vmem:[#allocation0] sm:$0x1] %vm7, %v6
    %s9 = scalar_lea.vmem [#allocation1], 1
    %v10 = vld [vmem:[%s9] sm:$0x1]
    %11 = vrot.lane.b32.xlu0 %v10, 7
    %v12 = vpop.permute.xlu0 %11
    %vm13 = vcmask 113720
    %14 = vst.msk [vmem:[#allocation0] sm:$0x1] %vm13, %v12
    %s16 = sshllo.u32 0, 1
    %v18 = vld [vmem:[#allocation0] sm:%s16]
    %s19 = sshllo.u32 0, 1
    %20 = vst [vmem:[%s1] sm:%s19] %v18

// kernel: model_forward.5
$region0: #{model_forward.5}
  #allocation0 [shape = 'u32[]', space=smem, size = 0x4, offset = 0x4, fixed_abs, tag = 'smem constant byte address 0x4 - core index']
  #allocation1 [shape = 'u32[144,128]{1,0:T(1,128)}', space=vmem, size = 0x12000, scoped, tag = 'internal scratch']
  %s0 = inlined_call_operand.vmem [shape: f32[16,128], index: 0, kind: input, shape index: {}]
  %s1 = inlined_call_operand.vmem [shape: f32[1,128], index: 1, kind: input, shape index: {}]
  %s2 = inlined_call_operand.vmem [shape: bf16[128,256], index: 2, kind: input, shape index: {}]
  %s3 = inlined_call_operand.vmem [shape: f32[16,256], index: 3, kind: output, shape index: {}]
  %s4 = sld [smem:[#allocation0]]
  $region22: #{model_forward.5} parent=0
    _
  %s6 = ssub.s32 1, %s4
  %s7 = scalar_select 0, %s6, %s4
  // Predicated region
  $region2: #{model_forward.5} parent=0 // pred_check
    _
  $region3: #{model_forward.5} parent=0 // pred_check_branch
    %9 = sbr.rel (0) target = $region5
  $region4: #{model_forward.5} parent=0 // pred_region
    _
  $region5: #{model_forward.5} parent=0 // pred_fallthru
    _
  // Predicated region
  $region6: #{model_forward.5} parent=0 // pred_check
    _
  $region7: #{model_forward.5} parent=0 // pred_check_branch
    %11 = sbr.rel (0) target = $region9
  $region8: #{model_forward.5} parent=0 // pred_region
    _
  $region9: #{model_forward.5} parent=0 // pred_fallthru
    _
  // Predicated region
  $region10: #{model_forward.5} parent=0 // pred_check
    _
  $region11: #{model_forward.5} parent=0 // pred_check_branch
    %13 = sbr.rel (0) target = $region13
  $region12: #{model_forward.5} parent=0 // pred_region
    _
  $region13: #{model_forward.5} parent=0 // pred_fallthru
    _
  %v15 = vld [vmem:[%s0] sm:$0xff]
  %v16 = vld [vmem:[%s0 + $0x8] sm:$0xff]
  %v17 = vmul.f32 %v15, %v15
  %v18 = vmul.f32 %v16, %v16
  %19 = vadd.xlane.f32.xlu0 %v17
  %v20 = vpop.xlane.xlu0 %19
  %21 = vadd.xlane.f32.xlu0 %v18
  %v22 = vpop.xlane.xlu0 %21
  %v23 = vrcp.pop 128.0
  %v24 = vmul.f32 %v20, %v23
  %v25 = vmul.f32 %v22, %v23
  %v26 = vadd.f32 %v24, 1e-06
  %v27 = vadd.f32 %v25, 1e-06
  %v28 = vrsqrt.pop %v26
  %v29 = vrsqrt.pop %v27
  %v30 = vmul.f32 %v15, %v28
  %v31 = vmul.f32 %v16, %v29
  %v32 = vld [vmem:[%s1] sm:$0x1]
  %v34 = vlaneseq
  %v35 = vshrl.u32 %v34, 7
  %v36 = vsub.s32 0, %v35
  %v37 = vrot.slane %v32, %v36
  %v39 = vmul.f32 %v30, %v37
  %v40 = vmul.f32 %v31, %v37
  %v41 = vpack.c.bf16 %v40, %v39
  %v42 = vld [vmem:[%s2] sm:$0xff]
  %v43 = vld [vmem:[%s2 + $0x8] sm:$0xff]
  %v44 = vld [vmem:[%s2 + $0x10] sm:$0xff]
  %v45 = vld [vmem:[%s2 + $0x18] sm:$0xff]
  %v46 = vld [vmem:[%s2 + $0x20] sm:$0xff]
  %v47 = vld [vmem:[%s2 + $0x28] sm:$0xff]
  %v48 = vld [vmem:[%s2 + $0x30] sm:$0xff]
  %v49 = vld [vmem:[%s2 + $0x38] sm:$0xff]
  %v50 = vld [vmem:[%s2 + $0x40] sm:$0xff]
  %v51 = vld [vmem:[%s2 + $0x48] sm:$0xff]
  %v52 = vld [vmem:[%s2 + $0x50] sm:$0xff]
  %v53 = vld [vmem:[%s2 + $0x58] sm:$0xff]
  %v54 = vld [vmem:[%s2 + $0x60] sm:$0xff]
  %v55 = vld [vmem:[%s2 + $0x68] sm:$0xff]
  %v56 = vld [vmem:[%s2 + $0x70] sm:$0xff]
  %v57 = vld [vmem:[%s2 + $0x78] sm:$0xff]
  %v74 = vunpack.c.l.b16 %v42
  %v75 = vunpack.c.h.b16 %v42
  %v76 = vunpack.c.l.b16 %v43
  %v77 = vunpack.c.h.b16 %v43
  %v78 = vunpack.c.l.b16 %v44
  %v79 = vunpack.c.h.b16 %v44
  %v80 = vunpack.c.l.b16 %v45
  %v81 = vunpack.c.h.b16 %v45
  %v82 = vunpack.c.l.b16 %v46
  %v83 = vunpack.c.h.b16 %v46
  %v84 = vunpack.c.l.b16 %v47
  %v85 = vunpack.c.h.b16 %v47
  %v86 = vunpack.c.l.b16 %v48
  %v87 = vunpack.c.h.b16 %v48
  %v88 = vunpack.c.l.b16 %v49
  %v89 = vunpack.c.h.b16 %v49
  %v90 = vunpack.c.l.b16 %v50
  %v91 = vunpack.c.h.b16 %v50
  %v92 = vunpack.c.l.b16 %v51
  %v93 = vunpack.c.h.b16 %v51
  %v94 = vunpack.c.l.b16 %v52
  %v95 = vunpack.c.h.b16 %v52
  %v96 = vunpack.c.l.b16 %v53
  %v97 = vunpack.c.h.b16 %v53
  %v98 = vunpack.c.l.b16 %v54
  %v99 = vunpack.c.h.b16 %v54
  %v100 = vunpack.c.l.b16 %v55
  %v101 = vunpack.c.h.b16 %v55
  %v102 = vunpack.c.l.b16 %v56
  %v103 = vunpack.c.h.b16 %v56
  %v104 = vunpack.c.l.b16 %v57
  %v105 = vunpack.c.h.b16 %v57
  %v106 = vpack.c.b16 %v76, %v74
  %v107 = vpack.c.b16 %v77, %v75
  %v108 = vpack.c.b16 %v80, %v78
  %v109 = vpack.c.b16 %v81, %v79
  %v110 = vpack.c.b16 %v84, %v82
  %v111 = vpack.c.b16 %v85, %v83
  %v112 = vpack.c.b16 %v88, %v86
  %v113 = vpack.c.b16 %v89, %v87
  %v114 = vpack.c.b16 %v92, %v90
  %v115 = vpack.c.b16 %v93, %v91
  %v116 = vpack.c.b16 %v96, %v94
  %v117 = vpack.c.b16 %v97, %v95
  %v118 = vpack.c.b16 %v100, %v98
  %v119 = vpack.c.b16 %v101, %v99
  %v120 = vpack.c.b16 %v104, %v102
  %v121 = vpack.c.b16 %v105, %v103
  %138 = vmatprep.subr.bf16.mxu0 %v107
  %139 = vmatpush1.bf16.msra.mxu0 %v106
  %140 = vmatprep.subr.bf16.mxu0 %v109
  %141 = vmatpush1.bf16.msra.mxu0 %v108
  %142 = vmatprep.subr.bf16.mxu0 %v111
  %143 = vmatpush1.bf16.msra.mxu0 %v110
  %144 = vmatprep.subr.bf16.mxu0 %v113
  %145 = vmatpush1.bf16.msra.mxu0 %v112
  %146 = vmatprep.subr.bf16.mxu0 %v115
  %147 = vmatpush1.bf16.msra.mxu0 %v114
  %148 = vmatprep.subr.bf16.mxu0 %v117
  %149 = vmatpush1.bf16.msra.mxu0 %v116
  %150 = vmatprep.subr.bf16.mxu0 %v119
  %151 = vmatpush1.bf16.msra.mxu0 %v118
  %152 = vmatprep.subr.bf16.mxu0 %v121
  %153 = vmatpush1.bf16.msra.mxu0 %v120
  %154 = vmatprep.subr.bf16.mxu0 0
  %155 = vmatpush1.bf16.msra.mxu0 0
  %156 = vmatprep.subr.bf16.mxu0 0
  %157 = vmatpush1.bf16.msra.mxu0 0
  %158 = vmatprep.subr.bf16.mxu0 0
  %159 = vmatpush1.bf16.msra.mxu0 0
  %160 = vmatprep.subr.bf16.mxu0 0
  %161 = vmatpush1.bf16.msra.mxu0 0
  %162 = vmatprep.subr.bf16.mxu0 0
  %163 = vmatpush1.bf16.msra.mxu0 0
  %164 = vmatprep.subr.bf16.mxu0 0
  %165 = vmatpush1.bf16.msra.mxu0 0
  %166 = vmatprep.subr.bf16.mxu0 0
  %167 = vmatpush1.bf16.msra.mxu0 0
  %168 = vmatprep.subr.bf16.mxu0 0
  %169 = vmatpush1.bf16.msra.mxu0 0
  %170 = vmatprep.mubr.bf16.mxu0 0
  %171 = vmatmul.mubr.bf16.gmra.mrb[0].mxu0 %v41
  %v172 = vpop.f32.mrb[0].mxu0
  %v173 = vadd.f32 0.0, %v172
  %v174 = vpop.f32.mrb[0].mxu0
  %v175 = vadd.f32 0.0, %v174
  %v176 = vpop.f32.mrb[0].mxu0
  %v177 = vadd.f32 0.0, %v176
  %v178 = vpop.f32.mrb[0].mxu0
  %v179 = vadd.f32 0.0, %v178
  %180 = vdwg.mxu0
  %181 = vst [vmem:[%s3] sm:$0xff] %v173
  %182 = vst [vmem:[%s3 + $0x8] sm:$0xff] %v175
  %183 = vst [vmem:[%s3 + $0x10] sm:$0xff] %v177
  %184 = vst [vmem:[%s3 + $0x18] sm:$0xff] %v179
  // Predicated region
  $region14: #{model_forward.5} parent=0 // pred_check
    _
  $region15: #{model_forward.5} parent=0 // pred_check_branch
    %186 = sbr.rel (0) target = $region17
  $region16: #{model_forward.5} parent=0 // pred_region
    _
  $region17: #{model_forward.5} parent=0 // pred_fallthru
    _
  // Predicated region
  $region18: #{model_forward.5} parent=0 // pred_check
    _
  $region19: #{model_forward.5} parent=0 // pred_check_branch
    %188 = sbr.rel (0) target = $region21
  $region20: #{model_forward.5} parent=0 // pred_region
    _
  $region21: #{model_forward.5} parent=0 // pred_fallthru
    _

// kernel: model_forward.3
$region0: #{model_forward.3}
  #allocation0 [shape = 'u32[]', space=smem, size = 0x4, offset = 0x4, fixed_abs, tag = 'smem constant byte address 0x4 - core index']
  #allocation1 [shape = 'u32[144,128]{1,0:T(1,128)}', space=vmem, size = 0x12000, scoped, tag = 'internal scratch']
  %s0 = inlined_call_operand.vmem [shape: f32[16,128], index: 0, kind: input, shape index: {}]
  %s1 = inlined_call_operand.vmem [shape: f32[1,128], index: 1, kind: input, shape index: {}]
  %s2 = inlined_call_operand.hbm [shape: f32[1,128], index: 2, kind: input, shape index: {}]
  %s3 = inlined_call_operand.hbm [shape: bf16[128,384], index: 3, kind: input, shape index: {}]
  %s4 = inlined_call_operand.hbm [shape: bf16[128,128], index: 4, kind: input, shape index: {}]
  %s5 = inlined_call_operand.vmem [shape: bf16[128,512], index: 5, kind: input, shape index: {}]
  %s6 = inlined_call_operand.hbm [shape: bf16[256,128], index: 6, kind: input, shape index: {}]
  %s7 = inlined_call_operand.vmem [shape: bf16[8,128], index: 7, kind: input, shape index: {}]
  %s8 = inlined_call_operand.vmem [shape: f32[16,128], index: 8, kind: output, shape index: {}]
  %s9 = sld [smem:[#allocation0]]
  $region58: #{model_forward.3} parent=0
    _
  %s11 = ssub.s32 1, %s9
  %s12 = scalar_select 0, %s11, %s9
  $region1: #{model_forward.3} parent=0
    #allocation2 [shape = 'u8[512]{0}', space=vmem, size = 0x400, scoped, tag = 'input window, operand 2, single buffered']
    #allocation3 [shape = 's32[1]{0}', space=sflag, size = 0x4, scoped, tag = 'scoped memory for model_forward.3']
    #allocation4 [shape = 'u8[98304]{0}', space=vmem, size = 0x18000, scoped, tag = 'input window, operand 3, single buffered']
    #allocation5 [shape = 's32[1]{0}', space=sflag, size = 0x4, scoped, tag = 'scoped memory for model_forward.3']
    #allocation6 [shape = 'u8[32768]{0}', space=vmem, size = 0x8000, scoped, tag = 'input window, operand 4, single buffered']
    #allocation7 [shape = 'u8[65536]{0}', space=vmem, size = 0x10000, scoped, tag = 'input window, operand 6, single buffered']
    #allocation8 [shape = 's32[1]{0}', space=sflag, size = 0x4, scoped, tag = 'scoped memory for model_forward.3']
    %13 = vsyncpa [#allocation3], 0
    %14 = vsyncpa [#allocation5], 0
    %15 = vsyncpa [#allocation8], 0
    // Predicated region
    $region2: #{model_forward.3} parent=1 // pred_check
      _
    $region3: #{model_forward.3} parent=1 // pred_check_branch
      %17 = sbr.rel (0) target = $region5
    $region4: #{model_forward.3} parent=1 // pred_region
      _
    $region5: #{model_forward.3} parent=1 // pred_fallthru
      _
    // Predicated region
    $region6: #{model_forward.3} parent=1 // pred_check
      _
    $region7: #{model_forward.3} parent=1 // pred_check_branch
      %19 = sbr.rel (0) target = $region9
    $region8: #{model_forward.3} parent=1 // pred_region
      _
    $region9: #{model_forward.3} parent=1 // pred_fallthru
      _
    // Predicated region
    $region10: #{model_forward.3} parent=1 // pred_check
      _
    $region11: #{model_forward.3} parent=1 // pred_check_branch
      %21 = sbr.rel (0) target = $region13
    $region12: #{model_forward.3} parent=1 // pred_region
      %s23 = ssub.s32 16, 16
      %24 = vsyncadd [#allocation3], %s23
      %s26 = sshll.u32 [#allocation2], 4
      %s27 = int_to_ptr.vmem [resolvable:$true] %s26
      %29 = dma.hbm_to_vmem [thread:$0]  %s2, 16, %s27, [#allocation3]
    $region13: #{model_forward.3} parent=1 // pred_fallthru
      _
    // Predicated region
    $region14: #{model_forward.3} parent=1 // pred_check
      _
    $region15: #{model_forward.3} parent=1 // pred_check_branch
      %31 = sbr.rel (0) target = $region17
    $region16: #{model_forward.3} parent=1 // pred_region
      %s33 = ssub.s32 3072, 3072
      %34 = vsyncadd [#allocation5], %s33
      %s35 = sshll.u32 [#allocation4], 4
      %s36 = int_to_ptr.vmem [resolvable:$true] %s35
      %41 = dma.hbm_to_vmem [thread:$0]  %s3, 3072, %s36, [#allocation5], 192, 192, 12
    $region17: #{model_forward.3} parent=1 // pred_fallthru
      _
    // Predicated region
    $region18: #{model_forward.3} parent=1 // pred_check
      _
    $region19: #{model_forward.3} parent=1 // pred_check_branch
      %43 = sbr.rel (0) target = $region21
    $region20: #{model_forward.3} parent=1 // pred_region
      %s45 = ssub.s32 1024, 1024
      %46 = vsyncadd [#allocation5], %s45
      %s47 = sshll.u32 [#allocation6], 4
      %s48 = int_to_ptr.vmem [resolvable:$true] %s47
      %53 = dma.hbm_to_vmem [thread:$0]  %s4, 1024, %s48, [#allocation5], 64, 64, 4
    $region21: #{model_forward.3} parent=1 // pred_fallthru
      _
    // Predicated region
    $region22: #{model_forward.3} parent=1 // pred_check
      _
    $region23: #{model_forward.3} parent=1 // pred_check_branch
      %55 = sbr.rel (0) target = $region25
    $region24: #{model_forward.3} parent=1 // pred_region
      _
    $region25: #{model_forward.3} parent=1 // pred_fallthru
      _
    // Predicated region
    $region26: #{model_forward.3} parent=1 // pred_check
      _
    $region27: #{model_forward.3} parent=1 // pred_check_branch
      %57 = sbr.rel (0) target = $region29
    $region28: #{model_forward.3} parent=1 // pred_region
      %s59 = ssub.s32 2048, 2048
      %60 = vsyncadd [#allocation8], %s59
      %s61 = sshll.u32 [#allocation7], 4
      %s62 = int_to_ptr.vmem [resolvable:$true] %s61
      %67 = dma.hbm_to_vmem [thread:$0]  %s6, 2048, %s62, [#allocation8], 64, 64, 4
    $region29: #{model_forward.3} parent=1 // pred_fallthru
      _
    // Predicated region
    $region30: #{model_forward.3} parent=1 // pred_check
      _
    $region31: #{model_forward.3} parent=1 // pred_check_branch
      %69 = sbr.rel (0) target = $region33
    $region32: #{model_forward.3} parent=1 // pred_region
      _
    $region33: #{model_forward.3} parent=1 // pred_fallthru
      _
    // Predicated region
    $region34: #{model_forward.3} parent=1 // pred_check
      _
    $region35: #{model_forward.3} parent=1 // pred_check_branch
      %71 = sbr.rel (0) target = $region37
    $region36: #{model_forward.3} parent=1 // pred_region
      %72 = dma.done [#allocation3], 16
    $region37: #{model_forward.3} parent=1 // pred_fallthru
      _
    // Predicated region
    $region38: #{model_forward.3} parent=1 // pred_check
      _
    $region39: #{model_forward.3} parent=1 // pred_check_branch
      %74 = sbr.rel (0) target = $region41
    $region40: #{model_forward.3} parent=1 // pred_region
      %75 = dma.done [#allocation5], 3072
    $region41: #{model_forward.3} parent=1 // pred_fallthru
      _
    // Predicated region
    $region42: #{model_forward.3} parent=1 // pred_check
      _
    $region43: #{model_forward.3} parent=1 // pred_check_branch
      %77 = sbr.rel (0) target = $region45
    $region44: #{model_forward.3} parent=1 // pred_region
      %78 = dma.done [#allocation5], 1024
    $region45: #{model_forward.3} parent=1 // pred_fallthru
      _
    // Predicated region
    $region46: #{model_forward.3} parent=1 // pred_check
      _
    $region47: #{model_forward.3} parent=1 // pred_check_branch
      %80 = sbr.rel (0) target = $region49
    $region48: #{model_forward.3} parent=1 // pred_region
      %81 = dma.done [#allocation8], 2048
    $region49: #{model_forward.3} parent=1 // pred_fallthru
      _
    %v83 = vld [vmem:[%s0] sm:$0xff]
    %v84 = vld [vmem:[%s0 + $0x8] sm:$0xff]
    %v85 = vld [vmem:[%s1] sm:$0x1]
    %v86 = vmul.f32 %v83, %v83
    %v87 = vmul.f32 %v84, %v84
    %88 = vadd.xlane.f32.xlu0 %v86
    %v89 = vpop.xlane.xlu0 %88
    %90 = vadd.xlane.f32.xlu0 %v87
    %v91 = vpop.xlane.xlu0 %90
    %v92 = vrcp.pop 128.0
    %v93 = vmul.f32 %v89, %v92
    %v94 = vmul.f32 %v91, %v92
    %v95 = vadd.f32 %v93, 1e-06
    %v96 = vadd.f32 %v94, 1e-06
    %v97 = vrsqrt.pop %v95
    %v98 = vrsqrt.pop %v96
    %v99 = vmul.f32 %v83, %v97
    %v100 = vmul.f32 %v84, %v98
    %v102 = vlaneseq
    %v103 = vshrl.u32 %v102, 7
    %v104 = vsub.s32 0, %v103
    %v105 = vrot.slane %v85, %v104
    %v107 = vmul.f32 %v99, %v105
    %v108 = vmul.f32 %v100, %v105
    %v109 = vpack.c.bf16 %v108, %v107
    %v110 = vld [vmem:[#allocation4] sm:$0xff]
    %v111 = vld [vmem:[#allocation4 + $0x8] sm:$0xf]
    %v112 = vld [vmem:[#allocation4 + $0xc] sm:$0xff]
    %v113 = vld [vmem:[#allocation4 + $0x14] sm:$0xf]
    %v114 = vld [vmem:[#allocation4 + $0x18] sm:$0xff]
    %v115 = vld [vmem:[#allocation4 + $0x20] sm:$0xf]
    %v116 = vld [vmem:[#allocation4 + $0x24] sm:$0xff]
    %v117 = vld [vmem:[#allocation4 + $0x2c] sm:$0xf]
    %v118 = vld [vmem:[#allocation4 + $0x30] sm:$0xff]
    %v119 = vld [vmem:[#allocation4 + $0x38] sm:$0xf]
    %v120 = vld [vmem:[#allocation4 + $0x3c] sm:$0xff]
    %v121 = vld [vmem:[#allocation4 + $0x44] sm:$0xf]
    %v122 = vld [vmem:[#allocation4 + $0x48] sm:$0xff]
    %v123 = vld [vmem:[#allocation4 + $0x50] sm:$0xf]
    %v124 = vld [vmem:[#allocation4 + $0x54] sm:$0xff]
    %v125 = vld [vmem:[#allocation4 + $0x5c] sm:$0xf]
    %v126 = vld [vmem:[#allocation4 + $0x60] sm:$0xff]
    %v127 = vld [vmem:[#allocation4 + $0x68] sm:$0xf]
    %v128 = vld [vmem:[#allocation4 + $0x6c] sm:$0xff]
    %v129 = vld [vmem:[#allocation4 + $0x74] sm:$0xf]
    %v130 = vld [vmem:[#allocation4 + $0x78] sm:$0xff]
    %v131 = vld [vmem:[#allocation4 + $0x80] sm:$0xf]
    %v132 = vld [vmem:[#allocation4 + $0x84] sm:$0xff]
    %v133 = vld [vmem:[#allocation4 + $0x8c] sm:$0xf]
    %v134 = vld [vmem:[#allocation4 + $0x90] sm:$0xff]
    %v135 = vld [vmem:[#allocation4 + $0x98] sm:$0xf]
    %v136 = vld [vmem:[#allocation4 + $0x9c] sm:$0xff]
    %v137 = vld [vmem:[#allocation4 + $0xa4] sm:$0xf]
    %v138 = vld [vmem:[#allocation4 + $0xa8] sm:$0xff]
    %v139 = vld [vmem:[#allocation4 + $0xb0] sm:$0xf]
    %v140 = vld [vmem:[#allocation4 + $0xb4] sm:$0xff]
    %v141 = vld [vmem:[#allocation4 + $0xbc] sm:$0xf]
    %v174 = vunpack.c.l.b16 %v110
    %v175 = vunpack.c.h.b16 %v110
    %v176 = vunpack.c.l.b16 %v111
    %v177 = vunpack.c.l.b16 %v112
    %v178 = vunpack.c.h.b16 %v112
    %v179 = vunpack.c.l.b16 %v113
    %v180 = vunpack.c.l.b16 %v114
    %v181 = vunpack.c.h.b16 %v114
    %v182 = vunpack.c.l.b16 %v115
    %v183 = vunpack.c.l.b16 %v116
    %v184 = vunpack.c.h.b16 %v116
    %v185 = vunpack.c.l.b16 %v117
    %v186 = vunpack.c.l.b16 %v118
    %v187 = vunpack.c.h.b16 %v118
    %v188 = vunpack.c.l.b16 %v119
    %v189 = vunpack.c.l.b16 %v120
    %v190 = vunpack.c.h.b16 %v120
    %v191 = vunpack.c.l.b16 %v121
    %v192 = vunpack.c.l.b16 %v122
    %v193 = vunpack.c.h.b16 %v122
    %v194 = vunpack.c.l.b16 %v123
    %v195 = vunpack.c.l.b16 %v124
    %v196 = vunpack.c.h.b16 %v124
    %v197 = vunpack.c.l.b16 %v125
    %v198 = vunpack.c.l.b16 %v126
    %v199 = vunpack.c.h.b16 %v126
    %v200 = vunpack.c.l.b16 %v127
    %v201 = vunpack.c.l.b16 %v128
    %v202 = vunpack.c.h.b16 %v128
    %v203 = vunpack.c.l.b16 %v129
    %v204 = vunpack.c.l.b16 %v130
    %v205 = vunpack.c.h.b16 %v130
    %v206 = vunpack.c.l.b16 %v131
    %v207 = vunpack.c.l.b16 %v132
    %v208 = vunpack.c.h.b16 %v132
    %v209 = vunpack.c.l.b16 %v133
    %v210 = vunpack.c.l.b16 %v134
    %v211 = vunpack.c.h.b16 %v134
    %v212 = vunpack.c.l.b16 %v135
    %v213 = vunpack.c.l.b16 %v136
    %v214 = vunpack.c.h.b16 %v136
    %v215 = vunpack.c.l.b16 %v137
    %v216 = vunpack.c.l.b16 %v138
    %v217 = vunpack.c.h.b16 %v138
    %v218 = vunpack.c.l.b16 %v139
    %v219 = vunpack.c.l.b16 %v140
    %v220 = vunpack.c.h.b16 %v140
    %v221 = vunpack.c.l.b16 %v141
    %v222 = vpack.c.b16 %v177, %v174
    %v223 = vpack.c.b16 %v178, %v175
    %v224 = vpack.c.b16 %v179, %v176
    %v225 = vpack.c.b16 %v183, %v180
    %v226 = vpack.c.b16 %v184, %v181
    %v227 = vpack.c.b16 %v185, %v182
    %v228 = vpack.c.b16 %v189, %v186
    %v229 = vpack.c.b16 %v190, %v187
    %v230 = vpack.c.b16 %v191, %v188
    %v231 = vpack.c.b16 %v195, %v192
    %v232 = vpack.c.b16 %v196, %v193
    %v233 = vpack.c.b16 %v197, %v194
    %v234 = vpack.c.b16 %v201, %v198
    %v235 = vpack.c.b16 %v202, %v199
    %v236 = vpack.c.b16 %v203, %v200
    %v237 = vpack.c.b16 %v207, %v204
    %v238 = vpack.c.b16 %v208, %v205
    %v239 = vpack.c.b16 %v209, %v206
    %v240 = vpack.c.b16 %v213, %v210
    %v241 = vpack.c.b16 %v214, %v211
    %v242 = vpack.c.b16 %v215, %v212
    %v243 = vpack.c.b16 %v219, %v216
    %v244 = vpack.c.b16 %v220, %v217
    %v245 = vpack.c.b16 %v221, %v218
    %270 = vmatprep.subr.bf16.mxu0 %v223
    %271 = vmatpush1.bf16.msra.mxu0 %v222
    %272 = vmatprep.subr.bf16.mxu0 %v226
    %273 = vmatpush1.bf16.msra.mxu0 %v225
    %274 = vmatprep.subr.bf16.mxu0 %v229
    %275 = vmatpush1.bf16.msra.mxu0 %v228
    %276 = vmatprep.subr.bf16.mxu0 %v232
    %277 = vmatpush1.bf16.msra.mxu0 %v231
    %278 = vmatprep.subr.bf16.mxu0 %v235
    %279 = vmatpush1.bf16.msra.mxu0 %v234
    %280 = vmatprep.subr.bf16.mxu0 %v238
    %281 = vmatpush1.bf16.msra.mxu0 %v237
    %282 = vmatprep.subr.bf16.mxu0 %v241
    %283 = vmatpush1.bf16.msra.mxu0 %v240
    %284 = vmatprep.subr.bf16.mxu0 %v244
    %285 = vmatpush1.bf16.msra.mxu0 %v243
    %286 = vmatprep.subr.bf16.mxu0 0
    %287 = vmatpush1.bf16.msra.mxu0 0
    %288 = vmatprep.subr.bf16.mxu0 0
    %289 = vmatpush1.bf16.msra.mxu0 0
    %290 = vmatprep.subr.bf16.mxu0 0
    %291 = vmatpush1.bf16.msra.mxu0 0
    %292 = vmatprep.subr.bf16.mxu0 0
    %293 = vmatpush1.bf16.msra.mxu0 0
    %294 = vmatprep.subr.bf16.mxu0 0
    %295 = vmatpush1.bf16.msra.mxu0 0
    %296 = vmatprep.subr.bf16.mxu0 0
    %297 = vmatpush1.bf16.msra.mxu0 0
    %298 = vmatprep.subr.bf16.mxu0 0
    %299 = vmatpush1.bf16.msra.mxu0 0
    %300 = vmatprep.subr.bf16.mxu0 0
    %301 = vmatpush1.bf16.msra.mxu0 0
    %302 = vmatprep.mubr.bf16.mxu0 0
    %303 = vmatmul.mubr.bf16.gmra.mrb[0].mxu0 %v109
    %v304 = vpop.f32.mrb[0].mxu0
    %v305 = vadd.f32 0.0, %v304
    %v306 = vpop.f32.mrb[0].mxu0
    %v307 = vadd.f32 0.0, %v306
    %v308 = vpop.f32.mrb[0].mxu0
    %v309 = vadd.f32 0.0, %v308
    %v310 = vpop.f32.mrb[0].mxu0
    %v311 = vadd.f32 0.0, %v310
    %312 = vdwg.mxu0
    %313 = vmatprep.subr.bf16.mxu0 0
    %314 = vmatpush1.bf16.msra.mxu0 %v224
    %315 = vmatprep.subr.bf16.mxu0 0
    %316 = vmatpush1.bf16.msra.mxu0 %v227
    %317 = vmatprep.subr.bf16.mxu0 0
    %318 = vmatpush1.bf16.msra.mxu0 %v230
    %319 = vmatprep.subr.bf16.mxu0 0
    %320 = vmatpush1.bf16.msra.mxu0 %v233
    %321 = vmatprep.subr.bf16.mxu0 0
    %322 = vmatpush1.bf16.msra.mxu0 %v236
    %323 = vmatprep.subr.bf16.mxu0 0
    %324 = vmatpush1.bf16.msra.mxu0 %v239
    %325 = vmatprep.subr.bf16.mxu0 0
    %326 = vmatpush1.bf16.msra.mxu0 %v242
    %327 = vmatprep.subr.bf16.mxu0 0
    %328 = vmatpush1.bf16.msra.mxu0 %v245
    %329 = vmatprep.subr.bf16.mxu0 0
    %330 = vmatpush1.bf16.msra.mxu0 0
    %331 = vmatprep.subr.bf16.mxu0 0
    %332 = vmatpush1.bf16.msra.mxu0 0
    %333 = vmatprep.subr.bf16.mxu0 0
    %334 = vmatpush1.bf16.msra.mxu0 0
    %335 = vmatprep.subr.bf16.mxu0 0
    %336 = vmatpush1.bf16.msra.mxu0 0
    %337 = vmatprep.subr.bf16.mxu0 0
    %338 = vmatpush1.bf16.msra.mxu0 0
    %339 = vmatprep.subr.bf16.mxu0 0
    %340 = vmatpush1.bf16.msra.mxu0 0
    %341 = vmatprep.subr.bf16.mxu0 0
    %342 = vmatpush1.bf16.msra.mxu0 0
    %343 = vmatprep.subr.bf16.mxu0 0
    %344 = vmatpush1.bf16.msra.mxu0 0
    %345 = vmatprep.mubr.bf16.mxu0 0
    %346 = vmatmul.mubr.bf16.gmra.mrb[0].mxu0 %v109
    %v347 = vpop.f32.mrb[0].mxu0
    %v348 = vadd.f32 0.0, %v347
    %v349 = vpop.f32.mrb[0].mxu0
    %v350 = vpop.f32.mrb[0].mxu0
    %v351 = vadd.f32 0.0, %v350
    %v352 = vpop.f32.mrb[0].mxu0
    %353 = vdwg.mxu0
    %v354 = vld [vmem:[%s7] sm:$0xf]
    %355 = vmatprep.subr.bf16.mxu0 %v224
    %356 = vmatpush1.bf16.msra.mxu0 %v223
    %357 = vmatprep.subr.bf16.mxu0 %v227
    %358 = vmatpush1.bf16.msra.mxu0 %v226
    %359 = vmatprep.subr.bf16.mxu0 %v230
    %360 = vmatpush1.bf16.msra.mxu0 %v229
    %361 = vmatprep.subr.bf16.mxu0 %v233
    %362 = vmatpush1.bf16.msra.mxu0 %v232
    %363 = vmatprep.subr.bf16.mxu0 %v236
    %364 = vmatpush1.bf16.msra.mxu0 %v235
    %365 = vmatprep.subr.bf16.mxu0 %v239
    %366 = vmatpush1.bf16.msra.mxu0 %v238
    %367 = vmatprep.subr.bf16.mxu0 %v242
    %368 = vmatpush1.bf16.msra.mxu0 %v241
    %369 = vmatprep.subr.bf16.mxu0 %v245
    %370 = vmatpush1.bf16.msra.mxu0 %v244
    %371 = vmatprep.subr.bf16.mxu0 0
    %372 = vmatpush1.bf16.msra.mxu0 0
    %373 = vmatprep.subr.bf16.mxu0 0
    %374 = vmatpush1.bf16.msra.mxu0 0
    %375 = vmatprep.subr.bf16.mxu0 0
    %376 = vmatpush1.bf16.msra.mxu0 0
    %377 = vmatprep.subr.bf16.mxu0 0
    %378 = vmatpush1.bf16.msra.mxu0 0
    %379 = vmatprep.subr.bf16.mxu0 0
    %380 = vmatpush1.bf16.msra.mxu0 0
    %381 = vmatprep.subr.bf16.mxu0 0
    %382 = vmatpush1.bf16.msra.mxu0 0
    %383 = vmatprep.subr.bf16.mxu0 0
    %384 = vmatpush1.bf16.msra.mxu0 0
    %385 = vmatprep.subr.bf16.mxu0 0
    %386 = vmatpush1.bf16.msra.mxu0 0
    %387 = vmatprep.mubr.bf16.mxu0 0
    %388 = vmatmul.mubr.bf16.gmra.mrb[0].mxu0 %v354
    %v389 = vpop.f32.mrb[0].mxu0
    %v390 = vadd.f32 0.0, %v389
    %v391 = vpop.f32.mrb[0].mxu0
    %v392 = vadd.f32 0.0, %v391
    %v393 = vpop.f32.mrb[0].mxu0
    %v394 = vpop.f32.mrb[0].mxu0
    %395 = vdwg.mxu0
    %v396 = vlaneseq
    %v397 = vshrl.u32 %v396, 7
    %v398 = vadd.s32 %v397, 8
    %v399 = vlaneseq
    %v400 = vand.u32 %v399, 127
    %vm401 = vcmp.le.s32.totalorder %v400, %v398
    %v402 = vpack.c.bf16 %v305, %v305
    %v403 = vpack.c.bf16 %v307, %v390
    %v404 = vpack.c.bf16 %v348, %v392
    %vm405 = vcmask 261120
    %v407 = vsel %vm405, %v402, 0
    %v410 = vsel %vm405, %v403, 0
    %412 = vmatprep.subr.bf16.mxu0 0
    %413 = vmatpush1.bf16.xpose.msra.mxu0 %v410
    %414 = vmatprep.subr.bf16.mxu0 0
    %415 = vmatpush1.bf16.xpose.msra.mxu0 0
    %416 = vmatprep.subr.bf16.mxu0 0
    %417 = vmatpush1.bf16.xpose.msra.mxu0 0
    %418 = vmatprep.subr.bf16.mxu0 0
    %419 = vmatpush1.bf16.xpose.msra.mxu0 0
    %420 = vmatprep.subr.bf16.mxu0 0
    %421 = vmatpush1.bf16.xpose.msra.mxu0 0
    %422 = vmatprep.subr.bf16.mxu0 0
    %423 = vmatpush1.bf16.xpose.msra.mxu0 0
    %424 = vmatprep.subr.bf16.mxu0 0
    %425 = vmatpush1.bf16.xpose.msra.mxu0 0
    %426 = vmatprep.subr.bf16.mxu0 0
    %427 = vmatpush1.bf16.xpose.msra.mxu0 0
    %428 = vmatprep.subr.bf16.mxu0 0
    %429 = vmatpush1.bf16.xpose.msra.mxu0 0
    %430 = vmatprep.subr.bf16.mxu0 0
    %431 = vmatpush1.bf16.xpose.msra.mxu0 0
    %432 = vmatprep.subr.bf16.mxu0 0
    %433 = vmatpush1.bf16.xpose.msra.mxu0 0
    %434 = vmatprep.subr.bf16.mxu0 0
    %435 = vmatpush1.bf16.xpose.msra.mxu0 0
    %436 = vmatprep.subr.bf16.mxu0 0
    %437 = vmatpush1.bf16.xpose.msra.mxu0 0
    %438 = vmatprep.subr.bf16.mxu0 0
    %439 = vmatpush1.bf16.xpose.msra.mxu0 0
    %440 = vmatprep.subr.bf16.mxu0 0
    %441 = vmatpush1.bf16.xpose.msra.mxu0 0
    %442 = vmatprep.subr.bf16.mxu0 0
    %443 = vmatpush1.bf16.xpose.msra.mxu0 0
    %444 = vmatprep.mubr.bf16.mxu0 0
    %445 = vmatmul.mubr.bf16.gmra.mrb[0].mxu0 %v407
    %v446 = vpop.f32.mrb[0].mxu0
    %v447 = vadd.f32 0.0, %v446
    %v448 = vpop.f32.mrb[0].mxu0
    %v449 = vpop.f32.mrb[0].mxu0
    %v450 = vpop.f32.mrb[0].mxu0
    %451 = vdwg.mxu0
    %v452 = vsel %vm401, %v447, -1e+30
    %vm453 = vcmask 130048
    %v454 = vsel %vm453, %v452, -inf
    %455 = vmax.xlane.f32.xlu0 %v454
    %v456 = vpop.xlane.xlu0 %455
    %v457 = vsub.f32 %v452, %v456
    %v458 = vmul.f32 %v457, 1.442695
    %v459 = vpow.pop %v458
    %v460 = vsel %vm453, %v459, 0.0
    %461 = vadd.xlane.f32.xlu0 %v460
    %v462 = vpop.xlane.xlu0 %461
    %v463 = vpack.c.bf16 %v459, %v459
    %v465 = vsel %vm453, %v463, 0
    %467 = vmatprep.subr.bf16.mxu0 0
    %468 = vmatpush1.bf16.msra.mxu0 %v404
    %469 = vmatprep.subr.bf16.mxu0 0
    %470 = vmatpush1.bf16.msra.mxu0 0
    %471 = vmatprep.subr.bf16.mxu0 0
    %472 = vmatpush1.bf16.msra.mxu0 0
    %473 = vmatprep.subr.bf16.mxu0 0
    %474 = vmatpush1.bf16.msra.mxu0 0
    %475 = vmatprep.subr.bf16.mxu0 0
    %476 = vmatpush1.bf16.msra.mxu0 0
    %477 = vmatprep.subr.bf16.mxu0 0
    %478 = vmatpush1.bf16.msra.mxu0 0
    %479 = vmatprep.subr.bf16.mxu0 0
    %480 = vmatpush1.bf16.msra.mxu0 0
    %481 = vmatprep.subr.bf16.mxu0 0
    %482 = vmatpush1.bf16.msra.mxu0 0
    %483 = vmatprep.subr.bf16.mxu0 0
    %484 = vmatpush1.bf16.msra.mxu0 0
    %485 = vmatprep.subr.bf16.mxu0 0
    %486 = vmatpush1.bf16.msra.mxu0 0
    %487 = vmatprep.subr.bf16.mxu0 0
    %488 = vmatpush1.bf16.msra.mxu0 0
    %489 = vmatprep.subr.bf16.mxu0 0
    %490 = vmatpush1.bf16.msra.mxu0 0
    %491 = vmatprep.subr.bf16.mxu0 0
    %492 = vmatpush1.bf16.msra.mxu0 0
    %493 = vmatprep.subr.bf16.mxu0 0
    %494 = vmatpush1.bf16.msra.mxu0 0
    %495 = vmatprep.subr.bf16.mxu0 0
    %496 = vmatpush1.bf16.msra.mxu0 0
    %497 = vmatprep.subr.bf16.mxu0 0
    %498 = vmatpush1.bf16.msra.mxu0 0
    %499 = vmatprep.mubr.bf16.mxu0 0
    %500 = vmatmul.mubr.bf16.gmra.mrb[0].mxu0 %v465
    %v501 = vpop.f32.mrb[0].mxu0
    %v502 = vadd.f32 0.0, %v501
    %v503 = vpop.f32.mrb[0].mxu0
    %v504 = vpop.f32.mrb[0].mxu0
    %v505 = vpop.f32.mrb[0].mxu0
    %506 = vdwg.mxu0
    %v507 = vrcp.pop %v462
    %v508 = vmul.f32 %v502, %v507
    %510 = vrot.lane.b32.xlu0 %v402, 96
    %v511 = vpop.permute.xlu0 %510
    %513 = vrot.lane.b32.xlu0 %v403, 96
    %v514 = vpop.permute.xlu0 %513
    %v516 = vsel %vm405, %v511, 0
    %v519 = vsel %vm405, %v514, 0
    %521 = vmatprep.subr.bf16.mxu0 0
    %522 = vmatpush1.bf16.xpose.msra.mxu0 %v519
    %523 = vmatprep.subr.bf16.mxu0 0
    %524 = vmatpush1.bf16.xpose.msra.mxu0 0
    %525 = vmatprep.subr.bf16.mxu0 0
    %526 = vmatpush1.bf16.xpose.msra.mxu0 0
    %527 = vmatprep.subr.bf16.mxu0 0
    %528 = vmatpush1.bf16.xpose.msra.mxu0 0
    %529 = vmatprep.subr.bf16.mxu0 0
    %530 = vmatpush1.bf16.xpose.msra.mxu0 0
    %531 = vmatprep.subr.bf16.mxu0 0
    %532 = vmatpush1.bf16.xpose.msra.mxu0 0
    %533 = vmatprep.subr.bf16.mxu0 0
    %534 = vmatpush1.bf16.xpose.msra.mxu0 0
    %535 = vmatprep.subr.bf16.mxu0 0
    %536 = vmatpush1.bf16.xpose.msra.mxu0 0
    %537 = vmatprep.subr.bf16.mxu0 0
    %538 = vmatpush1.bf16.xpose.msra.mxu0 0
    %539 = vmatprep.subr.bf16.mxu0 0
    %540 = vmatpush1.bf16.xpose.msra.mxu0 0
    %541 = vmatprep.subr.bf16.mxu0 0
    %542 = vmatpush1.bf16.xpose.msra.mxu0 0
    %543 = vmatprep.subr.bf16.mxu0 0
    %544 = vmatpush1.bf16.xpose.msra.mxu0 0
    %545 = vmatprep.subr.bf16.mxu0 0
    %546 = vmatpush1.bf16.xpose.msra.mxu0 0
    %547 = vmatprep.subr.bf16.mxu0 0
    %548 = vmatpush1.bf16.xpose.msra.mxu0 0
    %549 = vmatprep.subr.bf16.mxu0 0
    %550 = vmatpush1.bf16.xpose.msra.mxu0 0
    %551 = vmatprep.subr.bf16.mxu0 0
    %552 = vmatpush1.bf16.xpose.msra.mxu0 0
    %553 = vmatprep.mubr.bf16.mxu0 0
    %554 = vmatmul.mubr.bf16.gmra.mrb[0].mxu0 %v516
    %v555 = vpop.f32.mrb[0].mxu0
    %v556 = vadd.f32 0.0, %v555
    %v557 = vpop.f32.mrb[0].mxu0
    %v558 = vpop.f32.mrb[0].mxu0
    %v559 = vpop.f32.mrb[0].mxu0
    %560 = vdwg.mxu0
    %v561 = vsel %vm401, %v556, -1e+30
    %v562 = vsel %vm453, %v561, -inf
    %563 = vmax.xlane.f32.xlu0 %v562
    %v564 = vpop.xlane.xlu0 %563
    %v565 = vsub.f32 %v561, %v564
    %v566 = vmul.f32 %v565, 1.442695
    %v567 = vpow.pop %v566
    %v568 = vsel %vm453, %v567, 0.0
    %569 = vadd.xlane.f32.xlu0 %v568
    %v570 = vpop.xlane.xlu0 %569
    %v571 = vpack.c.bf16 %v567, %v567
    %573 = vrot.lane.b32.xlu0 %v404, 96
    %v574 = vpop.permute.xlu0 %573
    %v577 = vsel %vm453, %v571, 0
    %579 = vmatprep.subr.bf16.mxu0 0
    %580 = vmatpush1.bf16.msra.mxu0 %v574
    %581 = vmatprep.subr.bf16.mxu0 0
    %582 = vmatpush1.bf16.msra.mxu0 0
    %583 = vmatprep.subr.bf16.mxu0 0
    %584 = vmatpush1.bf16.msra.mxu0 0
    %585 = vmatprep.subr.bf16.mxu0 0
    %586 = vmatpush1.bf16.msra.mxu0 0
    %587 = vmatprep.subr.bf16.mxu0 0
    %588 = vmatpush1.bf16.msra.mxu0 0
    %589 = vmatprep.subr.bf16.mxu0 0
    %590 = vmatpush1.bf16.msra.mxu0 0
    %591 = vmatprep.subr.bf16.mxu0 0
    %592 = vmatpush1.bf16.msra.mxu0 0
    %593 = vmatprep.subr.bf16.mxu0 0
    %594 = vmatpush1.bf16.msra.mxu0 0
    %595 = vmatprep.subr.bf16.mxu0 0
    %596 = vmatpush1.bf16.msra.mxu0 0
    %597 = vmatprep.subr.bf16.mxu0 0
    %598 = vmatpush1.bf16.msra.mxu0 0
    %599 = vmatprep.subr.bf16.mxu0 0
    %600 = vmatpush1.bf16.msra.mxu0 0
    %601 = vmatprep.subr.bf16.mxu0 0
    %602 = vmatpush1.bf16.msra.mxu0 0
    %603 = vmatprep.subr.bf16.mxu0 0
    %604 = vmatpush1.bf16.msra.mxu0 0
    %605 = vmatprep.subr.bf16.mxu0 0
    %606 = vmatpush1.bf16.msra.mxu0 0
    %607 = vmatprep.subr.bf16.mxu0 0
    %608 = vmatpush1.bf16.msra.mxu0 0
    %609 = vmatprep.subr.bf16.mxu0 0
    %610 = vmatpush1.bf16.msra.mxu0 0
    %611 = vmatprep.mubr.bf16.mxu0 0
    %612 = vmatmul.mubr.bf16.gmra.mrb[0].mxu0 %v577
    %v613 = vpop.f32.mrb[0].mxu0
    %v614 = vadd.f32 0.0, %v613
    %v615 = vpop.f32.mrb[0].mxu0
    %v616 = vpop.f32.mrb[0].mxu0
    %v617 = vpop.f32.mrb[0].mxu0
    %618 = vdwg.mxu0
    %v619 = vrcp.pop %v570
    %v620 = vmul.f32 %v614, %v619
    %621 = vrot.lane.b32.xlu0 %v402, 64
    %v622 = vpop.permute.xlu0 %621
    %623 = vrot.lane.b32.xlu0 %v403, 64
    %v624 = vpop.permute.xlu0 %623
    %v626 = vsel %vm405, %v622, 0
    %v629 = vsel %vm405, %v624, 0
    %631 = vmatprep.subr.bf16.mxu0 0
    %632 = vmatpush1.bf16.xpose.msra.mxu0 %v629
    %633 = vmatprep.subr.bf16.mxu0 0
    %634 = vmatpush1.bf16.xpose.msra.mxu0 0
    %635 = vmatprep.subr.bf16.mxu0 0
    %636 = vmatpush1.bf16.xpose.msra.mxu0 0
    %637 = vmatprep.subr.bf16.mxu0 0
    %638 = vmatpush1.bf16.xpose.msra.mxu0 0
    %639 = vmatprep.subr.bf16.mxu0 0
    %640 = vmatpush1.bf16.xpose.msra.mxu0 0
    %641 = vmatprep.subr.bf16.mxu0 0
    %642 = vmatpush1.bf16.xpose.msra.mxu0 0
    %643 = vmatprep.subr.bf16.mxu0 0
    %644 = vmatpush1.bf16.xpose.msra.mxu0 0
    %645 = vmatprep.subr.bf16.mxu0 0
    %646 = vmatpush1.bf16.xpose.msra.mxu0 0
    %647 = vmatprep.subr.bf16.mxu0 0
    %648 = vmatpush1.bf16.xpose.msra.mxu0 0
    %649 = vmatprep.subr.bf16.mxu0 0
    %650 = vmatpush1.bf16.xpose.msra.mxu0 0
    %651 = vmatprep.subr.bf16.mxu0 0
    %652 = vmatpush1.bf16.xpose.msra.mxu0 0
    %653 = vmatprep.subr.bf16.mxu0 0
    %654 = vmatpush1.bf16.xpose.msra.mxu0 0
    %655 = vmatprep.subr.bf16.mxu0 0
    %656 = vmatpush1.bf16.xpose.msra.mxu0 0
    %657 = vmatprep.subr.bf16.mxu0 0
    %658 = vmatpush1.bf16.xpose.msra.mxu0 0
    %659 = vmatprep.subr.bf16.mxu0 0
    %660 = vmatpush1.bf16.xpose.msra.mxu0 0
    %661 = vmatprep.subr.bf16.mxu0 0
    %662 = vmatpush1.bf16.xpose.msra.mxu0 0
    %663 = vmatprep.mubr.bf16.mxu0 0
    %664 = vmatmul.mubr.bf16.gmra.mrb[0].mxu0 %v626
    %v665 = vpop.f32.mrb[0].mxu0
    %v666 = vadd.f32 0.0, %v665
    %v667 = vpop.f32.mrb[0].mxu0
    %v668 = vpop.f32.mrb[0].mxu0
    %v669 = vpop.f32.mrb[0].mxu0
    %670 = vdwg.mxu0
    %v671 = vsel %vm401, %v666, -1e+30
    %v672 = vsel %vm453, %v671, -inf
    %673 = vmax.xlane.f32.xlu0 %v672
    %v674 = vpop.xlane.xlu0 %673
    %v675 = vsub.f32 %v671, %v674
    %v676 = vmul.f32 %v675, 1.442695
    %v677 = vpow.pop %v676
    %v678 = vsel %vm453, %v677, 0.0
    %679 = vadd.xlane.f32.xlu0 %v678
    %v680 = vpop.xlane.xlu0 %679
    %v681 = vpack.c.bf16 %v677, %v677
    %682 = vrot.lane.b32.xlu0 %v404, 64
    %v683 = vpop.permute.xlu0 %682
    %v686 = vsel %vm453, %v681, 0
    %688 = vmatprep.subr.bf16.mxu0 0
    %689 = vmatpush1.bf16.msra.mxu0 %v683
    %690 = vmatprep.subr.bf16.mxu0 0
    %691 = vmatpush1.bf16.msra.mxu0 0
    %692 = vmatprep.subr.bf16.mxu0 0
    %693 = vmatpush1.bf16.msra.mxu0 0
    %694 = vmatprep.subr.bf16.mxu0 0
    %695 = vmatpush1.bf16.msra.mxu0 0
    %696 = vmatprep.subr.bf16.mxu0 0
    %697 = vmatpush1.bf16.msra.mxu0 0
    %698 = vmatprep.subr.bf16.mxu0 0
    %699 = vmatpush1.bf16.msra.mxu0 0
    %700 = vmatprep.subr.bf16.mxu0 0
    %701 = vmatpush1.bf16.msra.mxu0 0
    %702 = vmatprep.subr.bf16.mxu0 0
    %703 = vmatpush1.bf16.msra.mxu0 0
    %704 = vmatprep.subr.bf16.mxu0 0
    %705 = vmatpush1.bf16.msra.mxu0 0
    %706 = vmatprep.subr.bf16.mxu0 0
    %707 = vmatpush1.bf16.msra.mxu0 0
    %708 = vmatprep.subr.bf16.mxu0 0
    %709 = vmatpush1.bf16.msra.mxu0 0
    %710 = vmatprep.subr.bf16.mxu0 0
    %711 = vmatpush1.bf16.msra.mxu0 0
    %712 = vmatprep.subr.bf16.mxu0 0
    %713 = vmatpush1.bf16.msra.mxu0 0
    %714 = vmatprep.subr.bf16.mxu0 0
    %715 = vmatpush1.bf16.msra.mxu0 0
    %716 = vmatprep.subr.bf16.mxu0 0
    %717 = vmatpush1.bf16.msra.mxu0 0
    %718 = vmatprep.subr.bf16.mxu0 0
    %719 = vmatpush1.bf16.msra.mxu0 0
    %720 = vmatprep.mubr.bf16.mxu0 0
    %721 = vmatmul.mubr.bf16.gmra.mrb[0].mxu0 %v686
    %v722 = vpop.f32.mrb[0].mxu0
    %v723 = vadd.f32 0.0, %v722
    %v724 = vpop.f32.mrb[0].mxu0
    %v725 = vpop.f32.mrb[0].mxu0
    %v726 = vpop.f32.mrb[0].mxu0
    %727 = vdwg.mxu0
    %v728 = vrcp.pop %v680
    %v729 = vmul.f32 %v723, %v728
    %730 = vrot.lane.b32.xlu0 %v402, 32
    %v731 = vpop.permute.xlu0 %730
    %732 = vrot.lane.b32.xlu0 %v403, 32
    %v733 = vpop.permute.xlu0 %732
    %v735 = vsel %vm405, %v731, 0
    %v738 = vsel %vm405, %v733, 0
    %740 = vmatprep.subr.bf16.mxu0 0
    %741 = vmatpush1.bf16.xpose.msra.mxu0 %v738
    %742 = vmatprep.subr.bf16.mxu0 0
    %743 = vmatpush1.bf16.xpose.msra.mxu0 0
    %744 = vmatprep.subr.bf16.mxu0 0
    %745 = vmatpush1.bf16.xpose.msra.mxu0 0
    %746 = vmatprep.subr.bf16.mxu0 0
    %747 = vmatpush1.bf16.xpose.msra.mxu0 0
    %748 = vmatprep.subr.bf16.mxu0 0
    %749 = vmatpush1.bf16.xpose.msra.mxu0 0
    %750 = vmatprep.subr.bf16.mxu0 0
    %751 = vmatpush1.bf16.xpose.msra.mxu0 0
    %752 = vmatprep.subr.bf16.mxu0 0
    %753 = vmatpush1.bf16.xpose.msra.mxu0 0
    %754 = vmatprep.subr.bf16.mxu0 0
    %755 = vmatpush1.bf16.xpose.msra.mxu0 0
    %756 = vmatprep.subr.bf16.mxu0 0
    %757 = vmatpush1.bf16.xpose.msra.mxu0 0
    %758 = vmatprep.subr.bf16.mxu0 0
    %759 = vmatpush1.bf16.xpose.msra.mxu0 0
    %760 = vmatprep.subr.bf16.mxu0 0
    %761 = vmatpush1.bf16.xpose.msra.mxu0 0
    %762 = vmatprep.subr.bf16.mxu0 0
    %763 = vmatpush1.bf16.xpose.msra.mxu0 0
    %764 = vmatprep.subr.bf16.mxu0 0
    %765 = vmatpush1.bf16.xpose.msra.mxu0 0
    %766 = vmatprep.subr.bf16.mxu0 0
    %767 = vmatpush1.bf16.xpose.msra.mxu0 0
    %768 = vmatprep.subr.bf16.mxu0 0
    %769 = vmatpush1.bf16.xpose.msra.mxu0 0
    %770 = vmatprep.subr.bf16.mxu0 0
    %771 = vmatpush1.bf16.xpose.msra.mxu0 0
    %772 = vmatprep.mubr.bf16.mxu0 0
    %773 = vmatmul.mubr.bf16.gmra.mrb[0].mxu0 %v735
    %v774 = vpop.f32.mrb[0].mxu0
    %v775 = vadd.f32 0.0, %v774
    %v776 = vpop.f32.mrb[0].mxu0
    %v777 = vpop.f32.mrb[0].mxu0
    %v778 = vpop.f32.mrb[0].mxu0
    %779 = vdwg.mxu0
    %v780 = vsel %vm401, %v775, -1e+30
    %v781 = vsel %vm453, %v780, -inf
    %782 = vmax.xlane.f32.xlu0 %v781
    %v783 = vpop.xlane.xlu0 %782
    %v784 = vsub.f32 %v780, %v783
    %v785 = vmul.f32 %v784, 1.442695
    %v786 = vpow.pop %v785
    %v787 = vsel %vm453, %v786, 0.0
    %788 = vadd.xlane.f32.xlu0 %v787
    %v789 = vpop.xlane.xlu0 %788
    %v790 = vpack.c.bf16 %v786, %v786
    %791 = vrot.lane.b32.xlu0 %v404, 32
    %v792 = vpop.permute.xlu0 %791
    %v795 = vsel %vm453, %v790, 0
    %797 = vmatprep.subr.bf16.mxu0 0
    %798 = vmatpush1.bf16.msra.mxu0 %v792
    %799 = vmatprep.subr.bf16.mxu0 0
    %800 = vmatpush1.bf16.msra.mxu0 0
    %801 = vmatprep.subr.bf16.mxu0 0
    %802 = vmatpush1.bf16.msra.mxu0 0
    %803 = vmatprep.subr.bf16.mxu0 0
    %804 = vmatpush1.bf16.msra.mxu0 0
    %805 = vmatprep.subr.bf16.mxu0 0
    %806 = vmatpush1.bf16.msra.mxu0 0
    %807 = vmatprep.subr.bf16.mxu0 0
    %808 = vmatpush1.bf16.msra.mxu0 0
    %809 = vmatprep.subr.bf16.mxu0 0
    %810 = vmatpush1.bf16.msra.mxu0 0
    %811 = vmatprep.subr.bf16.mxu0 0
    %812 = vmatpush1.bf16.msra.mxu0 0
    %813 = vmatprep.subr.bf16.mxu0 0
    %814 = vmatpush1.bf16.msra.mxu0 0
    %815 = vmatprep.subr.bf16.mxu0 0
    %816 = vmatpush1.bf16.msra.mxu0 0
    %817 = vmatprep.subr.bf16.mxu0 0
    %818 = vmatpush1.bf16.msra.mxu0 0
    %819 = vmatprep.subr.bf16.mxu0 0
    %820 = vmatpush1.bf16.msra.mxu0 0
    %821 = vmatprep.subr.bf16.mxu0 0
    %822 = vmatpush1.bf16.msra.mxu0 0
    %823 = vmatprep.subr.bf16.mxu0 0
    %824 = vmatpush1.bf16.msra.mxu0 0
    %825 = vmatprep.subr.bf16.mxu0 0
    %826 = vmatpush1.bf16.msra.mxu0 0
    %827 = vmatprep.subr.bf16.mxu0 0
    %828 = vmatpush1.bf16.msra.mxu0 0
    %829 = vmatprep.mubr.bf16.mxu0 0
    %830 = vmatmul.mubr.bf16.gmra.mrb[0].mxu0 %v795
    %v831 = vpop.f32.mrb[0].mxu0
    %v832 = vadd.f32 0.0, %v831
    %v833 = vpop.f32.mrb[0].mxu0
    %v834 = vpop.f32.mrb[0].mxu0
    %v835 = vpop.f32.mrb[0].mxu0
    %836 = vdwg.mxu0
    %v837 = vrcp.pop %v789
    %v838 = vmul.f32 %v832, %v837
    %840 = vrot.lane.b32.xlu0 %v620, 32
    %v841 = vpop.permute.xlu0 %840
    %844 = vrot.lane.b32.xlu0 %v729, 64
    %v845 = vpop.permute.xlu0 %844
    %848 = vrot.lane.b32.xlu0 %v838, 96
    %v849 = vpop.permute.xlu0 %848
    %v851 = vsel %vm405, %v508, %v841
    %vm852 = vcmask 523264
    %v853 = vsel %vm852, %v851, %v845
    %vm854 = vcmask 785408
    %v855 = vsel %vm854, %v853, %v849
    %v856 = vpack.c.bf16 %v309, %v309
    %v857 = vpack.c.bf16 %v311, %v390
    %v858 = vpack.c.bf16 %v351, %v392
    %v860 = vsel %vm405, %v856, 0
    %v863 = vsel %vm405, %v857, 0
    %865 = vmatprep.subr.bf16.mxu0 0
    %866 = vmatpush1.bf16.xpose.msra.mxu0 %v863
    %867 = vmatprep.subr.bf16.mxu0 0
    %868 = vmatpush1.bf16.xpose.msra.mxu0 0
    %869 = vmatprep.subr.bf16.mxu0 0
    %870 = vmatpush1.bf16.xpose.msra.mxu0 0
    %871 = vmatprep.subr.bf16.mxu0 0
    %872 = vmatpush1.bf16.xpose.msra.mxu0 0
    %873 = vmatprep.subr.bf16.mxu0 0
    %874 = vmatpush1.bf16.xpose.msra.mxu0 0
    %875 = vmatprep.subr.bf16.mxu0 0
    %876 = vmatpush1.bf16.xpose.msra.mxu0 0
    %877 = vmatprep.subr.bf16.mxu0 0
    %878 = vmatpush1.bf16.xpose.msra.mxu0 0
    %879 = vmatprep.subr.bf16.mxu0 0
    %880 = vmatpush1.bf16.xpose.msra.mxu0 0
    %881 = vmatprep.subr.bf16.mxu0 0
    %882 = vmatpush1.bf16.xpose.msra.mxu0 0
    %883 = vmatprep.subr.bf16.mxu0 0
    %884 = vmatpush1.bf16.xpose.msra.mxu0 0
    %885 = vmatprep.subr.bf16.mxu0 0
    %886 = vmatpush1.bf16.xpose.msra.mxu0 0
    %887 = vmatprep.subr.bf16.mxu0 0
    %888 = vmatpush1.bf16.xpose.msra.mxu0 0
    %889 = vmatprep.subr.bf16.mxu0 0
    %890 = vmatpush1.bf16.xpose.msra.mxu0 0
    %891 = vmatprep.subr.bf16.mxu0 0
    %892 = vmatpush1.bf16.xpose.msra.mxu0 0
    %893 = vmatprep.subr.bf16.mxu0 0
    %894 = vmatpush1.bf16.xpose.msra.mxu0 0
    %895 = vmatprep.subr.bf16.mxu0 0
    %896 = vmatpush1.bf16.xpose.msra.mxu0 0
    %897 = vmatprep.mubr.bf16.mxu0 0
    %898 = vmatmul.mubr.bf16.gmra.mrb[0].mxu0 %v860
    %v899 = vpop.f32.mrb[0].mxu0
    %v900 = vadd.f32 0.0, %v899
    %v901 = vpop.f32.mrb[0].mxu0
    %v902 = vpop.f32.mrb[0].mxu0
    %v903 = vpop.f32.mrb[0].mxu0
    %904 = vdwg.mxu0
    %v905 = vsel %vm401, %v900, -1e+30
    %v906 = vsel %vm453, %v905, -inf
    %907 = vmax.xlane.f32.xlu0 %v906
    %v908 = vpop.xlane.xlu0 %907
    %v909 = vsub.f32 %v905, %v908
    %v910 = vmul.f32 %v909, 1.442695
    %v911 = vpow.pop %v910
    %v912 = vsel %vm453, %v911, 0.0
    %913 = vadd.xlane.f32.xlu0 %v912
    %v914 = vpop.xlane.xlu0 %913
    %v915 = vpack.c.bf16 %v911, %v911
    %v917 = vsel %vm453, %v915, 0
    %919 = vmatprep.subr.bf16.mxu0 0
    %920 = vmatpush1.bf16.msra.mxu0 %v858
    %921 = vmatprep.subr.bf16.mxu0 0
    %922 = vmatpush1.bf16.msra.mxu0 0
    %923 = vmatprep.subr.bf16.mxu0 0
    %924 = vmatpush1.bf16.msra.mxu0 0
    %925 = vmatprep.subr.bf16.mxu0 0
    %926 = vmatpush1.bf16.msra.mxu0 0
    %927 = vmatprep.subr.bf16.mxu0 0
    %928 = vmatpush1.bf16.msra.mxu0 0
    %929 = vmatprep.subr.bf16.mxu0 0
    %930 = vmatpush1.bf16.msra.mxu0 0
    %931 = vmatprep.subr.bf16.mxu0 0
    %932 = vmatpush1.bf16.msra.mxu0 0
    %933 = vmatprep.subr.bf16.mxu0 0
    %934 = vmatpush1.bf16.msra.mxu0 0
    %935 = vmatprep.subr.bf16.mxu0 0
    %936 = vmatpush1.bf16.msra.mxu0 0
    %937 = vmatprep.subr.bf16.mxu0 0
    %938 = vmatpush1.bf16.msra.mxu0 0
    %939 = vmatprep.subr.bf16.mxu0 0
    %940 = vmatpush1.bf16.msra.mxu0 0
    %941 = vmatprep.subr.bf16.mxu0 0
    %942 = vmatpush1.bf16.msra.mxu0 0
    %943 = vmatprep.subr.bf16.mxu0 0
    %944 = vmatpush1.bf16.msra.mxu0 0
    %945 = vmatprep.subr.bf16.mxu0 0
    %946 = vmatpush1.bf16.msra.mxu0 0
    %947 = vmatprep.subr.bf16.mxu0 0
    %948 = vmatpush1.bf16.msra.mxu0 0
    %949 = vmatprep.subr.bf16.mxu0 0
    %950 = vmatpush1.bf16.msra.mxu0 0
    %951 = vmatprep.mubr.bf16.mxu0 0
    %952 = vmatmul.mubr.bf16.gmra.mrb[0].mxu0 %v917
    %v953 = vpop.f32.mrb[0].mxu0
    %v954 = vadd.f32 0.0, %v953
    %v955 = vpop.f32.mrb[0].mxu0
    %v956 = vpop.f32.mrb[0].mxu0
    %v957 = vpop.f32.mrb[0].mxu0
    %958 = vdwg.mxu0
    %v959 = vrcp.pop %v914
    %v960 = vmul.f32 %v954, %v959
    %962 = vrot.lane.b32.xlu0 %v856, 96
    %v963 = vpop.permute.xlu0 %962
    %965 = vrot.lane.b32.xlu0 %v857, 96
    %v966 = vpop.permute.xlu0 %965
    %v968 = vsel %vm405, %v963, 0
    %v971 = vsel %vm405, %v966, 0
    %973 = vmatprep.subr.bf16.mxu0 0
    %974 = vmatpush1.bf16.xpose.msra.mxu0 %v971
    %975 = vmatprep.subr.bf16.mxu0 0
    %976 = vmatpush1.bf16.xpose.msra.mxu0 0
    %977 = vmatprep.subr.bf16.mxu0 0
    %978 = vmatpush1.bf16.xpose.msra.mxu0 0
    %979 = vmatprep.subr.bf16.mxu0 0
    %980 = vmatpush1.bf16.xpose.msra.mxu0 0
    %981 = vmatprep.subr.bf16.mxu0 0
    %982 = vmatpush1.bf16.xpose.msra.mxu0 0
    %983 = vmatprep.subr.bf16.mxu0 0
    %984 = vmatpush1.bf16.xpose.msra.mxu0 0
    %985 = vmatprep.subr.bf16.mxu0 0
    %986 = vmatpush1.bf16.xpose.msra.mxu0 0
    %987 = vmatprep.subr.bf16.mxu0 0
    %988 = vmatpush1.bf16.xpose.msra.mxu0 0
    %989 = vmatprep.subr.bf16.mxu0 0
    %990 = vmatpush1.bf16.xpose.msra.mxu0 0
    %991 = vmatprep.subr.bf16.mxu0 0
    %992 = vmatpush1.bf16.xpose.msra.mxu0 0
    %993 = vmatprep.subr.bf16.mxu0 0
    %994 = vmatpush1.bf16.xpose.msra.mxu0 0
    %995 = vmatprep.subr.bf16.mxu0 0
    %996 = vmatpush1.bf16.xpose.msra.mxu0 0
    %997 = vmatprep.subr.bf16.mxu0 0
    %998 = vmatpush1.bf16.xpose.msra.mxu0 0
    %999 = vmatprep.subr.bf16.mxu0 0
    %1000 = vmatpush1.bf16.xpose.msra.mxu0 0
    %1001 = vmatprep.subr.bf16.mxu0 0
    %1002 = vmatpush1.bf16.xpose.msra.mxu0 0
    %1003 = vmatprep.subr.bf16.mxu0 0
    %1004 = vmatpush1.bf16.xpose.msra.mxu0 0
    %1005 = vmatprep.mubr.bf16.mxu0 0
    %1006 = vmatmul.mubr.bf16.gmra.mrb[0].mxu0 %v968
    %v1007 = vpop.f32.mrb[0].mxu0
    %v1008 = vadd.f32 0.0, %v1007
    %v1009 = vpop.f32.mrb[0].mxu0
    %v1010 = vpop.f32.mrb[0].mxu0
    %v1011 = vpop.f32.mrb[0].mxu0
    %1012 = vdwg.mxu0
    %v1013 = vsel %vm401, %v1008, -1e+30
    %v1014 = vsel %vm453, %v1013, -inf
    %1015 = vmax.xlane.f32.xlu0 %v1014
    %v1016 = vpop.xlane.xlu0 %1015
    %v1017 = vsub.f32 %v1013, %v1016
    %v1018 = vmul.f32 %v1017, 1.442695
    %v1019 = vpow.pop %v1018
    %v1020 = vsel %vm453, %v1019, 0.0
    %1021 = vadd.xlane.f32.xlu0 %v1020
    %v1022 = vpop.xlane.xlu0 %1021
    %v1023 = vpack.c.bf16 %v1019, %v1019
    %1025 = vrot.lane.b32.xlu0 %v858, 96
    %v1026 = vpop.permute.xlu0 %1025
    %v1029 = vsel %vm453, %v1023, 0
    %1031 = vmatprep.subr.bf16.mxu0 0
    %1032 = vmatpush1.bf16.msra.mxu0 %v1026
    %1033 = vmatprep.subr.bf16.mxu0 0
    %1034 = vmatpush1.bf16.msra.mxu0 0
    %1035 = vmatprep.subr.bf16.mxu0 0
    %1036 = vmatpush1.bf16.msra.mxu0 0
    %1037 = vmatprep.subr.bf16.mxu0 0
    %1038 = vmatpush1.bf16.msra.mxu0 0
    %1039 = vmatprep.subr.bf16.mxu0 0
    %1040 = vmatpush1.bf16.msra.mxu0 0
    %1041 = vmatprep.subr.bf16.mxu0 0
    %1042 = vmatpush1.bf16.msra.mxu0 0
    %1043 = vmatprep.subr.bf16.mxu0 0
    %1044 = vmatpush1.bf16.msra.mxu0 0
    %1045 = vmatprep.subr.bf16.mxu0 0
    %1046 = vmatpush1.bf16.msra.mxu0 0
    %1047 = vmatprep.subr.bf16.mxu0 0
    %1048 = vmatpush1.bf16.msra.mxu0 0
    %1049 = vmatprep.subr.bf16.mxu0 0
    %1050 = vmatpush1.bf16.msra.mxu0 0
    %1051 = vmatprep.subr.bf16.mxu0 0
    %1052 = vmatpush1.bf16.msra.mxu0 0
    %1053 = vmatprep.subr.bf16.mxu0 0
    %1054 = vmatpush1.bf16.msra.mxu0 0
    %1055 = vmatprep.subr.bf16.mxu0 0
    %1056 = vmatpush1.bf16.msra.mxu0 0
    %1057 = vmatprep.subr.bf16.mxu0 0
    %1058 = vmatpush1.bf16.msra.mxu0 0
    %1059 = vmatprep.subr.bf16.mxu0 0
    %1060 = vmatpush1.bf16.msra.mxu0 0
    %1061 = vmatprep.subr.bf16.mxu0 0
    %1062 = vmatpush1.bf16.msra.mxu0 0
    %1063 = vmatprep.mubr.bf16.mxu0 0
    %1064 = vmatmul.mubr.bf16.gmra.mrb[0].mxu0 %v1029
    %v1065 = vpop.f32.mrb[0].mxu0
    %v1066 = vadd.f32 0.0, %v1065
    %v1067 = vpop.f32.mrb[0].mxu0
    %v1068 = vpop.f32.mrb[0].mxu0
    %v1069 = vpop.f32.mrb[0].mxu0
    %1070 = vdwg.mxu0
    %v1071 = vrcp.pop %v1022
    %v1072 = vmul.f32 %v1066, %v1071
    %1073 = vrot.lane.b32.xlu0 %v856, 64
    %v1074 = vpop.permute.xlu0 %1073
    %1075 = vrot.lane.b32.xlu0 %v857, 64
    %v1076 = vpop.permute.xlu0 %1075
    %v1078 = vsel %vm405, %v1074, 0
    %v1081 = vsel %vm405, %v1076, 0
    %1083 = vmatprep.subr.bf16.mxu0 0
    %1084 = vmatpush1.bf16.xpose.msra.mxu0 %v1081
    %1085 = vmatprep.subr.bf16.mxu0 0
    %1086 = vmatpush1.bf16.xpose.msra.mxu0 0
    %1087 = vmatprep.subr.bf16.mxu0 0
    %1088 = vmatpush1.bf16.xpose.msra.mxu0 0
    %1089 = vmatprep.subr.bf16.mxu0 0
    %1090 = vmatpush1.bf16.xpose.msra.mxu0 0
    %1091 = vmatprep.subr.bf16.mxu0 0
    %1092 = vmatpush1.bf16.xpose.msra.mxu0 0
    %1093 = vmatprep.subr.bf16.mxu0 0
    %1094 = vmatpush1.bf16.xpose.msra.mxu0 0
    %1095 = vmatprep.subr.bf16.mxu0 0
    %1096 = vmatpush1.bf16.xpose.msra.mxu0 0
    %1097 = vmatprep.subr.bf16.mxu0 0
    %1098 = vmatpush1.bf16.xpose.msra.mxu0 0
    %1099 = vmatprep.subr.bf16.mxu0 0
    %1100 = vmatpush1.bf16.xpose.msra.mxu0 0
    %1101 = vmatprep.subr.bf16.mxu0 0
    %1102 = vmatpush1.bf16.xpose.msra.mxu0 0
    %1103 = vmatprep.subr.bf16.mxu0 0
    %1104 = vmatpush1.bf16.xpose.msra.mxu0 0
    %1105 = vmatprep.subr.bf16.mxu0 0
    %1106 = vmatpush1.bf16.xpose.msra.mxu0 0
    %1107 = vmatprep.subr.bf16.mxu0 0
    %1108 = vmatpush1.bf16.xpose.msra.mxu0 0
    %1109 = vmatprep.subr.bf16.mxu0 0
    %1110 = vmatpush1.bf16.xpose.msra.mxu0 0
    %1111 = vmatprep.subr.bf16.mxu0 0
    %1112 = vmatpush1.bf16.xpose.msra.mxu0 0
    %1113 = vmatprep.subr.bf16.mxu0 0
    %1114 = vmatpush1.bf16.xpose.msra.mxu0 0
    %1115 = vmatprep.mubr.bf16.mxu0 0
    %1116 = vmatmul.mubr.bf16.gmra.mrb[0].mxu0 %v1078
    %v1117 = vpop.f32.mrb[0].mxu0
    %v1118 = vadd.f32 0.0, %v1117
    %v1119 = vpop.f32.mrb[0].mxu0
    %v1120 = vpop.f32.mrb[0].mxu0
    %v1121 = vpop.f32.mrb[0].mxu0
    %1122 = vdwg.mxu0
    %v1123 = vsel %vm401, %v1118, -1e+30
    %v1124 = vsel %vm453, %v1123, -inf
    %1125 = vmax.xlane.f32.xlu0 %v1124
    %v1126 = vpop.xlane.xlu0 %1125
    %v1127 = vsub.f32 %v1123, %v1126
    %v1128 = vmul.f32 %v1127, 1.442695
    %v1129 = vpow.pop %v1128
    %v1130 = vsel %vm453, %v1129, 0.0
    %1131 = vadd.xlane.f32.xlu0 %v1130
    %v1132 = vpop.xlane.xlu0 %1131
    %v1133 = vpack.c.bf16 %v1129, %v1129
    %1134 = vrot.lane.b32.xlu0 %v858, 64
    %v1135 = vpop.permute.xlu0 %1134
    %v1138 = vsel %vm453, %v1133, 0
    %1140 = vmatprep.subr.bf16.mxu0 0
    %1141 = vmatpush1.bf16.msra.mxu0 %v1135
    %1142 = vmatprep.subr.bf16.mxu0 0
    %1143 = vmatpush1.bf16.msra.mxu0 0
    %1144 = vmatprep.subr.bf16.mxu0 0
    %1145 = vmatpush1.bf16.msra.mxu0 0
    %1146 = vmatprep.subr.bf16.mxu0 0
    %1147 = vmatpush1.bf16.msra.mxu0 0
    %1148 = vmatprep.subr.bf16.mxu0 0
    %1149 = vmatpush1.bf16.msra.mxu0 0
    %1150 = vmatprep.subr.bf16.mxu0 0
    %1151 = vmatpush1.bf16.msra.mxu0 0
    %1152 = vmatprep.subr.bf16.mxu0 0
    %1153 = vmatpush1.bf16.msra.mxu0 0
    %1154 = vmatprep.subr.bf16.mxu0 0
    %1155 = vmatpush1.bf16.msra.mxu0 0
    %1156 = vmatprep.subr.bf16.mxu0 0
    %1157 = vmatpush1.bf16.msra.mxu0 0
    %1158 = vmatprep.subr.bf16.mxu0 0
    %1159 = vmatpush1.bf16.msra.mxu0 0
    %1160 = vmatprep.subr.bf16.mxu0 0
    %1161 = vmatpush1.bf16.msra.mxu0 0
    %1162 = vmatprep.subr.bf16.mxu0 0
    %1163 = vmatpush1.bf16.msra.mxu0 0
    %1164 = vmatprep.subr.bf16.mxu0 0
    %1165 = vmatpush1.bf16.msra.mxu0 0
    %1166 = vmatprep.subr.bf16.mxu0 0
    %1167 = vmatpush1.bf16.msra.mxu0 0
    %1168 = vmatprep.subr.bf16.mxu0 0
    %1169 = vmatpush1.bf16.msra.mxu0 0
    %1170 = vmatprep.subr.bf16.mxu0 0
    %1171 = vmatpush1.bf16.msra.mxu0 0
    %1172 = vmatprep.mubr.bf16.mxu0 0
    %1173 = vmatmul.mubr.bf16.gmra.mrb[0].mxu0 %v1138
    %v1174 = vpop.f32.mrb[0].mxu0
    %v1175 = vadd.f32 0.0, %v1174
    %v1176 = vpop.f32.mrb[0].mxu0
    %v1177 = vpop.f32.mrb[0].mxu0
    %v1178 = vpop.f32.mrb[0].mxu0
    %1179 = vdwg.mxu0
    %v1180 = vrcp.pop %v1132
    %v1181 = vmul.f32 %v1175, %v1180
    %1182 = vrot.lane.b32.xlu0 %v856, 32
    %v1183 = vpop.permute.xlu0 %1182
    %1184 = vrot.lane.b32.xlu0 %v857, 32
    %v1185 = vpop.permute.xlu0 %1184
    %v1187 = vsel %vm405, %v1183, 0
    %v1190 = vsel %vm405, %v1185, 0
    %1192 = vmatprep.subr.bf16.mxu0 0
    %1193 = vmatpush1.bf16.xpose.msra.mxu0 %v1190
    %1194 = vmatprep.subr.bf16.mxu0 0
    %1195 = vmatpush1.bf16.xpose.msra.mxu0 0
    %1196 = vmatprep.subr.bf16.mxu0 0
    %1197 = vmatpush1.bf16.xpose.msra.mxu0 0
    %1198 = vmatprep.subr.bf16.mxu0 0
    %1199 = vmatpush1.bf16.xpose.msra.mxu0 0
    %1200 = vmatprep.subr.bf16.mxu0 0
    %1201 = vmatpush1.bf16.xpose.msra.mxu0 0
    %1202 = vmatprep.subr.bf16.mxu0 0
    %1203 = vmatpush1.bf16.xpose.msra.mxu0 0
    %1204 = vmatprep.subr.bf16.mxu0 0
    %1205 = vmatpush1.bf16.xpose.msra.mxu0 0
    %1206 = vmatprep.subr.bf16.mxu0 0
    %1207 = vmatpush1.bf16.xpose.msra.mxu0 0
    %1208 = vmatprep.subr.bf16.mxu0 0
    %1209 = vmatpush1.bf16.xpose.msra.mxu0 0
    %1210 = vmatprep.subr.bf16.mxu0 0
    %1211 = vmatpush1.bf16.xpose.msra.mxu0 0
    %1212 = vmatprep.subr.bf16.mxu0 0
    %1213 = vmatpush1.bf16.xpose.msra.mxu0 0
    %1214 = vmatprep.subr.bf16.mxu0 0
    %1215 = vmatpush1.bf16.xpose.msra.mxu0 0
    %1216 = vmatprep.subr.bf16.mxu0 0
    %1217 = vmatpush1.bf16.xpose.msra.mxu0 0
    %1218 = vmatprep.subr.bf16.mxu0 0
    %1219 = vmatpush1.bf16.xpose.msra.mxu0 0
    %1220 = vmatprep.subr.bf16.mxu0 0
    %1221 = vmatpush1.bf16.xpose.msra.mxu0 0
    %1222 = vmatprep.subr.bf16.mxu0 0
    %1223 = vmatpush1.bf16.xpose.msra.mxu0 0
    %1224 = vmatprep.mubr.bf16.mxu0 0
    %1225 = vmatmul.mubr.bf16.gmra.mrb[0].mxu0 %v1187
    %v1226 = vpop.f32.mrb[0].mxu0
    %v1227 = vadd.f32 0.0, %v1226
    %v1228 = vpop.f32.mrb[0].mxu0
    %v1229 = vpop.f32.mrb[0].mxu0
    %v1230 = vpop.f32.mrb[0].mxu0
    %1231 = vdwg.mxu0
    %v1232 = vsel %vm401, %v1227, -1e+30
    %v1233 = vsel %vm453, %v1232, -inf
    %1234 = vmax.xlane.f32.xlu0 %v1233
    %v1235 = vpop.xlane.xlu0 %1234
    %v1236 = vsub.f32 %v1232, %v1235
    %v1237 = vmul.f32 %v1236, 1.442695
    %v1238 = vpow.pop %v1237
    %v1239 = vsel %vm453, %v1238, 0.0
    %1240 = vadd.xlane.f32.xlu0 %v1239
    %v1241 = vpop.xlane.xlu0 %1240
    %v1242 = vpack.c.bf16 %v1238, %v1238
    %1243 = vrot.lane.b32.xlu0 %v858, 32
    %v1244 = vpop.permute.xlu0 %1243
    %v1247 = vsel %vm453, %v1242, 0
    %1249 = vmatprep.subr.bf16.mxu0 0
    %1250 = vmatpush1.bf16.msra.mxu0 %v1244
    %1251 = vmatprep.subr.bf16.mxu0 0
    %1252 = vmatpush1.bf16.msra.mxu0 0
    %1253 = vmatprep.subr.bf16.mxu0 0
    %1254 = vmatpush1.bf16.msra.mxu0 0
    %1255 = vmatprep.subr.bf16.mxu0 0
    %1256 = vmatpush1.bf16.msra.mxu0 0
    %1257 = vmatprep.subr.bf16.mxu0 0
    %1258 = vmatpush1.bf16.msra.mxu0 0
    %1259 = vmatprep.subr.bf16.mxu0 0
    %1260 = vmatpush1.bf16.msra.mxu0 0
    %1261 = vmatprep.subr.bf16.mxu0 0
    %1262 = vmatpush1.bf16.msra.mxu0 0
    %1263 = vmatprep.subr.bf16.mxu0 0
    %1264 = vmatpush1.bf16.msra.mxu0 0
    %1265 = vmatprep.subr.bf16.mxu0 0
    %1266 = vmatpush1.bf16.msra.mxu0 0
    %1267 = vmatprep.subr.bf16.mxu0 0
    %1268 = vmatpush1.bf16.msra.mxu0 0
    %1269 = vmatprep.subr.bf16.mxu0 0
    %1270 = vmatpush1.bf16.msra.mxu0 0
    %1271 = vmatprep.subr.bf16.mxu0 0
    %1272 = vmatpush1.bf16.msra.mxu0 0
    %1273 = vmatprep.subr.bf16.mxu0 0
    %1274 = vmatpush1.bf16.msra.mxu0 0
    %1275 = vmatprep.subr.bf16.mxu0 0
    %1276 = vmatpush1.bf16.msra.mxu0 0
    %1277 = vmatprep.subr.bf16.mxu0 0
    %1278 = vmatpush1.bf16.msra.mxu0 0
    %1279 = vmatprep.subr.bf16.mxu0 0
    %1280 = vmatpush1.bf16.msra.mxu0 0
    %1281 = vmatprep.mubr.bf16.mxu0 0
    %1282 = vmatmul.mubr.bf16.gmra.mrb[0].mxu0 %v1247
    %v1283 = vpop.f32.mrb[0].mxu0
    %v1284 = vadd.f32 0.0, %v1283
    %v1285 = vpop.f32.mrb[0].mxu0
    %v1286 = vpop.f32.mrb[0].mxu0
    %v1287 = vpop.f32.mrb[0].mxu0
    %1288 = vdwg.mxu0
    %v1289 = vrcp.pop %v1241
    %v1290 = vmul.f32 %v1284, %v1289
    %1292 = vrot.lane.b32.xlu0 %v1072, 32
    %v1293 = vpop.permute.xlu0 %1292
    %1296 = vrot.lane.b32.xlu0 %v1181, 64
    %v1297 = vpop.permute.xlu0 %1296
    %1300 = vrot.lane.b32.xlu0 %v1290, 96
    %v1301 = vpop.permute.xlu0 %1300
    %v1303 = vsel %vm405, %v960, %v1293
    %v1304 = vsel %vm852, %v1303, %v1297
    %v1305 = vsel %vm854, %v1304, %v1301
    %v1306 = vpack.c.bf16 %v1305, %v855
    %v1307 = vld [vmem:[#allocation6] sm:$0xf]
    %v1308 = vld [vmem:[#allocation6 + $0x4] sm:$0xf]
    %v1309 = vld [vmem:[#allocation6 + $0x8] sm:$0xf]
    %v1310 = vld [vmem:[#allocation6 + $0xc] sm:$0xf]
    %v1311 = vld [vmem:[#allocation6 + $0x10] sm:$0xf]
    %v1312 = vld [vmem:[#allocation6 + $0x14] sm:$0xf]
    %v1313 = vld [vmem:[#allocation6 + $0x18] sm:$0xf]
    %v1314 = vld [vmem:[#allocation6 + $0x1c] sm:$0xf]
    %v1315 = vld [vmem:[#allocation6 + $0x20] sm:$0xf]
    %v1316 = vld [vmem:[#allocation6 + $0x24] sm:$0xf]
    %v1317 = vld [vmem:[#allocation6 + $0x28] sm:$0xf]
    %v1318 = vld [vmem:[#allocation6 + $0x2c] sm:$0xf]
    %v1319 = vld [vmem:[#allocation6 + $0x30] sm:$0xf]
    %v1320 = vld [vmem:[#allocation6 + $0x34] sm:$0xf]
    %v1321 = vld [vmem:[#allocation6 + $0x38] sm:$0xf]
    %v1322 = vld [vmem:[#allocation6 + $0x3c] sm:$0xf]
    %v1339 = vunpack.c.l.b16 %v1307
    %v1340 = vunpack.c.l.b16 %v1308
    %v1341 = vunpack.c.l.b16 %v1309
    %v1342 = vunpack.c.l.b16 %v1310
    %v1343 = vunpack.c.l.b16 %v1311
    %v1344 = vunpack.c.l.b16 %v1312
    %v1345 = vunpack.c.l.b16 %v1313
    %v1346 = vunpack.c.l.b16 %v1314
    %v1347 = vunpack.c.l.b16 %v1315
    %v1348 = vunpack.c.l.b16 %v1316
    %v1349 = vunpack.c.l.b16 %v1317
    %v1350 = vunpack.c.l.b16 %v1318
    %v1351 = vunpack.c.l.b16 %v1319
    %v1352 = vunpack.c.l.b16 %v1320
    %v1353 = vunpack.c.l.b16 %v1321
    %v1354 = vunpack.c.l.b16 %v1322
    %v1355 = vpack.c.b16 %v1340, %v1339
    %v1356 = vpack.c.b16 %v1342, %v1341
    %v1357 = vpack.c.b16 %v1344, %v1343
    %v1358 = vpack.c.b16 %v1346, %v1345
    %v1359 = vpack.c.b16 %v1348, %v1347
    %v1360 = vpack.c.b16 %v1350, %v1349
    %v1361 = vpack.c.b16 %v1352, %v1351
    %v1362 = vpack.c.b16 %v1354, %v1353
    %1371 = vmatprep.subr.bf16.mxu0 0
    %1372 = vmatpush1.bf16.msra.mxu0 %v1355
    %1373 = vmatprep.subr.bf16.mxu0 0
    %1374 = vmatpush1.bf16.msra.mxu0 %v1356
    %1375 = vmatprep.subr.bf16.mxu0 0
    %1376 = vmatpush1.bf16.msra.mxu0 %v1357
    %1377 = vmatprep.subr.bf16.mxu0 0
    %1378 = vmatpush1.bf16.msra.mxu0 %v1358
    %1379 = vmatprep.subr.bf16.mxu0 0
    %1380 = vmatpush1.bf16.msra.mxu0 %v1359
    %1381 = vmatprep.subr.bf16.mxu0 0
    %1382 = vmatpush1.bf16.msra.mxu0 %v1360
    %1383 = vmatprep.subr.bf16.mxu0 0
    %1384 = vmatpush1.bf16.msra.mxu0 %v1361
    %1385 = vmatprep.subr.bf16.mxu0 0
    %1386 = vmatpush1.bf16.msra.mxu0 %v1362
    %1387 = vmatprep.subr.bf16.mxu0 0
    %1388 = vmatpush1.bf16.msra.mxu0 0
    %1389 = vmatprep.subr.bf16.mxu0 0
    %1390 = vmatpush1.bf16.msra.mxu0 0
    %1391 = vmatprep.subr.bf16.mxu0 0
    %1392 = vmatpush1.bf16.msra.mxu0 0
    %1393 = vmatprep.subr.bf16.mxu0 0
    %1394 = vmatpush1.bf16.msra.mxu0 0
    %1395 = vmatprep.subr.bf16.mxu0 0
    %1396 = vmatpush1.bf16.msra.mxu0 0
    %1397 = vmatprep.subr.bf16.mxu0 0
    %1398 = vmatpush1.bf16.msra.mxu0 0
    %1399 = vmatprep.subr.bf16.mxu0 0
    %1400 = vmatpush1.bf16.msra.mxu0 0
    %1401 = vmatprep.subr.bf16.mxu0 0
    %1402 = vmatpush1.bf16.msra.mxu0 0
    %1403 = vmatprep.mubr.bf16.mxu0 0
    %1404 = vmatmul.mubr.bf16.gmra.mrb[0].mxu0 %v1306
    %v1405 = vpop.f32.mrb[0].mxu0
    %v1406 = vadd.f32 0.0, %v1405
    %v1407 = vpop.f32.mrb[0].mxu0
    %v1408 = vpop.f32.mrb[0].mxu0
    %v1409 = vadd.f32 0.0, %v1408
    %v1410 = vpop.f32.mrb[0].mxu0
    %1411 = vdwg.mxu0
    %v1412 = vadd.f32 %v83, %v1406
    %v1413 = vadd.f32 %v84, %v1409
    %v1414 = vld [vmem:[#allocation2] sm:$0x1]
    %v1415 = vmul.f32 %v1412, %v1412
    %v1416 = vmul.f32 %v1413, %v1413
    %1417 = vadd.xlane.f32.xlu0 %v1415
    %v1418 = vpop.xlane.xlu0 %1417
    %1419 = vadd.xlane.f32.xlu0 %v1416
    %v1420 = vpop.xlane.xlu0 %1419
    %v1421 = vmul.f32 %v1418, %v92
    %v1422 = vmul.f32 %v1420, %v92
    %v1423 = vadd.f32 %v1421, 1e-06
    %v1424 = vadd.f32 %v1422, 1e-06
    %v1425 = vrsqrt.pop %v1423
    %v1426 = vrsqrt.pop %v1424
    %v1427 = vmul.f32 %v1412, %v1425
    %v1428 = vmul.f32 %v1413, %v1426
    %v1430 = vlaneseq
    %v1431 = vshrl.u32 %v1430, 7
    %v1432 = vsub.s32 0, %v1431
    %v1433 = vrot.slane %v1414, %v1432
    %v1435 = vmul.f32 %v1427, %v1433
    %v1436 = vmul.f32 %v1428, %v1433
    %v1437 = vpack.c.bf16 %v1436, %v1435
    %v1438 = vld [vmem:[%s5] sm:$0xff]
    %v1439 = vld [vmem:[%s5 + $0x8] sm:$0xff]
    %v1440 = vld [vmem:[%s5 + $0x10] sm:$0xff]
    %v1441 = vld [vmem:[%s5 + $0x18] sm:$0xff]
    %v1442 = vld [vmem:[%s5 + $0x20] sm:$0xff]
    %v1443 = vld [vmem:[%s5 + $0x28] sm:$0xff]
    %v1444 = vld [vmem:[%s5 + $0x30] sm:$0xff]
    %v1445 = vld [vmem:[%s5 + $0x38] sm:$0xff]
    %v1446 = vld [vmem:[%s5 + $0x40] sm:$0xff]
    %v1447 = vld [vmem:[%s5 + $0x48] sm:$0xff]
    %v1448 = vld [vmem:[%s5 + $0x50] sm:$0xff]
    %v1449 = vld [vmem:[%s5 + $0x58] sm:$0xff]
    %v1450 = vld [vmem:[%s5 + $0x60] sm:$0xff]
    %v1451 = vld [vmem:[%s5 + $0x68] sm:$0xff]
    %v1452 = vld [vmem:[%s5 + $0x70] sm:$0xff]
    %v1453 = vld [vmem:[%s5 + $0x78] sm:$0xff]
    %v1454 = vld [vmem:[%s5 + $0x80] sm:$0xff]
    %v1455 = vld [vmem:[%s5 + $0x88] sm:$0xff]
    %v1456 = vld [vmem:[%s5 + $0x90] sm:$0xff]
    %v1457 = vld [vmem:[%s5 + $0x98] sm:$0xff]
    %v1458 = vld [vmem:[%s5 + $0xa0] sm:$0xff]
    %v1459 = vld [vmem:[%s5 + $0xa8] sm:$0xff]
    %v1460 = vld [vmem:[%s5 + $0xb0] sm:$0xff]
    %v1461 = vld [vmem:[%s5 + $0xb8] sm:$0xff]
    %v1462 = vld [vmem:[%s5 + $0xc0] sm:$0xff]
    %v1463 = vld [vmem:[%s5 + $0xc8] sm:$0xff]
    %v1464 = vld [vmem:[%s5 + $0xd0] sm:$0xff]
    %v1465 = vld [vmem:[%s5 + $0xd8] sm:$0xff]
    %v1466 = vld [vmem:[%s5 + $0xe0] sm:$0xff]
    %v1467 = vld [vmem:[%s5 + $0xe8] sm:$0xff]
    %v1468 = vld [vmem:[%s5 + $0xf0] sm:$0xff]
    %v1469 = vld [vmem:[%s5 + $0xf8] sm:$0xff]
    %v1502 = vunpack.c.l.b16 %v1438
    %v1503 = vunpack.c.h.b16 %v1438
    %v1504 = vunpack.c.l.b16 %v1439
    %v1505 = vunpack.c.h.b16 %v1439
    %v1506 = vunpack.c.l.b16 %v1440
    %v1507 = vunpack.c.h.b16 %v1440
    %v1508 = vunpack.c.l.b16 %v1441
    %v1509 = vunpack.c.h.b16 %v1441
    %v1510 = vunpack.c.l.b16 %v1442
    %v1511 = vunpack.c.h.b16 %v1442
    %v1512 = vunpack.c.l.b16 %v1443
    %v1513 = vunpack.c.h.b16 %v1443
    %v1514 = vunpack.c.l.b16 %v1444
    %v1515 = vunpack.c.h.b16 %v1444
    %v1516 = vunpack.c.l.b16 %v1445
    %v1517 = vunpack.c.h.b16 %v1445
    %v1518 = vunpack.c.l.b16 %v1446
    %v1519 = vunpack.c.h.b16 %v1446
    %v1520 = vunpack.c.l.b16 %v1447
    %v1521 = vunpack.c.h.b16 %v1447
    %v1522 = vunpack.c.l.b16 %v1448
    %v1523 = vunpack.c.h.b16 %v1448
    %v1524 = vunpack.c.l.b16 %v1449
    %v1525 = vunpack.c.h.b16 %v1449
    %v1526 = vunpack.c.l.b16 %v1450
    %v1527 = vunpack.c.h.b16 %v1450
    %v1528 = vunpack.c.l.b16 %v1451
    %v1529 = vunpack.c.h.b16 %v1451
    %v1530 = vunpack.c.l.b16 %v1452
    %v1531 = vunpack.c.h.b16 %v1452
    %v1532 = vunpack.c.l.b16 %v1453
    %v1533 = vunpack.c.h.b16 %v1453
    %v1534 = vunpack.c.l.b16 %v1454
    %v1535 = vunpack.c.h.b16 %v1454
    %v1536 = vunpack.c.l.b16 %v1455
    %v1537 = vunpack.c.h.b16 %v1455
    %v1538 = vunpack.c.l.b16 %v1456
    %v1539 = vunpack.c.h.b16 %v1456
    %v1540 = vunpack.c.l.b16 %v1457
    %v1541 = vunpack.c.h.b16 %v1457
    %v1542 = vunpack.c.l.b16 %v1458
    %v1543 = vunpack.c.h.b16 %v1458
    %v1544 = vunpack.c.l.b16 %v1459
    %v1545 = vunpack.c.h.b16 %v1459
    %v1546 = vunpack.c.l.b16 %v1460
    %v1547 = vunpack.c.h.b16 %v1460
    %v1548 = vunpack.c.l.b16 %v1461
    %v1549 = vunpack.c.h.b16 %v1461
    %v1550 = vunpack.c.l.b16 %v1462
    %v1551 = vunpack.c.h.b16 %v1462
    %v1552 = vunpack.c.l.b16 %v1463
    %v1553 = vunpack.c.h.b16 %v1463
    %v1554 = vunpack.c.l.b16 %v1464
    %v1555 = vunpack.c.h.b16 %v1464
    %v1556 = vunpack.c.l.b16 %v1465
    %v1557 = vunpack.c.h.b16 %v1465
    %v1558 = vunpack.c.l.b16 %v1466
    %v1559 = vunpack.c.h.b16 %v1466
    %v1560 = vunpack.c.l.b16 %v1467
    %v1561 = vunpack.c.h.b16 %v1467
    %v1562 = vunpack.c.l.b16 %v1468
    %v1563 = vunpack.c.h.b16 %v1468
    %v1564 = vunpack.c.l.b16 %v1469
    %v1565 = vunpack.c.h.b16 %v1469
    %v1566 = vpack.c.b16 %v1506, %v1502
    %v1567 = vpack.c.b16 %v1507, %v1503
    %v1568 = vpack.c.b16 %v1508, %v1504
    %v1569 = vpack.c.b16 %v1509, %v1505
    %v1570 = vpack.c.b16 %v1514, %v1510
    %v1571 = vpack.c.b16 %v1515, %v1511
    %v1572 = vpack.c.b16 %v1516, %v1512
    %v1573 = vpack.c.b16 %v1517, %v1513
    %v1574 = vpack.c.b16 %v1522, %v1518
    %v1575 = vpack.c.b16 %v1523, %v1519
    %v1576 = vpack.c.b16 %v1524, %v1520
    %v1577 = vpack.c.b16 %v1525, %v1521
    %v1578 = vpack.c.b16 %v1530, %v1526
    %v1579 = vpack.c.b16 %v1531, %v1527
    %v1580 = vpack.c.b16 %v1532, %v1528
    %v1581 = vpack.c.b16 %v1533, %v1529
    %v1582 = vpack.c.b16 %v1538, %v1534
    %v1583 = vpack.c.b16 %v1539, %v1535
    %v1584 = vpack.c.b16 %v1540, %v1536
    %v1585 = vpack.c.b16 %v1541, %v1537
    %v1586 = vpack.c.b16 %v1546, %v1542
    %v1587 = vpack.c.b16 %v1547, %v1543
    %v1588 = vpack.c.b16 %v1548, %v1544
    %v1589 = vpack.c.b16 %v1549, %v1545
    %v1590 = vpack.c.b16 %v1554, %v1550
    %v1591 = vpack.c.b16 %v1555, %v1551
    %v1592 = vpack.c.b16 %v1556, %v1552
    %v1593 = vpack.c.b16 %v1557, %v1553
    %v1594 = vpack.c.b16 %v1562, %v1558
    %v1595 = vpack.c.b16 %v1563, %v1559
    %v1596 = vpack.c.b16 %v1564, %v1560
    %v1597 = vpack.c.b16 %v1565, %v1561
    %1630 = vmatprep.subr.bf16.mxu0 %v1567
    %1631 = vmatpush1.bf16.msra.mxu0 %v1566
    %1632 = vmatprep.subr.bf16.mxu0 %v1571
    %1633 = vmatpush1.bf16.msra.mxu0 %v1570
    %1634 = vmatprep.subr.bf16.mxu0 %v1575
    %1635 = vmatpush1.bf16.msra.mxu0 %v1574
    %1636 = vmatprep.subr.bf16.mxu0 %v1579
    %1637 = vmatpush1.bf16.msra.mxu0 %v1578
    %1638 = vmatprep.subr.bf16.mxu0 %v1583
    %1639 = vmatpush1.bf16.msra.mxu0 %v1582
    %1640 = vmatprep.subr.bf16.mxu0 %v1587
    %1641 = vmatpush1.bf16.msra.mxu0 %v1586
    %1642 = vmatprep.subr.bf16.mxu0 %v1591
    %1643 = vmatpush1.bf16.msra.mxu0 %v1590
    %1644 = vmatprep.subr.bf16.mxu0 %v1595
    %1645 = vmatpush1.bf16.msra.mxu0 %v1594
    %1646 = vmatprep.subr.bf16.mxu0 0
    %1647 = vmatpush1.bf16.msra.mxu0 0
    %1648 = vmatprep.subr.bf16.mxu0 0
    %1649 = vmatpush1.bf16.msra.mxu0 0
    %1650 = vmatprep.subr.bf16.mxu0 0
    %1651 = vmatpush1.bf16.msra.mxu0 0
    %1652 = vmatprep.subr.bf16.mxu0 0
    %1653 = vmatpush1.bf16.msra.mxu0 0
    %1654 = vmatprep.subr.bf16.mxu0 0
    %1655 = vmatpush1.bf16.msra.mxu0 0
    %1656 = vmatprep.subr.bf16.mxu0 0
    %1657 = vmatpush1.bf16.msra.mxu0 0
    %1658 = vmatprep.subr.bf16.mxu0 0
    %1659 = vmatpush1.bf16.msra.mxu0 0
    %1660 = vmatprep.subr.bf16.mxu0 0
    %1661 = vmatpush1.bf16.msra.mxu0 0
    %1662 = vmatprep.mubr.bf16.mxu0 0
    %1663 = vmatmul.mubr.bf16.gmra.mrb[0].mxu0 %v1437
    %v1664 = vpop.f32.mrb[0].mxu0
    %v1665 = vadd.f32 0.0, %v1664
    %v1666 = vpop.f32.mrb[0].mxu0
    %v1667 = vadd.f32 0.0, %v1666
    %v1668 = vpop.f32.mrb[0].mxu0
    %v1669 = vadd.f32 0.0, %v1668
    %v1670 = vpop.f32.mrb[0].mxu0
    %v1671 = vadd.f32 0.0, %v1670
    %1672 = vdwg.mxu0
    %1673 = vmatprep.subr.bf16.mxu0 %v1569
    %1674 = vmatpush1.bf16.msra.mxu0 %v1568
    %1675 = vmatprep.subr.bf16.mxu0 %v1573
    %1676 = vmatpush1.bf16.msra.mxu0 %v1572
    %1677 = vmatprep.subr.bf16.mxu0 %v1577
    %1678 = vmatpush1.bf16.msra.mxu0 %v1576
    %1679 = vmatprep.subr.bf16.mxu0 %v1581
    %1680 = vmatpush1.bf16.msra.mxu0 %v1580
    %1681 = vmatprep.subr.bf16.mxu0 %v1585
    %1682 = vmatpush1.bf16.msra.mxu0 %v1584
    %1683 = vmatprep.subr.bf16.mxu0 %v1589
    %1684 = vmatpush1.bf16.msra.mxu0 %v1588
    %1685 = vmatprep.subr.bf16.mxu0 %v1593
    %1686 = vmatpush1.bf16.msra.mxu0 %v1592
    %1687 = vmatprep.subr.bf16.mxu0 %v1597
    %1688 = vmatpush1.bf16.msra.mxu0 %v1596
    %1689 = vmatprep.subr.bf16.mxu0 0
    %1690 = vmatpush1.bf16.msra.mxu0 0
    %1691 = vmatprep.subr.bf16.mxu0 0
    %1692 = vmatpush1.bf16.msra.mxu0 0
    %1693 = vmatprep.subr.bf16.mxu0 0
    %1694 = vmatpush1.bf16.msra.mxu0 0
    %1695 = vmatprep.subr.bf16.mxu0 0
    %1696 = vmatpush1.bf16.msra.mxu0 0
    %1697 = vmatprep.subr.bf16.mxu0 0
    %1698 = vmatpush1.bf16.msra.mxu0 0
    %1699 = vmatprep.subr.bf16.mxu0 0
    %1700 = vmatpush1.bf16.msra.mxu0 0
    %1701 = vmatprep.subr.bf16.mxu0 0
    %1702 = vmatpush1.bf16.msra.mxu0 0
    %1703 = vmatprep.subr.bf16.mxu0 0
    %1704 = vmatpush1.bf16.msra.mxu0 0
    %1705 = vmatprep.mubr.bf16.mxu0 0
    %1706 = vmatmul.mubr.bf16.gmra.mrb[0].mxu0 %v1437
    %v1707 = vpop.f32.mrb[0].mxu0
    %v1708 = vadd.f32 0.0, %v1707
    %v1709 = vpop.f32.mrb[0].mxu0
    %v1710 = vadd.f32 0.0, %v1709
    %v1711 = vpop.f32.mrb[0].mxu0
    %v1712 = vadd.f32 0.0, %v1711
    %v1713 = vpop.f32.mrb[0].mxu0
    %v1714 = vadd.f32 0.0, %v1713
    %1715 = vdwg.mxu0
    %v1716 = vxor.u32 %v1665, 2147483648
    %v1717 = vxor.u32 %v1667, 2147483648
    %v1718 = vxor.u32 %v1669, 2147483648
    %v1719 = vxor.u32 %v1671, 2147483648
    %v1720 = vmul.f32 %v1716, 1.442695
    %v1721 = vpow.pop %v1720
    %v1722 = vmul.f32 %v1717, 1.442695
    %v1723 = vpow.pop %v1722
    %v1724 = vmul.f32 %v1718, 1.442695
    %v1725 = vpow.pop %v1724
    %v1726 = vmul.f32 %v1719, 1.442695
    %v1727 = vpow.pop %v1726
    %v1728 = vadd.f32 %v1721, 1.0
    %v1729 = vadd.f32 %v1723, 1.0
    %v1730 = vadd.f32 %v1725, 1.0
    %v1731 = vadd.f32 %v1727, 1.0
    %v1732 = vrcp.pop %v1728
    %v1733 = vmul.f32 1.0, %v1732
    %v1734 = vrcp.pop %v1729
    %v1735 = vmul.f32 1.0, %v1734
    %v1736 = vrcp.pop %v1730
    %v1737 = vmul.f32 1.0, %v1736
    %v1738 = vrcp.pop %v1731
    %v1739 = vmul.f32 1.0, %v1738
    %v1740 = vmul.f32 %v1665, %v1733
    %v1741 = vmul.f32 %v1667, %v1735
    %v1742 = vmul.f32 %v1669, %v1737
    %v1743 = vmul.f32 %v1671, %v1739
    %v1744 = vmul.f32 %v1740, %v1708
    %v1745 = vmul.f32 %v1741, %v1710
    %v1746 = vmul.f32 %v1742, %v1712
    %v1747 = vmul.f32 %v1743, %v1714
    %v1748 = vpack.c.bf16 %v1746, %v1744
    %v1749 = vpack.c.bf16 %v1747, %v1745
    %v1750 = vld [vmem:[#allocation7] sm:$0xf]
    %v1751 = vld [vmem:[#allocation7 + $0x4] sm:$0xf]
    %v1752 = vld [vmem:[#allocation7 + $0x8] sm:$0xf]
    %v1753 = vld [vmem:[#allocation7 + $0xc] sm:$0xf]
    %v1754 = vld [vmem:[#allocation7 + $0x10] sm:$0xf]
    %v1755 = vld [vmem:[#allocation7 + $0x14] sm:$0xf]
    %v1756 = vld [vmem:[#allocation7 + $0x18] sm:$0xf]
    %v1757 = vld [vmem:[#allocation7 + $0x1c] sm:$0xf]
    %v1758 = vld [vmem:[#allocation7 + $0x20] sm:$0xf]
    %v1759 = vld [vmem:[#allocation7 + $0x24] sm:$0xf]
    %v1760 = vld [vmem:[#allocation7 + $0x28] sm:$0xf]
    %v1761 = vld [vmem:[#allocation7 + $0x2c] sm:$0xf]
    %v1762 = vld [vmem:[#allocation7 + $0x30] sm:$0xf]
    %v1763 = vld [vmem:[#allocation7 + $0x34] sm:$0xf]
    %v1764 = vld [vmem:[#allocation7 + $0x38] sm:$0xf]
    %v1765 = vld [vmem:[#allocation7 + $0x3c] sm:$0xf]
    %v1766 = vld [vmem:[#allocation7 + $0x40] sm:$0xf]
    %v1767 = vld [vmem:[#allocation7 + $0x44] sm:$0xf]
    %v1768 = vld [vmem:[#allocation7 + $0x48] sm:$0xf]
    %v1769 = vld [vmem:[#allocation7 + $0x4c] sm:$0xf]
    %v1770 = vld [vmem:[#allocation7 + $0x50] sm:$0xf]
    %v1771 = vld [vmem:[#allocation7 + $0x54] sm:$0xf]
    %v1772 = vld [vmem:[#allocation7 + $0x58] sm:$0xf]
    %v1773 = vld [vmem:[#allocation7 + $0x5c] sm:$0xf]
    %v1774 = vld [vmem:[#allocation7 + $0x60] sm:$0xf]
    %v1775 = vld [vmem:[#allocation7 + $0x64] sm:$0xf]
    %v1776 = vld [vmem:[#allocation7 + $0x68] sm:$0xf]
    %v1777 = vld [vmem:[#allocation7 + $0x6c] sm:$0xf]
    %v1778 = vld [vmem:[#allocation7 + $0x70] sm:$0xf]
    %v1779 = vld [vmem:[#allocation7 + $0x74] sm:$0xf]
    %v1780 = vld [vmem:[#allocation7 + $0x78] sm:$0xf]
    %v1781 = vld [vmem:[#allocation7 + $0x7c] sm:$0xf]
    %v1814 = vunpack.c.l.b16 %v1750
    %v1815 = vunpack.c.l.b16 %v1751
    %v1816 = vunpack.c.l.b16 %v1752
    %v1817 = vunpack.c.l.b16 %v1753
    %v1818 = vunpack.c.l.b16 %v1754
    %v1819 = vunpack.c.l.b16 %v1755
    %v1820 = vunpack.c.l.b16 %v1756
    %v1821 = vunpack.c.l.b16 %v1757
    %v1822 = vunpack.c.l.b16 %v1758
    %v1823 = vunpack.c.l.b16 %v1759
    %v1824 = vunpack.c.l.b16 %v1760
    %v1825 = vunpack.c.l.b16 %v1761
    %v1826 = vunpack.c.l.b16 %v1762
    %v1827 = vunpack.c.l.b16 %v1763
    %v1828 = vunpack.c.l.b16 %v1764
    %v1829 = vunpack.c.l.b16 %v1765
    %v1830 = vunpack.c.l.b16 %v1766
    %v1831 = vunpack.c.l.b16 %v1767
    %v1832 = vunpack.c.l.b16 %v1768
    %v1833 = vunpack.c.l.b16 %v1769
    %v1834 = vunpack.c.l.b16 %v1770
    %v1835 = vunpack.c.l.b16 %v1771
    %v1836 = vunpack.c.l.b16 %v1772
    %v1837 = vunpack.c.l.b16 %v1773
    %v1838 = vunpack.c.l.b16 %v1774
    %v1839 = vunpack.c.l.b16 %v1775
    %v1840 = vunpack.c.l.b16 %v1776
    %v1841 = vunpack.c.l.b16 %v1777
    %v1842 = vunpack.c.l.b16 %v1778
    %v1843 = vunpack.c.l.b16 %v1779
    %v1844 = vunpack.c.l.b16 %v1780
    %v1845 = vunpack.c.l.b16 %v1781
    %v1846 = vpack.c.b16 %v1815, %v1814
    %v1847 = vpack.c.b16 %v1817, %v1816
    %v1848 = vpack.c.b16 %v1819, %v1818
    %v1849 = vpack.c.b16 %v1821, %v1820
    %v1850 = vpack.c.b16 %v1823, %v1822
    %v1851 = vpack.c.b16 %v1825, %v1824
    %v1852 = vpack.c.b16 %v1827, %v1826
    %v1853 = vpack.c.b16 %v1829, %v1828
    %v1854 = vpack.c.b16 %v1831, %v1830
    %v1855 = vpack.c.b16 %v1833, %v1832
    %v1856 = vpack.c.b16 %v1835, %v1834
    %v1857 = vpack.c.b16 %v1837, %v1836
    %v1858 = vpack.c.b16 %v1839, %v1838
    %v1859 = vpack.c.b16 %v1841, %v1840
    %v1860 = vpack.c.b16 %v1843, %v1842
    %v1861 = vpack.c.b16 %v1845, %v1844
    %1878 = vmatprep.subr.bf16.mxu0 0
    %1879 = vmatpush1.bf16.msra.mxu0 %v1846
    %1880 = vmatprep.subr.bf16.mxu0 0
    %1881 = vmatpush1.bf16.msra.mxu0 %v1847
    %1882 = vmatprep.subr.bf16.mxu0 0
    %1883 = vmatpush1.bf16.msra.mxu0 %v1848
    %1884 = vmatprep.subr.bf16.mxu0 0
    %1885 = vmatpush1.bf16.msra.mxu0 %v1849
    %1886 = vmatprep.subr.bf16.mxu0 0
    %1887 = vmatpush1.bf16.msra.mxu0 %v1850
    %1888 = vmatprep.subr.bf16.mxu0 0
    %1889 = vmatpush1.bf16.msra.mxu0 %v1851
    %1890 = vmatprep.subr.bf16.mxu0 0
    %1891 = vmatpush1.bf16.msra.mxu0 %v1852
    %1892 = vmatprep.subr.bf16.mxu0 0
    %1893 = vmatpush1.bf16.msra.mxu0 %v1853
    %1894 = vmatprep.subr.bf16.mxu0 0
    %1895 = vmatpush1.bf16.msra.mxu0 %v1854
    %1896 = vmatprep.subr.bf16.mxu0 0
    %1897 = vmatpush1.bf16.msra.mxu0 %v1855
    %1898 = vmatprep.subr.bf16.mxu0 0
    %1899 = vmatpush1.bf16.msra.mxu0 %v1856
    %1900 = vmatprep.subr.bf16.mxu0 0
    %1901 = vmatpush1.bf16.msra.mxu0 %v1857
    %1902 = vmatprep.subr.bf16.mxu0 0
    %1903 = vmatpush1.bf16.msra.mxu0 %v1858
    %1904 = vmatprep.subr.bf16.mxu0 0
    %1905 = vmatpush1.bf16.msra.mxu0 %v1859
    %1906 = vmatprep.subr.bf16.mxu0 0
    %1907 = vmatpush1.bf16.msra.mxu0 %v1860
    %1908 = vmatprep.subr.bf16.mxu0 0
    %1909 = vmatpush1.bf16.msra.mxu0 %v1861
    %1910 = vmatprep.mubr.bf16.mxu0 %v1749
    %1911 = vmatmul.mubr.bf16.gmra.mrb[0].mxu0 %v1748
    %v1912 = vpop.f32.mrb[0].mxu0
    %v1913 = vadd.f32 0.0, %v1912
    %v1914 = vpop.f32.mrb[0].mxu0
    %v1915 = vpop.f32.mrb[0].mxu0
    %v1916 = vadd.f32 0.0, %v1915
    %v1917 = vpop.f32.mrb[0].mxu0
    %1918 = vdwg.mxu0
    %v1919 = vadd.f32 %v1412, %v1913
    %v1920 = vadd.f32 %v1413, %v1916
    %1921 = vst [vmem:[%s8] sm:$0xff] %v1919
    %1922 = vst [vmem:[%s8 + $0x8] sm:$0xff] %v1920
    // Predicated region
    $region50: #{model_forward.3} parent=1 // pred_check
      _
    $region51: #{model_forward.3} parent=1 // pred_check_branch
      %1924 = sbr.rel (0) target = $region53
    $region52: #{model_forward.3} parent=1 // pred_region
      _
    $region53: #{model_forward.3} parent=1 // pred_fallthru
      _
    // Predicated region
    $region54: #{model_forward.3} parent=1 // pred_check
      _
    $region55: #{model_forward.3} parent=1 // pred_check_branch
      %1926 = sbr.rel (0) target = $region57
    $region56: #{model_forward.3} parent=1 // pred_region
      _
    $region57: #{model_forward.3} parent=1 // pred_fallthru
      _
    %1927 = vsyncpa [#allocation3], 1
    %1928 = vsyncpa [#allocation5], 1
    %1929 = vsyncpa [#allocation8], 1

// kernel: model_forward.4
$region0: #{model_forward.4}
  #allocation0 [shape = 'u32[]', space=smem, size = 0x4, offset = 0x4, fixed_abs, tag = 'smem constant byte address 0x4 - core index']
  #allocation1 [shape = 'u32[144,128]{1,0:T(1,128)}', space=vmem, size = 0x12000, scoped, tag = 'internal scratch']
  %s0 = inlined_call_operand.vmem [shape: f32[16,128], index: 0, kind: input, shape index: {}]
  %s1 = inlined_call_operand.vmem [shape: f32[1,128], index: 1, kind: input, shape index: {}]
  %s2 = inlined_call_operand.vmem [shape: f32[1,128], index: 2, kind: input, shape index: {}]
  %s3 = inlined_call_operand.vmem [shape: bf16[128,384], index: 3, kind: input, shape index: {}]
  %s4 = inlined_call_operand.vmem [shape: bf16[128,128], index: 4, kind: input, shape index: {}]
  %s5 = inlined_call_operand.vmem [shape: bf16[128,512], index: 5, kind: input, shape index: {}]
  %s6 = inlined_call_operand.vmem [shape: bf16[256,128], index: 6, kind: input, shape index: {}]
  %s7 = inlined_call_operand.vmem [shape: bf16[8,128], index: 7, kind: input, shape index: {}]
  %s8 = inlined_call_operand.vmem [shape: f32[16,128], index: 8, kind: output, shape index: {}]
  %s9 = sld [smem:[#allocation0]]
  $region42: #{model_forward.4} parent=0
    _
  %s11 = ssub.s32 1, %s9
  %s12 = scalar_select 0, %s11, %s9
  // Predicated region
  $region2: #{model_forward.4} parent=0 // pred_check
    _
  $region3: #{model_forward.4} parent=0 // pred_check_branch
    %14 = sbr.rel (0) target = $region5
  $region4: #{model_forward.4} parent=0 // pred_region
    _
  $region5: #{model_forward.4} parent=0 // pred_fallthru
    _
  // Predicated region
  $region6: #{model_forward.4} parent=0 // pred_check
    _
  $region7: #{model_forward.4} parent=0 // pred_check_branch
    %16 = sbr.rel (0) target = $region9
  $region8: #{model_forward.4} parent=0 // pred_region
    _
  $region9: #{model_forward.4} parent=0 // pred_fallthru
    _
  // Predicated region
  $region10: #{model_forward.4} parent=0 // pred_check
    _
  $region11: #{model_forward.4} parent=0 // pred_check_branch
    %18 = sbr.rel (0) target = $region13
  $region12: #{model_forward.4} parent=0 // pred_region
    _
  $region13: #{model_forward.4} parent=0 // pred_fallthru
    _
  // Predicated region
  $region14: #{model_forward.4} parent=0 // pred_check
    _
  $region15: #{model_forward.4} parent=0 // pred_check_branch
    %20 = sbr.rel (0) target = $region17
  $region16: #{model_forward.4} parent=0 // pred_region
    _
  $region17: #{model_forward.4} parent=0 // pred_fallthru
    _
  // Predicated region
  $region18: #{model_forward.4} parent=0 // pred_check
    _
  $region19: #{model_forward.4} parent=0 // pred_check_branch
    %22 = sbr.rel (0) target = $region21
  $region20: #{model_forward.4} parent=0 // pred_region
    _
  $region21: #{model_forward.4} parent=0 // pred_fallthru
    _
  // Predicated region
  $region22: #{model_forward.4} parent=0 // pred_check
    _
  $region23: #{model_forward.4} parent=0 // pred_check_branch
    %24 = sbr.rel (0) target = $region25
  $region24: #{model_forward.4} parent=0 // pred_region
    _
  $region25: #{model_forward.4} parent=0 // pred_fallthru
    _
  // Predicated region
  $region26: #{model_forward.4} parent=0 // pred_check
    _
  $region27: #{model_forward.4} parent=0 // pred_check_branch
    %26 = sbr.rel (0) target = $region29
  $region28: #{model_forward.4} parent=0 // pred_region
    _
  $region29: #{model_forward.4} parent=0 // pred_fallthru
    _
  // Predicated region
  $region30: #{model_forward.4} parent=0 // pred_check
    _
  $region31: #{model_forward.4} parent=0 // pred_check_branch
    %28 = sbr.rel (0) target = $region33
  $region32: #{model_forward.4} parent=0 // pred_region
    _
  $region33: #{model_forward.4} parent=0 // pred_fallthru
    _
  %v30 = vld [vmem:[%s0] sm:$0xff]
  %v31 = vld [vmem:[%s0 + $0x8] sm:$0xff]
  %v32 = vld [vmem:[%s1] sm:$0x1]
  %v33 = vmul.f32 %v30, %v30
  %v34 = vmul.f32 %v31, %v31
  %35 = vadd.xlane.f32.xlu0 %v33
  %v36 = vpop.xlane.xlu0 %35
  %37 = vadd.xlane.f32.xlu0 %v34
  %v38 = vpop.xlane.xlu0 %37
  %v39 = vrcp.pop 128.0
  %v40 = vmul.f32 %v36, %v39
  %v41 = vmul.f32 %v38, %v39
  %v42 = vadd.f32 %v40, 1e-06
  %v43 = vadd.f32 %v41, 1e-06
  %v44 = vrsqrt.pop %v42
  %v45 = vrsqrt.pop %v43
  %v46 = vmul.f32 %v30, %v44
  %v47 = vmul.f32 %v31, %v45
  %v49 = vlaneseq
  %v50 = vshrl.u32 %v49, 7
  %v51 = vsub.s32 0, %v50
  %v52 = vrot.slane %v32, %v51
  %v54 = vmul.f32 %v46, %v52
  %v55 = vmul.f32 %v47, %v52
  %v56 = vpack.c.bf16 %v55, %v54
  %v57 = vld [vmem:[%s3] sm:$0xff]
  %v58 = vld [vmem:[%s3 + $0x8] sm:$0xf]
  %v59 = vld [vmem:[%s3 + $0xc] sm:$0xff]
  %v60 = vld [vmem:[%s3 + $0x14] sm:$0xf]
  %v61 = vld [vmem:[%s3 + $0x18] sm:$0xff]
  %v62 = vld [vmem:[%s3 + $0x20] sm:$0xf]
  %v63 = vld [vmem:[%s3 + $0x24] sm:$0xff]
  %v64 = vld [vmem:[%s3 + $0x2c] sm:$0xf]
  %v65 = vld [vmem:[%s3 + $0x30] sm:$0xff]
  %v66 = vld [vmem:[%s3 + $0x38] sm:$0xf]
  %v67 = vld [vmem:[%s3 + $0x3c] sm:$0xff]
  %v68 = vld [vmem:[%s3 + $0x44] sm:$0xf]
  %v69 = vld [vmem:[%s3 + $0x48] sm:$0xff]
  %v70 = vld [vmem:[%s3 + $0x50] sm:$0xf]
  %v71 = vld [vmem:[%s3 + $0x54] sm:$0xff]
  %v72 = vld [vmem:[%s3 + $0x5c] sm:$0xf]
  %v73 = vld [vmem:[%s3 + $0x60] sm:$0xff]
  %v74 = vld [vmem:[%s3 + $0x68] sm:$0xf]
  %v75 = vld [vmem:[%s3 + $0x6c] sm:$0xff]
  %v76 = vld [vmem:[%s3 + $0x74] sm:$0xf]
  %v77 = vld [vmem:[%s3 + $0x78] sm:$0xff]
  %v78 = vld [vmem:[%s3 + $0x80] sm:$0xf]
  %v79 = vld [vmem:[%s3 + $0x84] sm:$0xff]
  %v80 = vld [vmem:[%s3 + $0x8c] sm:$0xf]
  %v81 = vld [vmem:[%s3 + $0x90] sm:$0xff]
  %v82 = vld [vmem:[%s3 + $0x98] sm:$0xf]
  %v83 = vld [vmem:[%s3 + $0x9c] sm:$0xff]
  %v84 = vld [vmem:[%s3 + $0xa4] sm:$0xf]
  %v85 = vld [vmem:[%s3 + $0xa8] sm:$0xff]
  %v86 = vld [vmem:[%s3 + $0xb0] sm:$0xf]
  %v87 = vld [vmem:[%s3 + $0xb4] sm:$0xff]
  %v88 = vld [vmem:[%s3 + $0xbc] sm:$0xf]
  %v121 = vunpack.c.l.b16 %v57
  %v122 = vunpack.c.h.b16 %v57
  %v123 = vunpack.c.l.b16 %v58
  %v124 = vunpack.c.l.b16 %v59
  %v125 = vunpack.c.h.b16 %v59
  %v126 = vunpack.c.l.b16 %v60
  %v127 = vunpack.c.l.b16 %v61
  %v128 = vunpack.c.h.b16 %v61
  %v129 = vunpack.c.l.b16 %v62
  %v130 = vunpack.c.l.b16 %v63
  %v131 = vunpack.c.h.b16 %v63
  %v132 = vunpack.c.l.b16 %v64
  %v133 = vunpack.c.l.b16 %v65
  %v134 = vunpack.c.h.b16 %v65
  %v135 = vunpack.c.l.b16 %v66
  %v136 = vunpack.c.l.b16 %v67
  %v137 = vunpack.c.h.b16 %v67
  %v138 = vunpack.c.l.b16 %v68
  %v139 = vunpack.c.l.b16 %v69
  %v140 = vunpack.c.h.b16 %v69
  %v141 = vunpack.c.l.b16 %v70
  %v142 = vunpack.c.l.b16 %v71
  %v143 = vunpack.c.h.b16 %v71
  %v144 = vunpack.c.l.b16 %v72
  %v145 = vunpack.c.l.b16 %v73
  %v146 = vunpack.c.h.b16 %v73
  %v147 = vunpack.c.l.b16 %v74
  %v148 = vunpack.c.l.b16 %v75
  %v149 = vunpack.c.h.b16 %v75
  %v150 = vunpack.c.l.b16 %v76
  %v151 = vunpack.c.l.b16 %v77
  %v152 = vunpack.c.h.b16 %v77
  %v153 = vunpack.c.l.b16 %v78
  %v154 = vunpack.c.l.b16 %v79
  %v155 = vunpack.c.h.b16 %v79
  %v156 = vunpack.c.l.b16 %v80
  %v157 = vunpack.c.l.b16 %v81
  %v158 = vunpack.c.h.b16 %v81
  %v159 = vunpack.c.l.b16 %v82
  %v160 = vunpack.c.l.b16 %v83
  %v161 = vunpack.c.h.b16 %v83
  %v162 = vunpack.c.l.b16 %v84
  %v163 = vunpack.c.l.b16 %v85
  %v164 = vunpack.c.h.b16 %v85
  %v165 = vunpack.c.l.b16 %v86
  %v166 = vunpack.c.l.b16 %v87
  %v167 = vunpack.c.h.b16 %v87
  %v168 = vunpack.c.l.b16 %v88
  %v169 = vpack.c.b16 %v124, %v121
  %v170 = vpack.c.b16 %v125, %v122
  %v171 = vpack.c.b16 %v126, %v123
  %v172 = vpack.c.b16 %v130, %v127
  %v173 = vpack.c.b16 %v131, %v128
  %v174 = vpack.c.b16 %v132, %v129
  %v175 = vpack.c.b16 %v136, %v133
  %v176 = vpack.c.b16 %v137, %v134
  %v177 = vpack.c.b16 %v138, %v135
  %v178 = vpack.c.b16 %v142, %v139
  %v179 = vpack.c.b16 %v143, %v140
  %v180 = vpack.c.b16 %v144, %v141
  %v181 = vpack.c.b16 %v148, %v145
  %v182 = vpack.c.b16 %v149, %v146
  %v183 = vpack.c.b16 %v150, %v147
  %v184 = vpack.c.b16 %v154, %v151
  %v185 = vpack.c.b16 %v155, %v152
  %v186 = vpack.c.b16 %v156, %v153
  %v187 = vpack.c.b16 %v160, %v157
  %v188 = vpack.c.b16 %v161, %v158
  %v189 = vpack.c.b16 %v162, %v159
  %v190 = vpack.c.b16 %v166, %v163
  %v191 = vpack.c.b16 %v167, %v164
  %v192 = vpack.c.b16 %v168, %v165
  %217 = vmatprep.subr.bf16.mxu0 %v170
  %218 = vmatpush1.bf16.msra.mxu0 %v169
  %219 = vmatprep.subr.bf16.mxu0 %v173
  %220 = vmatpush1.bf16.msra.mxu0 %v172
  %221 = vmatprep.subr.bf16.mxu0 %v176
  %222 = vmatpush1.bf16.msra.mxu0 %v175
  %223 = vmatprep.subr.bf16.mxu0 %v179
  %224 = vmatpush1.bf16.msra.mxu0 %v178
  %225 = vmatprep.subr.bf16.mxu0 %v182
  %226 = vmatpush1.bf16.msra.mxu0 %v181
  %227 = vmatprep.subr.bf16.mxu0 %v185
  %228 = vmatpush1.bf16.msra.mxu0 %v184
  %229 = vmatprep.subr.bf16.mxu0 %v188
  %230 = vmatpush1.bf16.msra.mxu0 %v187
  %231 = vmatprep.subr.bf16.mxu0 %v191
  %232 = vmatpush1.bf16.msra.mxu0 %v190
  %233 = vmatprep.subr.bf16.mxu0 0
  %234 = vmatpush1.bf16.msra.mxu0 0
  %235 = vmatprep.subr.bf16.mxu0 0
  %236 = vmatpush1.bf16.msra.mxu0 0
  %237 = vmatprep.subr.bf16.mxu0 0
  %238 = vmatpush1.bf16.msra.mxu0 0
  %239 = vmatprep.subr.bf16.mxu0 0
  %240 = vmatpush1.bf16.msra.mxu0 0
  %241 = vmatprep.subr.bf16.mxu0 0
  %242 = vmatpush1.bf16.msra.mxu0 0
  %243 = vmatprep.subr.bf16.mxu0 0
  %244 = vmatpush1.bf16.msra.mxu0 0
  %245 = vmatprep.subr.bf16.mxu0 0
  %246 = vmatpush1.bf16.msra.mxu0 0
  %247 = vmatprep.subr.bf16.mxu0 0
  %248 = vmatpush1.bf16.msra.mxu0 0
  %249 = vmatprep.mubr.bf16.mxu0 0
  %250 = vmatmul.mubr.bf16.gmra.mrb[0].mxu0 %v56
  %v251 = vpop.f32.mrb[0].mxu0
  %v252 = vadd.f32 0.0, %v251
  %v253 = vpop.f32.mrb[0].mxu0
  %v254 = vadd.f32 0.0, %v253
  %v255 = vpop.f32.mrb[0].mxu0
  %v256 = vadd.f32 0.0, %v255
  %v257 = vpop.f32.mrb[0].mxu0
  %v258 = vadd.f32 0.0, %v257
  %259 = vdwg.mxu0
  %260 = vmatprep.subr.bf16.mxu0 0
  %261 = vmatpush1.bf16.msra.mxu0 %v171
  %262 = vmatprep.subr.bf16.mxu0 0
  %263 = vmatpush1.bf16.msra.mxu0 %v174
  %264 = vmatprep.subr.bf16.mxu0 0
  %265 = vmatpush1.bf16.msra.mxu0 %v177
  %266 = vmatprep.subr.bf16.mxu0 0
  %267 = vmatpush1.bf16.msra.mxu0 %v180
  %268 = vmatprep.subr.bf16.mxu0 0
  %269 = vmatpush1.bf16.msra.mxu0 %v183
  %270 = vmatprep.subr.bf16.mxu0 0
  %271 = vmatpush1.bf16.msra.mxu0 %v186
  %272 = vmatprep.subr.bf16.mxu0 0
  %273 = vmatpush1.bf16.msra.mxu0 %v189
  %274 = vmatprep.subr.bf16.mxu0 0
  %275 = vmatpush1.bf16.msra.mxu0 %v192
  %276 = vmatprep.subr.bf16.mxu0 0
  %277 = vmatpush1.bf16.msra.mxu0 0
  %278 = vmatprep.subr.bf16.mxu0 0
  %279 = vmatpush1.bf16.msra.mxu0 0
  %280 = vmatprep.subr.bf16.mxu0 0
  %281 = vmatpush1.bf16.msra.mxu0 0
  %282 = vmatprep.subr.bf16.mxu0 0
  %283 = vmatpush1.bf16.msra.mxu0 0
  %284 = vmatprep.subr.bf16.mxu0 0
  %285 = vmatpush1.bf16.msra.mxu0 0
  %286 = vmatprep.subr.bf16.mxu0 0
  %287 = vmatpush1.bf16.msra.mxu0 0
  %288 = vmatprep.subr.bf16.mxu0 0
  %289 = vmatpush1.bf16.msra.mxu0 0
  %290 = vmatprep.subr.bf16.mxu0 0
  %291 = vmatpush1.bf16.msra.mxu0 0
  %292 = vmatprep.mubr.bf16.mxu0 0
  %293 = vmatmul.mubr.bf16.gmra.mrb[0].mxu0 %v56
  %v294 = vpop.f32.mrb[0].mxu0
  %v295 = vadd.f32 0.0, %v294
  %v296 = vpop.f32.mrb[0].mxu0
  %v297 = vpop.f32.mrb[0].mxu0
  %v298 = vadd.f32 0.0, %v297
  %v299 = vpop.f32.mrb[0].mxu0
  %300 = vdwg.mxu0
  %v301 = vld [vmem:[%s7] sm:$0xf]
  %302 = vmatprep.subr.bf16.mxu0 %v171
  %303 = vmatpush1.bf16.msra.mxu0 %v170
  %304 = vmatprep.subr.bf16.mxu0 %v174
  %305 = vmatpush1.bf16.msra.mxu0 %v173
  %306 = vmatprep.subr.bf16.mxu0 %v177
  %307 = vmatpush1.bf16.msra.mxu0 %v176
  %308 = vmatprep.subr.bf16.mxu0 %v180
  %309 = vmatpush1.bf16.msra.mxu0 %v179
  %310 = vmatprep.subr.bf16.mxu0 %v183
  %311 = vmatpush1.bf16.msra.mxu0 %v182
  %312 = vmatprep.subr.bf16.mxu0 %v186
  %313 = vmatpush1.bf16.msra.mxu0 %v185
  %314 = vmatprep.subr.bf16.mxu0 %v189
  %315 = vmatpush1.bf16.msra.mxu0 %v188
  %316 = vmatprep.subr.bf16.mxu0 %v192
  %317 = vmatpush1.bf16.msra.mxu0 %v191
  %318 = vmatprep.subr.bf16.mxu0 0
  %319 = vmatpush1.bf16.msra.mxu0 0
  %320 = vmatprep.subr.bf16.mxu0 0
  %321 = vmatpush1.bf16.msra.mxu0 0
  %322 = vmatprep.subr.bf16.mxu0 0
  %323 = vmatpush1.bf16.msra.mxu0 0
  %324 = vmatprep.subr.bf16.mxu0 0
  %325 = vmatpush1.bf16.msra.mxu0 0
  %326 = vmatprep.subr.bf16.mxu0 0
  %327 = vmatpush1.bf16.msra.mxu0 0
  %328 = vmatprep.subr.bf16.mxu0 0
  %329 = vmatpush1.bf16.msra.mxu0 0
  %330 = vmatprep.subr.bf16.mxu0 0
  %331 = vmatpush1.bf16.msra.mxu0 0
  %332 = vmatprep.subr.bf16.mxu0 0
  %333 = vmatpush1.bf16.msra.mxu0 0
  %334 = vmatprep.mubr.bf16.mxu0 0
  %335 = vmatmul.mubr.bf16.gmra.mrb[0].mxu0 %v301
  %v336 = vpop.f32.mrb[0].mxu0
  %v337 = vadd.f32 0.0, %v336
  %v338 = vpop.f32.mrb[0].mxu0
  %v339 = vadd.f32 0.0, %v338
  %v340 = vpop.f32.mrb[0].mxu0
  %v341 = vpop.f32.mrb[0].mxu0
  %342 = vdwg.mxu0
  %v343 = vlaneseq
  %v344 = vshrl.u32 %v343, 7
  %v345 = vadd.s32 %v344, 8
  %v346 = vlaneseq
  %v347 = vand.u32 %v346, 127
  %vm348 = vcmp.le.s32.totalorder %v347, %v345
  %v349 = vpack.c.bf16 %v252, %v252
  %v350 = vpack.c.bf16 %v254, %v337
  %v351 = vpack.c.bf16 %v295, %v339
  %vm352 = vcmask 261120
  %v354 = vsel %vm352, %v349, 0
  %v357 = vsel %vm352, %v350, 0
  %359 = vmatprep.subr.bf16.mxu0 0
  %360 = vmatpush1.bf16.xpose.msra.mxu0 %v357
  %361 = vmatprep.subr.bf16.mxu0 0
  %362 = vmatpush1.bf16.xpose.msra.mxu0 0
  %363 = vmatprep.subr.bf16.mxu0 0
  %364 = vmatpush1.bf16.xpose.msra.mxu0 0
  %365 = vmatprep.subr.bf16.mxu0 0
  %366 = vmatpush1.bf16.xpose.msra.mxu0 0
  %367 = vmatprep.subr.bf16.mxu0 0
  %368 = vmatpush1.bf16.xpose.msra.mxu0 0
  %369 = vmatprep.subr.bf16.mxu0 0
  %370 = vmatpush1.bf16.xpose.msra.mxu0 0
  %371 = vmatprep.subr.bf16.mxu0 0
  %372 = vmatpush1.bf16.xpose.msra.mxu0 0
  %373 = vmatprep.subr.bf16.mxu0 0
  %374 = vmatpush1.bf16.xpose.msra.mxu0 0
  %375 = vmatprep.subr.bf16.mxu0 0
  %376 = vmatpush1.bf16.xpose.msra.mxu0 0
  %377 = vmatprep.subr.bf16.mxu0 0
  %378 = vmatpush1.bf16.xpose.msra.mxu0 0
  %379 = vmatprep.subr.bf16.mxu0 0
  %380 = vmatpush1.bf16.xpose.msra.mxu0 0
  %381 = vmatprep.subr.bf16.mxu0 0
  %382 = vmatpush1.bf16.xpose.msra.mxu0 0
  %383 = vmatprep.subr.bf16.mxu0 0
  %384 = vmatpush1.bf16.xpose.msra.mxu0 0
  %385 = vmatprep.subr.bf16.mxu0 0
  %386 = vmatpush1.bf16.xpose.msra.mxu0 0
  %387 = vmatprep.subr.bf16.mxu0 0
  %388 = vmatpush1.bf16.xpose.msra.mxu0 0
  %389 = vmatprep.subr.bf16.mxu0 0
  %390 = vmatpush1.bf16.xpose.msra.mxu0 0
  %391 = vmatprep.mubr.bf16.mxu0 0
  %392 = vmatmul.mubr.bf16.gmra.mrb[0].mxu0 %v354
  %v393 = vpop.f32.mrb[0].mxu0
  %v394 = vadd.f32 0.0, %v393
  %v395 = vpop.f32.mrb[0].mxu0
  %v396 = vpop.f32.mrb[0].mxu0
  %v397 = vpop.f32.mrb[0].mxu0
  %398 = vdwg.mxu0
  %v399 = vsel %vm348, %v394, -1e+30
  %vm400 = vcmask 130048
  %v401 = vsel %vm400, %v399, -inf
  %402 = vmax.xlane.f32.xlu0 %v401
  %v403 = vpop.xlane.xlu0 %402
  %v404 = vsub.f32 %v399, %v403
  %v405 = vmul.f32 %v404, 1.442695
  %v406 = vpow.pop %v405
  %v407 = vsel %vm400, %v406, 0.0
  %408 = vadd.xlane.f32.xlu0 %v407
  %v409 = vpop.xlane.xlu0 %408
  %v410 = vpack.c.bf16 %v406, %v406
  %v412 = vsel %vm400, %v410, 0
  %414 = vmatprep.subr.bf16.mxu0 0
  %415 = vmatpush1.bf16.msra.mxu0 %v351
  %416 = vmatprep.subr.bf16.mxu0 0
  %417 = vmatpush1.bf16.msra.mxu0 0
  %418 = vmatprep.subr.bf16.mxu0 0
  %419 = vmatpush1.bf16.msra.mxu0 0
  %420 = vmatprep.subr.bf16.mxu0 0
  %421 = vmatpush1.bf16.msra.mxu0 0
  %422 = vmatprep.subr.bf16.mxu0 0
  %423 = vmatpush1.bf16.msra.mxu0 0
  %424 = vmatprep.subr.bf16.mxu0 0
  %425 = vmatpush1.bf16.msra.mxu0 0
  %426 = vmatprep.subr.bf16.mxu0 0
  %427 = vmatpush1.bf16.msra.mxu0 0
  %428 = vmatprep.subr.bf16.mxu0 0
  %429 = vmatpush1.bf16.msra.mxu0 0
  %430 = vmatprep.subr.bf16.mxu0 0
  %431 = vmatpush1.bf16.msra.mxu0 0
  %432 = vmatprep.subr.bf16.mxu0 0
  %433 = vmatpush1.bf16.msra.mxu0 0
  %434 = vmatprep.subr.bf16.mxu0 0
  %435 = vmatpush1.bf16.msra.mxu0 0
  %436 = vmatprep.subr.bf16.mxu0 0
  %437 = vmatpush1.bf16.msra.mxu0 0
  %438 = vmatprep.subr.bf16.mxu0 0
  %439 = vmatpush1.bf16.msra.mxu0 0
  %440 = vmatprep.subr.bf16.mxu0 0
  %441 = vmatpush1.bf16.msra.mxu0 0
  %442 = vmatprep.subr.bf16.mxu0 0
  %443 = vmatpush1.bf16.msra.mxu0 0
  %444 = vmatprep.subr.bf16.mxu0 0
  %445 = vmatpush1.bf16.msra.mxu0 0
  %446 = vmatprep.mubr.bf16.mxu0 0
  %447 = vmatmul.mubr.bf16.gmra.mrb[0].mxu0 %v412
  %v448 = vpop.f32.mrb[0].mxu0
  %v449 = vadd.f32 0.0, %v448
  %v450 = vpop.f32.mrb[0].mxu0
  %v451 = vpop.f32.mrb[0].mxu0
  %v452 = vpop.f32.mrb[0].mxu0
  %453 = vdwg.mxu0
  %v454 = vrcp.pop %v409
  %v455 = vmul.f32 %v449, %v454
  %457 = vrot.lane.b32.xlu0 %v349, 96
  %v458 = vpop.permute.xlu0 %457
  %460 = vrot.lane.b32.xlu0 %v350, 96
  %v461 = vpop.permute.xlu0 %460
  %v463 = vsel %vm352, %v458, 0
  %v466 = vsel %vm352, %v461, 0
  %468 = vmatprep.subr.bf16.mxu0 0
  %469 = vmatpush1.bf16.xpose.msra.mxu0 %v466
  %470 = vmatprep.subr.bf16.mxu0 0
  %471 = vmatpush1.bf16.xpose.msra.mxu0 0
  %472 = vmatprep.subr.bf16.mxu0 0
  %473 = vmatpush1.bf16.xpose.msra.mxu0 0
  %474 = vmatprep.subr.bf16.mxu0 0
  %475 = vmatpush1.bf16.xpose.msra.mxu0 0
  %476 = vmatprep.subr.bf16.mxu0 0
  %477 = vmatpush1.bf16.xpose.msra.mxu0 0
  %478 = vmatprep.subr.bf16.mxu0 0
  %479 = vmatpush1.bf16.xpose.msra.mxu0 0
  %480 = vmatprep.subr.bf16.mxu0 0
  %481 = vmatpush1.bf16.xpose.msra.mxu0 0
  %482 = vmatprep.subr.bf16.mxu0 0
  %483 = vmatpush1.bf16.xpose.msra.mxu0 0
  %484 = vmatprep.subr.bf16.mxu0 0
  %485 = vmatpush1.bf16.xpose.msra.mxu0 0
  %486 = vmatprep.subr.bf16.mxu0 0
  %487 = vmatpush1.bf16.xpose.msra.mxu0 0
  %488 = vmatprep.subr.bf16.mxu0 0
  %489 = vmatpush1.bf16.xpose.msra.mxu0 0
  %490 = vmatprep.subr.bf16.mxu0 0
  %491 = vmatpush1.bf16.xpose.msra.mxu0 0
  %492 = vmatprep.subr.bf16.mxu0 0
  %493 = vmatpush1.bf16.xpose.msra.mxu0 0
  %494 = vmatprep.subr.bf16.mxu0 0
  %495 = vmatpush1.bf16.xpose.msra.mxu0 0
  %496 = vmatprep.subr.bf16.mxu0 0
  %497 = vmatpush1.bf16.xpose.msra.mxu0 0
  %498 = vmatprep.subr.bf16.mxu0 0
  %499 = vmatpush1.bf16.xpose.msra.mxu0 0
  %500 = vmatprep.mubr.bf16.mxu0 0
  %501 = vmatmul.mubr.bf16.gmra.mrb[0].mxu0 %v463
  %v502 = vpop.f32.mrb[0].mxu0
  %v503 = vadd.f32 0.0, %v502
  %v504 = vpop.f32.mrb[0].mxu0
  %v505 = vpop.f32.mrb[0].mxu0
  %v506 = vpop.f32.mrb[0].mxu0
  %507 = vdwg.mxu0
  %v508 = vsel %vm348, %v503, -1e+30
  %v509 = vsel %vm400, %v508, -inf
  %510 = vmax.xlane.f32.xlu0 %v509
  %v511 = vpop.xlane.xlu0 %510
  %v512 = vsub.f32 %v508, %v511
  %v513 = vmul.f32 %v512, 1.442695
  %v514 = vpow.pop %v513
  %v515 = vsel %vm400, %v514, 0.0
  %516 = vadd.xlane.f32.xlu0 %v515
  %v517 = vpop.xlane.xlu0 %516
  %v518 = vpack.c.bf16 %v514, %v514
  %520 = vrot.lane.b32.xlu0 %v351, 96
  %v521 = vpop.permute.xlu0 %520
  %v524 = vsel %vm400, %v518, 0
  %526 = vmatprep.subr.bf16.mxu0 0
  %527 = vmatpush1.bf16.msra.mxu0 %v521
  %528 = vmatprep.subr.bf16.mxu0 0
  %529 = vmatpush1.bf16.msra.mxu0 0
  %530 = vmatprep.subr.bf16.mxu0 0
  %531 = vmatpush1.bf16.msra.mxu0 0
  %532 = vmatprep.subr.bf16.mxu0 0
  %533 = vmatpush1.bf16.msra.mxu0 0
  %534 = vmatprep.subr.bf16.mxu0 0
  %535 = vmatpush1.bf16.msra.mxu0 0
  %536 = vmatprep.subr.bf16.mxu0 0
  %537 = vmatpush1.bf16.msra.mxu0 0
  %538 = vmatprep.subr.bf16.mxu0 0
  %539 = vmatpush1.bf16.msra.mxu0 0
  %540 = vmatprep.subr.bf16.mxu0 0
  %541 = vmatpush1.bf16.msra.mxu0 0
  %542 = vmatprep.subr.bf16.mxu0 0
  %543 = vmatpush1.bf16.msra.mxu0 0
  %544 = vmatprep.subr.bf16.mxu0 0
  %545 = vmatpush1.bf16.msra.mxu0 0
  %546 = vmatprep.subr.bf16.mxu0 0
  %547 = vmatpush1.bf16.msra.mxu0 0
  %548 = vmatprep.subr.bf16.mxu0 0
  %549 = vmatpush1.bf16.msra.mxu0 0
  %550 = vmatprep.subr.bf16.mxu0 0
  %551 = vmatpush1.bf16.msra.mxu0 0
  %552 = vmatprep.subr.bf16.mxu0 0
  %553 = vmatpush1.bf16.msra.mxu0 0
  %554 = vmatprep.subr.bf16.mxu0 0
  %555 = vmatpush1.bf16.msra.mxu0 0
  %556 = vmatprep.subr.bf16.mxu0 0
  %557 = vmatpush1.bf16.msra.mxu0 0
  %558 = vmatprep.mubr.bf16.mxu0 0
  %559 = vmatmul.mubr.bf16.gmra.mrb[0].mxu0 %v524
  %v560 = vpop.f32.mrb[0].mxu0
  %v561 = vadd.f32 0.0, %v560
  %v562 = vpop.f32.mrb[0].mxu0
  %v563 = vpop.f32.mrb[0].mxu0
  %v564 = vpop.f32.mrb[0].mxu0
  %565 = vdwg.mxu0
  %v566 = vrcp.pop %v517
  %v567 = vmul.f32 %v561, %v566
  %568 = vrot.lane.b32.xlu0 %v349, 64
  %v569 = vpop.permute.xlu0 %568
  %570 = vrot.lane.b32.xlu0 %v350, 64
  %v571 = vpop.permute.xlu0 %570
  %v573 = vsel %vm352, %v569, 0
  %v576 = vsel %vm352, %v571, 0
  %578 = vmatprep.subr.bf16.mxu0 0
  %579 = vmatpush1.bf16.xpose.msra.mxu0 %v576
  %580 = vmatprep.subr.bf16.mxu0 0
  %581 = vmatpush1.bf16.xpose.msra.mxu0 0
  %582 = vmatprep.subr.bf16.mxu0 0
  %583 = vmatpush1.bf16.xpose.msra.mxu0 0
  %584 = vmatprep.subr.bf16.mxu0 0
  %585 = vmatpush1.bf16.xpose.msra.mxu0 0
  %586 = vmatprep.subr.bf16.mxu0 0
  %587 = vmatpush1.bf16.xpose.msra.mxu0 0
  %588 = vmatprep.subr.bf16.mxu0 0
  %589 = vmatpush1.bf16.xpose.msra.mxu0 0
  %590 = vmatprep.subr.bf16.mxu0 0
  %591 = vmatpush1.bf16.xpose.msra.mxu0 0
  %592 = vmatprep.subr.bf16.mxu0 0
  %593 = vmatpush1.bf16.xpose.msra.mxu0 0
  %594 = vmatprep.subr.bf16.mxu0 0
  %595 = vmatpush1.bf16.xpose.msra.mxu0 0
  %596 = vmatprep.subr.bf16.mxu0 0
  %597 = vmatpush1.bf16.xpose.msra.mxu0 0
  %598 = vmatprep.subr.bf16.mxu0 0
  %599 = vmatpush1.bf16.xpose.msra.mxu0 0
  %600 = vmatprep.subr.bf16.mxu0 0
  %601 = vmatpush1.bf16.xpose.msra.mxu0 0
  %602 = vmatprep.subr.bf16.mxu0 0
  %603 = vmatpush1.bf16.xpose.msra.mxu0 0
  %604 = vmatprep.subr.bf16.mxu0 0
  %605 = vmatpush1.bf16.xpose.msra.mxu0 0
  %606 = vmatprep.subr.bf16.mxu0 0
  %607 = vmatpush1.bf16.xpose.msra.mxu0 0
  %608 = vmatprep.subr.bf16.mxu0 0
  %609 = vmatpush1.bf16.xpose.msra.mxu0 0
  %610 = vmatprep.mubr.bf16.mxu0 0
  %611 = vmatmul.mubr.bf16.gmra.mrb[0].mxu0 %v573
  %v612 = vpop.f32.mrb[0].mxu0
  %v613 = vadd.f32 0.0, %v612
  %v614 = vpop.f32.mrb[0].mxu0
  %v615 = vpop.f32.mrb[0].mxu0
  %v616 = vpop.f32.mrb[0].mxu0
  %617 = vdwg.mxu0
  %v618 = vsel %vm348, %v613, -1e+30
  %v619 = vsel %vm400, %v618, -inf
  %620 = vmax.xlane.f32.xlu0 %v619
  %v621 = vpop.xlane.xlu0 %620
  %v622 = vsub.f32 %v618, %v621
  %v623 = vmul.f32 %v622, 1.442695
  %v624 = vpow.pop %v623
  %v625 = vsel %vm400, %v624, 0.0
  %626 = vadd.xlane.f32.xlu0 %v625
  %v627 = vpop.xlane.xlu0 %626
  %v628 = vpack.c.bf16 %v624, %v624
  %629 = vrot.lane.b32.xlu0 %v351, 64
  %v630 = vpop.permute.xlu0 %629
  %v633 = vsel %vm400, %v628, 0
  %635 = vmatprep.subr.bf16.mxu0 0
  %636 = vmatpush1.bf16.msra.mxu0 %v630
  %637 = vmatprep.subr.bf16.mxu0 0
  %638 = vmatpush1.bf16.msra.mxu0 0
  %639 = vmatprep.subr.bf16.mxu0 0
  %640 = vmatpush1.bf16.msra.mxu0 0
  %641 = vmatprep.subr.bf16.mxu0 0
  %642 = vmatpush1.bf16.msra.mxu0 0
  %643 = vmatprep.subr.bf16.mxu0 0
  %644 = vmatpush1.bf16.msra.mxu0 0
  %645 = vmatprep.subr.bf16.mxu0 0
  %646 = vmatpush1.bf16.msra.mxu0 0
  %647 = vmatprep.subr.bf16.mxu0 0
  %648 = vmatpush1.bf16.msra.mxu0 0
  %649 = vmatprep.subr.bf16.mxu0 0
  %650 = vmatpush1.bf16.msra.mxu0 0
  %651 = vmatprep.subr.bf16.mxu0 0
  %652 = vmatpush1.bf16.msra.mxu0 0
  %653 = vmatprep.subr.bf16.mxu0 0
  %654 = vmatpush1.bf16.msra.mxu0 0
  %655 = vmatprep.subr.bf16.mxu0 0
  %656 = vmatpush1.bf16.msra.mxu0 0
  %657 = vmatprep.subr.bf16.mxu0 0
  %658 = vmatpush1.bf16.msra.mxu0 0
  %659 = vmatprep.subr.bf16.mxu0 0
  %660 = vmatpush1.bf16.msra.mxu0 0
  %661 = vmatprep.subr.bf16.mxu0 0
  %662 = vmatpush1.bf16.msra.mxu0 0
  %663 = vmatprep.subr.bf16.mxu0 0
  %664 = vmatpush1.bf16.msra.mxu0 0
  %665 = vmatprep.subr.bf16.mxu0 0
  %666 = vmatpush1.bf16.msra.mxu0 0
  %667 = vmatprep.mubr.bf16.mxu0 0
  %668 = vmatmul.mubr.bf16.gmra.mrb[0].mxu0 %v633
  %v669 = vpop.f32.mrb[0].mxu0
  %v670 = vadd.f32 0.0, %v669
  %v671 = vpop.f32.mrb[0].mxu0
  %v672 = vpop.f32.mrb[0].mxu0
  %v673 = vpop.f32.mrb[0].mxu0
  %674 = vdwg.mxu0
  %v675 = vrcp.pop %v627
  %v676 = vmul.f32 %v670, %v675
  %677 = vrot.lane.b32.xlu0 %v349, 32
  %v678 = vpop.permute.xlu0 %677
  %679 = vrot.lane.b32.xlu0 %v350, 32
  %v680 = vpop.permute.xlu0 %679
  %v682 = vsel %vm352, %v678, 0
  %v685 = vsel %vm352, %v680, 0
  %687 = vmatprep.subr.bf16.mxu0 0
  %688 = vmatpush1.bf16.xpose.msra.mxu0 %v685
  %689 = vmatprep.subr.bf16.mxu0 0
  %690 = vmatpush1.bf16.xpose.msra.mxu0 0
  %691 = vmatprep.subr.bf16.mxu0 0
  %692 = vmatpush1.bf16.xpose.msra.mxu0 0
  %693 = vmatprep.subr.bf16.mxu0 0
  %694 = vmatpush1.bf16.xpose.msra.mxu0 0
  %695 = vmatprep.subr.bf16.mxu0 0
  %696 = vmatpush1.bf16.xpose.msra.mxu0 0
  %697 = vmatprep.subr.bf16.mxu0 0
  %698 = vmatpush1.bf16.xpose.msra.mxu0 0
  %699 = vmatprep.subr.bf16.mxu0 0
  %700 = vmatpush1.bf16.xpose.msra.mxu0 0
  %701 = vmatprep.subr.bf16.mxu0 0
  %702 = vmatpush1.bf16.xpose.msra.mxu0 0
  %703 = vmatprep.subr.bf16.mxu0 0
  %704 = vmatpush1.bf16.xpose.msra.mxu0 0
  %705 = vmatprep.subr.bf16.mxu0 0
  %706 = vmatpush1.bf16.xpose.msra.mxu0 0
  %707 = vmatprep.subr.bf16.mxu0 0
  %708 = vmatpush1.bf16.xpose.msra.mxu0 0
  %709 = vmatprep.subr.bf16.mxu0 0
  %710 = vmatpush1.bf16.xpose.msra.mxu0 0
  %711 = vmatprep.subr.bf16.mxu0 0
  %712 = vmatpush1.bf16.xpose.msra.mxu0 0
  %713 = vmatprep.subr.bf16.mxu0 0
  %714 = vmatpush1.bf16.xpose.msra.mxu0 0
  %715 = vmatprep.subr.bf16.mxu0 0
  %716 = vmatpush1.bf16.xpose.msra.mxu0 0
  %717 = vmatprep.subr.bf16.mxu0 0
  %718 = vmatpush1.bf16.xpose.msra.mxu0 0
  %719 = vmatprep.mubr.bf16.mxu0 0
  %720 = vmatmul.mubr.bf16.gmra.mrb[0].mxu0 %v682
  %v721 = vpop.f32.mrb[0].mxu0
  %v722 = vadd.f32 0.0, %v721
  %v723 = vpop.f32.mrb[0].mxu0
  %v724 = vpop.f32.mrb[0].mxu0
  %v725 = vpop.f32.mrb[0].mxu0
  %726 = vdwg.mxu0
  %v727 = vsel %vm348, %v722, -1e+30
  %v728 = vsel %vm400, %v727, -inf
  %729 = vmax.xlane.f32.xlu0 %v728
  %v730 = vpop.xlane.xlu0 %729
  %v731 = vsub.f32 %v727, %v730
  %v732 = vmul.f32 %v731, 1.442695
  %v733 = vpow.pop %v732
  %v734 = vsel %vm400, %v733, 0.0
  %735 = vadd.xlane.f32.xlu0 %v734
  %v736 = vpop.xlane.xlu0 %735
  %v737 = vpack.c.bf16 %v733, %v733
  %738 = vrot.lane.b32.xlu0 %v351, 32
  %v739 = vpop.permute.xlu0 %738
  %v742 = vsel %vm400, %v737, 0
  %744 = vmatprep.subr.bf16.mxu0 0
  %745 = vmatpush1.bf16.msra.mxu0 %v739
  %746 = vmatprep.subr.bf16.mxu0 0
  %747 = vmatpush1.bf16.msra.mxu0 0
  %748 = vmatprep.subr.bf16.mxu0 0
  %749 = vmatpush1.bf16.msra.mxu0 0
  %750 = vmatprep.subr.bf16.mxu0 0
  %751 = vmatpush1.bf16.msra.mxu0 0
  %752 = vmatprep.subr.bf16.mxu0 0
  %753 = vmatpush1.bf16.msra.mxu0 0
  %754 = vmatprep.subr.bf16.mxu0 0
  %755 = vmatpush1.bf16.msra.mxu0 0
  %756 = vmatprep.subr.bf16.mxu0 0
  %757 = vmatpush1.bf16.msra.mxu0 0
  %758 = vmatprep.subr.bf16.mxu0 0
  %759 = vmatpush1.bf16.msra.mxu0 0
  %760 = vmatprep.subr.bf16.mxu0 0
  %761 = vmatpush1.bf16.msra.mxu0 0
  %762 = vmatprep.subr.bf16.mxu0 0
  %763 = vmatpush1.bf16.msra.mxu0 0
  %764 = vmatprep.subr.bf16.mxu0 0
  %765 = vmatpush1.bf16.msra.mxu0 0
  %766 = vmatprep.subr.bf16.mxu0 0
  %767 = vmatpush1.bf16.msra.mxu0 0
  %768 = vmatprep.subr.bf16.mxu0 0
  %769 = vmatpush1.bf16.msra.mxu0 0
  %770 = vmatprep.subr.bf16.mxu0 0
  %771 = vmatpush1.bf16.msra.mxu0 0
  %772 = vmatprep.subr.bf16.mxu0 0
  %773 = vmatpush1.bf16.msra.mxu0 0
  %774 = vmatprep.subr.bf16.mxu0 0
  %775 = vmatpush1.bf16.msra.mxu0 0
  %776 = vmatprep.mubr.bf16.mxu0 0
  %777 = vmatmul.mubr.bf16.gmra.mrb[0].mxu0 %v742
  %v778 = vpop.f32.mrb[0].mxu0
  %v779 = vadd.f32 0.0, %v778
  %v780 = vpop.f32.mrb[0].mxu0
  %v781 = vpop.f32.mrb[0].mxu0
  %v782 = vpop.f32.mrb[0].mxu0
  %783 = vdwg.mxu0
  %v784 = vrcp.pop %v736
  %v785 = vmul.f32 %v779, %v784
  %787 = vrot.lane.b32.xlu0 %v567, 32
  %v788 = vpop.permute.xlu0 %787
  %791 = vrot.lane.b32.xlu0 %v676, 64
  %v792 = vpop.permute.xlu0 %791
  %795 = vrot.lane.b32.xlu0 %v785, 96
  %v796 = vpop.permute.xlu0 %795
  %v798 = vsel %vm352, %v455, %v788
  %vm799 = vcmask 523264
  %v800 = vsel %vm799, %v798, %v792
  %vm801 = vcmask 785408
  %v802 = vsel %vm801, %v800, %v796
  %v803 = vpack.c.bf16 %v256, %v256
  %v804 = vpack.c.bf16 %v258, %v337
  %v805 = vpack.c.bf16 %v298, %v339
  %v807 = vsel %vm352, %v803, 0
  %v810 = vsel %vm352, %v804, 0
  %812 = vmatprep.subr.bf16.mxu0 0
  %813 = vmatpush1.bf16.xpose.msra.mxu0 %v810
  %814 = vmatprep.subr.bf16.mxu0 0
  %815 = vmatpush1.bf16.xpose.msra.mxu0 0
  %816 = vmatprep.subr.bf16.mxu0 0
  %817 = vmatpush1.bf16.xpose.msra.mxu0 0
  %818 = vmatprep.subr.bf16.mxu0 0
  %819 = vmatpush1.bf16.xpose.msra.mxu0 0
  %820 = vmatprep.subr.bf16.mxu0 0
  %821 = vmatpush1.bf16.xpose.msra.mxu0 0
  %822 = vmatprep.subr.bf16.mxu0 0
  %823 = vmatpush1.bf16.xpose.msra.mxu0 0
  %824 = vmatprep.subr.bf16.mxu0 0
  %825 = vmatpush1.bf16.xpose.msra.mxu0 0
  %826 = vmatprep.subr.bf16.mxu0 0
  %827 = vmatpush1.bf16.xpose.msra.mxu0 0
  %828 = vmatprep.subr.bf16.mxu0 0
  %829 = vmatpush1.bf16.xpose.msra.mxu0 0
  %830 = vmatprep.subr.bf16.mxu0 0
  %831 = vmatpush1.bf16.xpose.msra.mxu0 0
  %832 = vmatprep.subr.bf16.mxu0 0
  %833 = vmatpush1.bf16.xpose.msra.mxu0 0
  %834 = vmatprep.subr.bf16.mxu0 0
  %835 = vmatpush1.bf16.xpose.msra.mxu0 0
  %836 = vmatprep.subr.bf16.mxu0 0
  %837 = vmatpush1.bf16.xpose.msra.mxu0 0
  %838 = vmatprep.subr.bf16.mxu0 0
  %839 = vmatpush1.bf16.xpose.msra.mxu0 0
  %840 = vmatprep.subr.bf16.mxu0 0
  %841 = vmatpush1.bf16.xpose.msra.mxu0 0
  %842 = vmatprep.subr.bf16.mxu0 0
  %843 = vmatpush1.bf16.xpose.msra.mxu0 0
  %844 = vmatprep.mubr.bf16.mxu0 0
  %845 = vmatmul.mubr.bf16.gmra.mrb[0].mxu0 %v807
  %v846 = vpop.f32.mrb[0].mxu0
  %v847 = vadd.f32 0.0, %v846
  %v848 = vpop.f32.mrb[0].mxu0
  %v849 = vpop.f32.mrb[0].mxu0
  %v850 = vpop.f32.mrb[0].mxu0
  %851 = vdwg.mxu0
  %v852 = vsel %vm348, %v847, -1e+30
  %v853 = vsel %vm400, %v852, -inf
  %854 = vmax.xlane.f32.xlu0 %v853
  %v855 = vpop.xlane.xlu0 %854
  %v856 = vsub.f32 %v852, %v855
  %v857 = vmul.f32 %v856, 1.442695
  %v858 = vpow.pop %v857
  %v859 = vsel %vm400, %v858, 0.0
  %860 = vadd.xlane.f32.xlu0 %v859
  %v861 = vpop.xlane.xlu0 %860
  %v862 = vpack.c.bf16 %v858, %v858
  %v864 = vsel %vm400, %v862, 0
  %866 = vmatprep.subr.bf16.mxu0 0
  %867 = vmatpush1.bf16.msra.mxu0 %v805
  %868 = vmatprep.subr.bf16.mxu0 0
  %869 = vmatpush1.bf16.msra.mxu0 0
  %870 = vmatprep.subr.bf16.mxu0 0
  %871 = vmatpush1.bf16.msra.mxu0 0
  %872 = vmatprep.subr.bf16.mxu0 0
  %873 = vmatpush1.bf16.msra.mxu0 0
  %874 = vmatprep.subr.bf16.mxu0 0
  %875 = vmatpush1.bf16.msra.mxu0 0
  %876 = vmatprep.subr.bf16.mxu0 0
  %877 = vmatpush1.bf16.msra.mxu0 0
  %878 = vmatprep.subr.bf16.mxu0 0
  %879 = vmatpush1.bf16.msra.mxu0 0
  %880 = vmatprep.subr.bf16.mxu0 0
  %881 = vmatpush1.bf16.msra.mxu0 0
  %882 = vmatprep.subr.bf16.mxu0 0
  %883 = vmatpush1.bf16.msra.mxu0 0
  %884 = vmatprep.subr.bf16.mxu0 0
  %885 = vmatpush1.bf16.msra.mxu0 0
  %886 = vmatprep.subr.bf16.mxu0 0
  %887 = vmatpush1.bf16.msra.mxu0 0
  %888 = vmatprep.subr.bf16.mxu0 0
  %889 = vmatpush1.bf16.msra.mxu0 0
  %890 = vmatprep.subr.bf16.mxu0 0
  %891 = vmatpush1.bf16.msra.mxu0 0
  %892 = vmatprep.subr.bf16.mxu0 0
  %893 = vmatpush1.bf16.msra.mxu0 0
  %894 = vmatprep.subr.bf16.mxu0 0
  %895 = vmatpush1.bf16.msra.mxu0 0
  %896 = vmatprep.subr.bf16.mxu0 0
  %897 = vmatpush1.bf16.msra.mxu0 0
  %898 = vmatprep.mubr.bf16.mxu0 0
  %899 = vmatmul.mubr.bf16.gmra.mrb[0].mxu0 %v864
  %v900 = vpop.f32.mrb[0].mxu0
  %v901 = vadd.f32 0.0, %v900
  %v902 = vpop.f32.mrb[0].mxu0
  %v903 = vpop.f32.mrb[0].mxu0
  %v904 = vpop.f32.mrb[0].mxu0
  %905 = vdwg.mxu0
  %v906 = vrcp.pop %v861
  %v907 = vmul.f32 %v901, %v906
  %909 = vrot.lane.b32.xlu0 %v803, 96
  %v910 = vpop.permute.xlu0 %909
  %912 = vrot.lane.b32.xlu0 %v804, 96
  %v913 = vpop.permute.xlu0 %912
  %v915 = vsel %vm352, %v910, 0
  %v918 = vsel %vm352, %v913, 0
  %920 = vmatprep.subr.bf16.mxu0 0
  %921 = vmatpush1.bf16.xpose.msra.mxu0 %v918
  %922 = vmatprep.subr.bf16.mxu0 0
  %923 = vmatpush1.bf16.xpose.msra.mxu0 0
  %924 = vmatprep.subr.bf16.mxu0 0
  %925 = vmatpush1.bf16.xpose.msra.mxu0 0
  %926 = vmatprep.subr.bf16.mxu0 0
  %927 = vmatpush1.bf16.xpose.msra.mxu0 0
  %928 = vmatprep.subr.bf16.mxu0 0
  %929 = vmatpush1.bf16.xpose.msra.mxu0 0
  %930 = vmatprep.subr.bf16.mxu0 0
  %931 = vmatpush1.bf16.xpose.msra.mxu0 0
  %932 = vmatprep.subr.bf16.mxu0 0
  %933 = vmatpush1.bf16.xpose.msra.mxu0 0
  %934 = vmatprep.subr.bf16.mxu0 0
  %935 = vmatpush1.bf16.xpose.msra.mxu0 0
  %936 = vmatprep.subr.bf16.mxu0 0
  %937 = vmatpush1.bf16.xpose.msra.mxu0 0
  %938 = vmatprep.subr.bf16.mxu0 0
  %939 = vmatpush1.bf16.xpose.msra.mxu0 0
  %940 = vmatprep.subr.bf16.mxu0 0
  %941 = vmatpush1.bf16.xpose.msra.mxu0 0
  %942 = vmatprep.subr.bf16.mxu0 0
  %943 = vmatpush1.bf16.xpose.msra.mxu0 0
  %944 = vmatprep.subr.bf16.mxu0 0
  %945 = vmatpush1.bf16.xpose.msra.mxu0 0
  %946 = vmatprep.subr.bf16.mxu0 0
  %947 = vmatpush1.bf16.xpose.msra.mxu0 0
  %948 = vmatprep.subr.bf16.mxu0 0
  %949 = vmatpush1.bf16.xpose.msra.mxu0 0
  %950 = vmatprep.subr.bf16.mxu0 0
  %951 = vmatpush1.bf16.xpose.msra.mxu0 0
  %952 = vmatprep.mubr.bf16.mxu0 0
  %953 = vmatmul.mubr.bf16.gmra.mrb[0].mxu0 %v915
  %v954 = vpop.f32.mrb[0].mxu0
  %v955 = vadd.f32 0.0, %v954
  %v956 = vpop.f32.mrb[0].mxu0
  %v957 = vpop.f32.mrb[0].mxu0
  %v958 = vpop.f32.mrb[0].mxu0
  %959 = vdwg.mxu0
  %v960 = vsel %vm348, %v955, -1e+30
  %v961 = vsel %vm400, %v960, -inf
  %962 = vmax.xlane.f32.xlu0 %v961
  %v963 = vpop.xlane.xlu0 %962
  %v964 = vsub.f32 %v960, %v963
  %v965 = vmul.f32 %v964, 1.442695
  %v966 = vpow.pop %v965
  %v967 = vsel %vm400, %v966, 0.0
  %968 = vadd.xlane.f32.xlu0 %v967
  %v969 = vpop.xlane.xlu0 %968
  %v970 = vpack.c.bf16 %v966, %v966
  %972 = vrot.lane.b32.xlu0 %v805, 96
  %v973 = vpop.permute.xlu0 %972
  %v976 = vsel %vm400, %v970, 0
  %978 = vmatprep.subr.bf16.mxu0 0
  %979 = vmatpush1.bf16.msra.mxu0 %v973
  %980 = vmatprep.subr.bf16.mxu0 0
  %981 = vmatpush1.bf16.msra.mxu0 0
  %982 = vmatprep.subr.bf16.mxu0 0
  %983 = vmatpush1.bf16.msra.mxu0 0
  %984 = vmatprep.subr.bf16.mxu0 0
  %985 = vmatpush1.bf16.msra.mxu0 0
  %986 = vmatprep.subr.bf16.mxu0 0
  %987 = vmatpush1.bf16.msra.mxu0 0
  %988 = vmatprep.subr.bf16.mxu0 0
  %989 = vmatpush1.bf16.msra.mxu0 0
  %990 = vmatprep.subr.bf16.mxu0 0
  %991 = vmatpush1.bf16.msra.mxu0 0
  %992 = vmatprep.subr.bf16.mxu0 0
  %993 = vmatpush1.bf16.msra.mxu0 0
  %994 = vmatprep.subr.bf16.mxu0 0
  %995 = vmatpush1.bf16.msra.mxu0 0
  %996 = vmatprep.subr.bf16.mxu0 0
  %997 = vmatpush1.bf16.msra.mxu0 0
  %998 = vmatprep.subr.bf16.mxu0 0
  %999 = vmatpush1.bf16.msra.mxu0 0
  %1000 = vmatprep.subr.bf16.mxu0 0
  %1001 = vmatpush1.bf16.msra.mxu0 0
  %1002 = vmatprep.subr.bf16.mxu0 0
  %1003 = vmatpush1.bf16.msra.mxu0 0
  %1004 = vmatprep.subr.bf16.mxu0 0
  %1005 = vmatpush1.bf16.msra.mxu0 0
  %1006 = vmatprep.subr.bf16.mxu0 0
  %1007 = vmatpush1.bf16.msra.mxu0 0
  %1008 = vmatprep.subr.bf16.mxu0 0
  %1009 = vmatpush1.bf16.msra.mxu0 0
  %1010 = vmatprep.mubr.bf16.mxu0 0
  %1011 = vmatmul.mubr.bf16.gmra.mrb[0].mxu0 %v976
  %v1012 = vpop.f32.mrb[0].mxu0
  %v1013 = vadd.f32 0.0, %v1012
  %v1014 = vpop.f32.mrb[0].mxu0
  %v1015 = vpop.f32.mrb[0].mxu0
  %v1016 = vpop.f32.mrb[0].mxu0
  %1017 = vdwg.mxu0
  %v1018 = vrcp.pop %v969
  %v1019 = vmul.f32 %v1013, %v1018
  %1020 = vrot.lane.b32.xlu0 %v803, 64
  %v1021 = vpop.permute.xlu0 %1020
  %1022 = vrot.lane.b32.xlu0 %v804, 64
  %v1023 = vpop.permute.xlu0 %1022
  %v1025 = vsel %vm352, %v1021, 0
  %v1028 = vsel %vm352, %v1023, 0
  %1030 = vmatprep.subr.bf16.mxu0 0
  %1031 = vmatpush1.bf16.xpose.msra.mxu0 %v1028
  %1032 = vmatprep.subr.bf16.mxu0 0
  %1033 = vmatpush1.bf16.xpose.msra.mxu0 0
  %1034 = vmatprep.subr.bf16.mxu0 0
  %1035 = vmatpush1.bf16.xpose.msra.mxu0 0
  %1036 = vmatprep.subr.bf16.mxu0 0
  %1037 = vmatpush1.bf16.xpose.msra.mxu0 0
  %1038 = vmatprep.subr.bf16.mxu0 0
  %1039 = vmatpush1.bf16.xpose.msra.mxu0 0
  %1040 = vmatprep.subr.bf16.mxu0 0
  %1041 = vmatpush1.bf16.xpose.msra.mxu0 0
  %1042 = vmatprep.subr.bf16.mxu0 0
  %1043 = vmatpush1.bf16.xpose.msra.mxu0 0
  %1044 = vmatprep.subr.bf16.mxu0 0
  %1045 = vmatpush1.bf16.xpose.msra.mxu0 0
  %1046 = vmatprep.subr.bf16.mxu0 0
  %1047 = vmatpush1.bf16.xpose.msra.mxu0 0
  %1048 = vmatprep.subr.bf16.mxu0 0
  %1049 = vmatpush1.bf16.xpose.msra.mxu0 0
  %1050 = vmatprep.subr.bf16.mxu0 0
  %1051 = vmatpush1.bf16.xpose.msra.mxu0 0
  %1052 = vmatprep.subr.bf16.mxu0 0
  %1053 = vmatpush1.bf16.xpose.msra.mxu0 0
  %1054 = vmatprep.subr.bf16.mxu0 0
  %1055 = vmatpush1.bf16.xpose.msra.mxu0 0
  %1056 = vmatprep.subr.bf16.mxu0 0
  %1057 = vmatpush1.bf16.xpose.msra.mxu0 0
  %1058 = vmatprep.subr.bf16.mxu0 0
  %1059 = vmatpush1.bf16.xpose.msra.mxu0 0
  %1060 = vmatprep.subr.bf16.mxu0 0
  %1061 = vmatpush1.bf16.xpose.msra.mxu0 0
  %1062 = vmatprep.mubr.bf16.mxu0 0
  %1063 = vmatmul.mubr.bf16.gmra.mrb[0].mxu0 %v1025
  %v1064 = vpop.f32.mrb[0].mxu0
  %v1065 = vadd.f32 0.0, %v1064
  %v1066 = vpop.f32.mrb[0].mxu0
  %v1067 = vpop.f32.mrb[0].mxu0
  %v1068 = vpop.f32.mrb[0].mxu0
  %1069 = vdwg.mxu0
  %v1070 = vsel %vm348, %v1065, -1e+30
  %v1071 = vsel %vm400, %v1070, -inf
  %1072 = vmax.xlane.f32.xlu0 %v1071
  %v1073 = vpop.xlane.xlu0 %1072
  %v1074 = vsub.f32 %v1070, %v1073
  %v1075 = vmul.f32 %v1074, 1.442695
  %v1076 = vpow.pop %v1075
  %v1077 = vsel %vm400, %v1076, 0.0
  %1078 = vadd.xlane.f32.xlu0 %v1077
  %v1079 = vpop.xlane.xlu0 %1078
  %v1080 = vpack.c.bf16 %v1076, %v1076
  %1081 = vrot.lane.b32.xlu0 %v805, 64
  %v1082 = vpop.permute.xlu0 %1081
  %v1085 = vsel %vm400, %v1080, 0
  %1087 = vmatprep.subr.bf16.mxu0 0
  %1088 = vmatpush1.bf16.msra.mxu0 %v1082
  %1089 = vmatprep.subr.bf16.mxu0 0
  %1090 = vmatpush1.bf16.msra.mxu0 0
  %1091 = vmatprep.subr.bf16.mxu0 0
  %1092 = vmatpush1.bf16.msra.mxu0 0
  %1093 = vmatprep.subr.bf16.mxu0 0
  %1094 = vmatpush1.bf16.msra.mxu0 0
  %1095 = vmatprep.subr.bf16.mxu0 0
  %1096 = vmatpush1.bf16.msra.mxu0 0
  %1097 = vmatprep.subr.bf16.mxu0 0
  %1098 = vmatpush1.bf16.msra.mxu0 0
  %1099 = vmatprep.subr.bf16.mxu0 0
  %1100 = vmatpush1.bf16.msra.mxu0 0
  %1101 = vmatprep.subr.bf16.mxu0 0
  %1102 = vmatpush1.bf16.msra.mxu0 0
  %1103 = vmatprep.subr.bf16.mxu0 0
  %1104 = vmatpush1.bf16.msra.mxu0 0
  %1105 = vmatprep.subr.bf16.mxu0 0
  %1106 = vmatpush1.bf16.msra.mxu0 0
  %1107 = vmatprep.subr.bf16.mxu0 0
  %1108 = vmatpush1.bf16.msra.mxu0 0
  %1109 = vmatprep.subr.bf16.mxu0 0
  %1110 = vmatpush1.bf16.msra.mxu0 0
  %1111 = vmatprep.subr.bf16.mxu0 0
  %1112 = vmatpush1.bf16.msra.mxu0 0
  %1113 = vmatprep.subr.bf16.mxu0 0
  %1114 = vmatpush1.bf16.msra.mxu0 0
  %1115 = vmatprep.subr.bf16.mxu0 0
  %1116 = vmatpush1.bf16.msra.mxu0 0
  %1117 = vmatprep.subr.bf16.mxu0 0
  %1118 = vmatpush1.bf16.msra.mxu0 0
  %1119 = vmatprep.mubr.bf16.mxu0 0
  %1120 = vmatmul.mubr.bf16.gmra.mrb[0].mxu0 %v1085
  %v1121 = vpop.f32.mrb[0].mxu0
  %v1122 = vadd.f32 0.0, %v1121
  %v1123 = vpop.f32.mrb[0].mxu0
  %v1124 = vpop.f32.mrb[0].mxu0
  %v1125 = vpop.f32.mrb[0].mxu0
  %1126 = vdwg.mxu0
  %v1127 = vrcp.pop %v1079
  %v1128 = vmul.f32 %v1122, %v1127
  %1129 = vrot.lane.b32.xlu0 %v803, 32
  %v1130 = vpop.permute.xlu0 %1129
  %1131 = vrot.lane.b32.xlu0 %v804, 32
  %v1132 = vpop.permute.xlu0 %1131
  %v1134 = vsel %vm352, %v1130, 0
  %v1137 = vsel %vm352, %v1132, 0
  %1139 = vmatprep.subr.bf16.mxu0 0
  %1140 = vmatpush1.bf16.xpose.msra.mxu0 %v1137
  %1141 = vmatprep.subr.bf16.mxu0 0
  %1142 = vmatpush1.bf16.xpose.msra.mxu0 0
  %1143 = vmatprep.subr.bf16.mxu0 0
  %1144 = vmatpush1.bf16.xpose.msra.mxu0 0
  %1145 = vmatprep.subr.bf16.mxu0 0
  %1146 = vmatpush1.bf16.xpose.msra.mxu0 0
  %1147 = vmatprep.subr.bf16.mxu0 0
  %1148 = vmatpush1.bf16.xpose.msra.mxu0 0
  %1149 = vmatprep.subr.bf16.mxu0 0
  %1150 = vmatpush1.bf16.xpose.msra.mxu0 0
  %1151 = vmatprep.subr.bf16.mxu0 0
  %1152 = vmatpush1.bf16.xpose.msra.mxu0 0
  %1153 = vmatprep.subr.bf16.mxu0 0
  %1154 = vmatpush1.bf16.xpose.msra.mxu0 0
  %1155 = vmatprep.subr.bf16.mxu0 0
  %1156 = vmatpush1.bf16.xpose.msra.mxu0 0
  %1157 = vmatprep.subr.bf16.mxu0 0
  %1158 = vmatpush1.bf16.xpose.msra.mxu0 0
  %1159 = vmatprep.subr.bf16.mxu0 0
  %1160 = vmatpush1.bf16.xpose.msra.mxu0 0
  %1161 = vmatprep.subr.bf16.mxu0 0
  %1162 = vmatpush1.bf16.xpose.msra.mxu0 0
  %1163 = vmatprep.subr.bf16.mxu0 0
  %1164 = vmatpush1.bf16.xpose.msra.mxu0 0
  %1165 = vmatprep.subr.bf16.mxu0 0
  %1166 = vmatpush1.bf16.xpose.msra.mxu0 0
  %1167 = vmatprep.subr.bf16.mxu0 0
  %1168 = vmatpush1.bf16.xpose.msra.mxu0 0
  %1169 = vmatprep.subr.bf16.mxu0 0
  %1170 = vmatpush1.bf16.xpose.msra.mxu0 0
  %1171 = vmatprep.mubr.bf16.mxu0 0
  %1172 = vmatmul.mubr.bf16.gmra.mrb[0].mxu0 %v1134
  %v1173 = vpop.f32.mrb[0].mxu0
  %v1174 = vadd.f32 0.0, %v1173
  %v1175 = vpop.f32.mrb[0].mxu0
  %v1176 = vpop.f32.mrb[0].mxu0
  %v1177 = vpop.f32.mrb[0].mxu0
  %1178 = vdwg.mxu0
  %v1179 = vsel %vm348, %v1174, -1e+30
  %v1180 = vsel %vm400, %v1179, -inf
  %1181 = vmax.xlane.f32.xlu0 %v1180
  %v1182 = vpop.xlane.xlu0 %1181
  %v1183 = vsub.f32 %v1179, %v1182
  %v1184 = vmul.f32 %v1183, 1.442695
  %v1185 = vpow.pop %v1184
  %v1186 = vsel %vm400, %v1185, 0.0
  %1187 = vadd.xlane.f32.xlu0 %v1186
  %v1188 = vpop.xlane.xlu0 %1187
  %v1189 = vpack.c.bf16 %v1185, %v1185
  %1190 = vrot.lane.b32.xlu0 %v805, 32
  %v1191 = vpop.permute.xlu0 %1190
  %v1194 = vsel %vm400, %v1189, 0
  %1196 = vmatprep.subr.bf16.mxu0 0
  %1197 = vmatpush1.bf16.msra.mxu0 %v1191
  %1198 = vmatprep.subr.bf16.mxu0 0
  %1199 = vmatpush1.bf16.msra.mxu0 0
  %1200 = vmatprep.subr.bf16.mxu0 0
  %1201 = vmatpush1.bf16.msra.mxu0 0
  %1202 = vmatprep.subr.bf16.mxu0 0
  %1203 = vmatpush1.bf16.msra.mxu0 0
  %1204 = vmatprep.subr.bf16.mxu0 0
  %1205 = vmatpush1.bf16.msra.mxu0 0
  %1206 = vmatprep.subr.bf16.mxu0 0
  %1207 = vmatpush1.bf16.msra.mxu0 0
  %1208 = vmatprep.subr.bf16.mxu0 0
  %1209 = vmatpush1.bf16.msra.mxu0 0
  %1210 = vmatprep.subr.bf16.mxu0 0
  %1211 = vmatpush1.bf16.msra.mxu0 0
  %1212 = vmatprep.subr.bf16.mxu0 0
  %1213 = vmatpush1.bf16.msra.mxu0 0
  %1214 = vmatprep.subr.bf16.mxu0 0
  %1215 = vmatpush1.bf16.msra.mxu0 0
  %1216 = vmatprep.subr.bf16.mxu0 0
  %1217 = vmatpush1.bf16.msra.mxu0 0
  %1218 = vmatprep.subr.bf16.mxu0 0
  %1219 = vmatpush1.bf16.msra.mxu0 0
  %1220 = vmatprep.subr.bf16.mxu0 0
  %1221 = vmatpush1.bf16.msra.mxu0 0
  %1222 = vmatprep.subr.bf16.mxu0 0
  %1223 = vmatpush1.bf16.msra.mxu0 0
  %1224 = vmatprep.subr.bf16.mxu0 0
  %1225 = vmatpush1.bf16.msra.mxu0 0
  %1226 = vmatprep.subr.bf16.mxu0 0
  %1227 = vmatpush1.bf16.msra.mxu0 0
  %1228 = vmatprep.mubr.bf16.mxu0 0
  %1229 = vmatmul.mubr.bf16.gmra.mrb[0].mxu0 %v1194
  %v1230 = vpop.f32.mrb[0].mxu0
  %v1231 = vadd.f32 0.0, %v1230
  %v1232 = vpop.f32.mrb[0].mxu0
  %v1233 = vpop.f32.mrb[0].mxu0
  %v1234 = vpop.f32.mrb[0].mxu0
  %1235 = vdwg.mxu0
  %v1236 = vrcp.pop %v1188
  %v1237 = vmul.f32 %v1231, %v1236
  %1239 = vrot.lane.b32.xlu0 %v1019, 32
  %v1240 = vpop.permute.xlu0 %1239
  %1243 = vrot.lane.b32.xlu0 %v1128, 64
  %v1244 = vpop.permute.xlu0 %1243
  %1247 = vrot.lane.b32.xlu0 %v1237, 96
  %v1248 = vpop.permute.xlu0 %1247
  %v1250 = vsel %vm352, %v907, %v1240
  %v1251 = vsel %vm799, %v1250, %v1244
  %v1252 = vsel %vm801, %v1251, %v1248
  %v1253 = vpack.c.bf16 %v1252, %v802
  %v1254 = vld [vmem:[%s4] sm:$0xf]
  %v1255 = vld [vmem:[%s4 + $0x4] sm:$0xf]
  %v1256 = vld [vmem:[%s4 + $0x8] sm:$0xf]
  %v1257 = vld [vmem:[%s4 + $0xc] sm:$0xf]
  %v1258 = vld [vmem:[%s4 + $0x10] sm:$0xf]
  %v1259 = vld [vmem:[%s4 + $0x14] sm:$0xf]
  %v1260 = vld [vmem:[%s4 + $0x18] sm:$0xf]
  %v1261 = vld [vmem:[%s4 + $0x1c] sm:$0xf]
  %v1262 = vld [vmem:[%s4 + $0x20] sm:$0xf]
  %v1263 = vld [vmem:[%s4 + $0x24] sm:$0xf]
  %v1264 = vld [vmem:[%s4 + $0x28] sm:$0xf]
  %v1265 = vld [vmem:[%s4 + $0x2c] sm:$0xf]
  %v1266 = vld [vmem:[%s4 + $0x30] sm:$0xf]
  %v1267 = vld [vmem:[%s4 + $0x34] sm:$0xf]
  %v1268 = vld [vmem:[%s4 + $0x38] sm:$0xf]
  %v1269 = vld [vmem:[%s4 + $0x3c] sm:$0xf]
  %v1286 = vunpack.c.l.b16 %v1254
  %v1287 = vunpack.c.l.b16 %v1255
  %v1288 = vunpack.c.l.b16 %v1256
  %v1289 = vunpack.c.l.b16 %v1257
  %v1290 = vunpack.c.l.b16 %v1258
  %v1291 = vunpack.c.l.b16 %v1259
  %v1292 = vunpack.c.l.b16 %v1260
  %v1293 = vunpack.c.l.b16 %v1261
  %v1294 = vunpack.c.l.b16 %v1262
  %v1295 = vunpack.c.l.b16 %v1263
  %v1296 = vunpack.c.l.b16 %v1264
  %v1297 = vunpack.c.l.b16 %v1265
  %v1298 = vunpack.c.l.b16 %v1266
  %v1299 = vunpack.c.l.b16 %v1267
  %v1300 = vunpack.c.l.b16 %v1268
  %v1301 = vunpack.c.l.b16 %v1269
  %v1302 = vpack.c.b16 %v1287, %v1286
  %v1303 = vpack.c.b16 %v1289, %v1288
  %v1304 = vpack.c.b16 %v1291, %v1290
  %v1305 = vpack.c.b16 %v1293, %v1292
  %v1306 = vpack.c.b16 %v1295, %v1294
  %v1307 = vpack.c.b16 %v1297, %v1296
  %v1308 = vpack.c.b16 %v1299, %v1298
  %v1309 = vpack.c.b16 %v1301, %v1300
  %1318 = vmatprep.subr.bf16.mxu0 0
  %1319 = vmatpush1.bf16.msra.mxu0 %v1302
  %1320 = vmatprep.subr.bf16.mxu0 0
  %1321 = vmatpush1.bf16.msra.mxu0 %v1303
  %1322 = vmatprep.subr.bf16.mxu0 0
  %1323 = vmatpush1.bf16.msra.mxu0 %v1304
  %1324 = vmatprep.subr.bf16.mxu0 0
  %1325 = vmatpush1.bf16.msra.mxu0 %v1305
  %1326 = vmatprep.subr.bf16.mxu0 0
  %1327 = vmatpush1.bf16.msra.mxu0 %v1306
  %1328 = vmatprep.subr.bf16.mxu0 0
  %1329 = vmatpush1.bf16.msra.mxu0 %v1307
  %1330 = vmatprep.subr.bf16.mxu0 0
  %1331 = vmatpush1.bf16.msra.mxu0 %v1308
  %1332 = vmatprep.subr.bf16.mxu0 0
  %1333 = vmatpush1.bf16.msra.mxu0 %v1309
  %1334 = vmatprep.subr.bf16.mxu0 0
  %1335 = vmatpush1.bf16.msra.mxu0 0
  %1336 = vmatprep.subr.bf16.mxu0 0
  %1337 = vmatpush1.bf16.msra.mxu0 0
  %1338 = vmatprep.subr.bf16.mxu0 0
  %1339 = vmatpush1.bf16.msra.mxu0 0
  %1340 = vmatprep.subr.bf16.mxu0 0
  %1341 = vmatpush1.bf16.msra.mxu0 0
  %1342 = vmatprep.subr.bf16.mxu0 0
  %1343 = vmatpush1.bf16.msra.mxu0 0
  %1344 = vmatprep.subr.bf16.mxu0 0
  %1345 = vmatpush1.bf16.msra.mxu0 0
  %1346 = vmatprep.subr.bf16.mxu0 0
  %1347 = vmatpush1.bf16.msra.mxu0 0
  %1348 = vmatprep.subr.bf16.mxu0 0
  %1349 = vmatpush1.bf16.msra.mxu0 0
  %1350 = vmatprep.mubr.bf16.mxu0 0
  %1351 = vmatmul.mubr.bf16.gmra.mrb[0].mxu0 %v1253
  %v1352 = vpop.f32.mrb[0].mxu0
  %v1353 = vadd.f32 0.0, %v1352
  %v1354 = vpop.f32.mrb[0].mxu0
  %v1355 = vpop.f32.mrb[0].mxu0
  %v1356 = vadd.f32 0.0, %v1355
  %v1357 = vpop.f32.mrb[0].mxu0
  %1358 = vdwg.mxu0
  %v1359 = vadd.f32 %v30, %v1353
  %v1360 = vadd.f32 %v31, %v1356
  %v1361 = vld [vmem:[%s2] sm:$0x1]
  %v1362 = vmul.f32 %v1359, %v1359
  %v1363 = vmul.f32 %v1360, %v1360
  %1364 = vadd.xlane.f32.xlu0 %v1362
  %v1365 = vpop.xlane.xlu0 %1364
  %1366 = vadd.xlane.f32.xlu0 %v1363
  %v1367 = vpop.xlane.xlu0 %1366
  %v1368 = vmul.f32 %v1365, %v39
  %v1369 = vmul.f32 %v1367, %v39
  %v1370 = vadd.f32 %v1368, 1e-06
  %v1371 = vadd.f32 %v1369, 1e-06
  %v1372 = vrsqrt.pop %v1370
  %v1373 = vrsqrt.pop %v1371
  %v1374 = vmul.f32 %v1359, %v1372
  %v1375 = vmul.f32 %v1360, %v1373
  %v1377 = vlaneseq
  %v1378 = vshrl.u32 %v1377, 7
  %v1379 = vsub.s32 0, %v1378
  %v1380 = vrot.slane %v1361, %v1379
  %v1382 = vmul.f32 %v1374, %v1380
  %v1383 = vmul.f32 %v1375, %v1380
  %v1384 = vpack.c.bf16 %v1383, %v1382
  %v1385 = vld [vmem:[%s5] sm:$0xff]
  %v1386 = vld [vmem:[%s5 + $0x8] sm:$0xff]
  %v1387 = vld [vmem:[%s5 + $0x10] sm:$0xff]
  %v1388 = vld [vmem:[%s5 + $0x18] sm:$0xff]
  %v1389 = vld [vmem:[%s5 + $0x20] sm:$0xff]
  %v1390 = vld [vmem:[%s5 + $0x28] sm:$0xff]
  %v1391 = vld [vmem:[%s5 + $0x30] sm:$0xff]
  %v1392 = vld [vmem:[%s5 + $0x38] sm:$0xff]
  %v1393 = vld [vmem:[%s5 + $0x40] sm:$0xff]
  %v1394 = vld [vmem:[%s5 + $0x48] sm:$0xff]
  %v1395 = vld [vmem:[%s5 + $0x50] sm:$0xff]
  %v1396 = vld [vmem:[%s5 + $0x58] sm:$0xff]
  %v1397 = vld [vmem:[%s5 + $0x60] sm:$0xff]
  %v1398 = vld [vmem:[%s5 + $0x68] sm:$0xff]
  %v1399 = vld [vmem:[%s5 + $0x70] sm:$0xff]
  %v1400 = vld [vmem:[%s5 + $0x78] sm:$0xff]
  %v1401 = vld [vmem:[%s5 + $0x80] sm:$0xff]
  %v1402 = vld [vmem:[%s5 + $0x88] sm:$0xff]
  %v1403 = vld [vmem:[%s5 + $0x90] sm:$0xff]
  %v1404 = vld [vmem:[%s5 + $0x98] sm:$0xff]
  %v1405 = vld [vmem:[%s5 + $0xa0] sm:$0xff]
  %v1406 = vld [vmem:[%s5 + $0xa8] sm:$0xff]
  %v1407 = vld [vmem:[%s5 + $0xb0] sm:$0xff]
  %v1408 = vld [vmem:[%s5 + $0xb8] sm:$0xff]
  %v1409 = vld [vmem:[%s5 + $0xc0] sm:$0xff]
  %v1410 = vld [vmem:[%s5 + $0xc8] sm:$0xff]
  %v1411 = vld [vmem:[%s5 + $0xd0] sm:$0xff]
  %v1412 = vld [vmem:[%s5 + $0xd8] sm:$0xff]
  %v1413 = vld [vmem:[%s5 + $0xe0] sm:$0xff]
  %v1414 = vld [vmem:[%s5 + $0xe8] sm:$0xff]
  %v1415 = vld [vmem:[%s5 + $0xf0] sm:$0xff]
  %v1416 = vld [vmem:[%s5 + $0xf8] sm:$0xff]
  %v1449 = vunpack.c.l.b16 %v1385
  %v1450 = vunpack.c.h.b16 %v1385
  %v1451 = vunpack.c.l.b16 %v1386
  %v1452 = vunpack.c.h.b16 %v1386
  %v1453 = vunpack.c.l.b16 %v1387
  %v1454 = vunpack.c.h.b16 %v1387
  %v1455 = vunpack.c.l.b16 %v1388
  %v1456 = vunpack.c.h.b16 %v1388
  %v1457 = vunpack.c.l.b16 %v1389
  %v1458 = vunpack.c.h.b16 %v1389
  %v1459 = vunpack.c.l.b16 %v1390
  %v1460 = vunpack.c.h.b16 %v1390
  %v1461 = vunpack.c.l.b16 %v1391
  %v1462 = vunpack.c.h.b16 %v1391
  %v1463 = vunpack.c.l.b16 %v1392
  %v1464 = vunpack.c.h.b16 %v1392
  %v1465 = vunpack.c.l.b16 %v1393
  %v1466 = vunpack.c.h.b16 %v1393
  %v1467 = vunpack.c.l.b16 %v1394
  %v1468 = vunpack.c.h.b16 %v1394
  %v1469 = vunpack.c.l.b16 %v1395
  %v1470 = vunpack.c.h.b16 %v1395
  %v1471 = vunpack.c.l.b16 %v1396
  %v1472 = vunpack.c.h.b16 %v1396
  %v1473 = vunpack.c.l.b16 %v1397
  %v1474 = vunpack.c.h.b16 %v1397
  %v1475 = vunpack.c.l.b16 %v1398
  %v1476 = vunpack.c.h.b16 %v1398
  %v1477 = vunpack.c.l.b16 %v1399
  %v1478 = vunpack.c.h.b16 %v1399
  %v1479 = vunpack.c.l.b16 %v1400
  %v1480 = vunpack.c.h.b16 %v1400
  %v1481 = vunpack.c.l.b16 %v1401
  %v1482 = vunpack.c.h.b16 %v1401
  %v1483 = vunpack.c.l.b16 %v1402
  %v1484 = vunpack.c.h.b16 %v1402
  %v1485 = vunpack.c.l.b16 %v1403
  %v1486 = vunpack.c.h.b16 %v1403
  %v1487 = vunpack.c.l.b16 %v1404
  %v1488 = vunpack.c.h.b16 %v1404
  %v1489 = vunpack.c.l.b16 %v1405
  %v1490 = vunpack.c.h.b16 %v1405
  %v1491 = vunpack.c.l.b16 %v1406
  %v1492 = vunpack.c.h.b16 %v1406
  %v1493 = vunpack.c.l.b16 %v1407
  %v1494 = vunpack.c.h.b16 %v1407
  %v1495 = vunpack.c.l.b16 %v1408
  %v1496 = vunpack.c.h.b16 %v1408
  %v1497 = vunpack.c.l.b16 %v1409
  %v1498 = vunpack.c.h.b16 %v1409
  %v1499 = vunpack.c.l.b16 %v1410
  %v1500 = vunpack.c.h.b16 %v1410
  %v1501 = vunpack.c.l.b16 %v1411
  %v1502 = vunpack.c.h.b16 %v1411
  %v1503 = vunpack.c.l.b16 %v1412
  %v1504 = vunpack.c.h.b16 %v1412
  %v1505 = vunpack.c.l.b16 %v1413
  %v1506 = vunpack.c.h.b16 %v1413
  %v1507 = vunpack.c.l.b16 %v1414
  %v1508 = vunpack.c.h.b16 %v1414
  %v1509 = vunpack.c.l.b16 %v1415
  %v1510 = vunpack.c.h.b16 %v1415
  %v1511 = vunpack.c.l.b16 %v1416
  %v1512 = vunpack.c.h.b16 %v1416
  %v1513 = vpack.c.b16 %v1453, %v1449
  %v1514 = vpack.c.b16 %v1454, %v1450
  %v1515 = vpack.c.b16 %v1455, %v1451
  %v1516 = vpack.c.b16 %v1456, %v1452
  %v1517 = vpack.c.b16 %v1461, %v1457
  %v1518 = vpack.c.b16 %v1462, %v1458
  %v1519 = vpack.c.b16 %v1463, %v1459
  %v1520 = vpack.c.b16 %v1464, %v1460
  %v1521 = vpack.c.b16 %v1469, %v1465
  %v1522 = vpack.c.b16 %v1470, %v1466
  %v1523 = vpack.c.b16 %v1471, %v1467
  %v1524 = vpack.c.b16 %v1472, %v1468
  %v1525 = vpack.c.b16 %v1477, %v1473
  %v1526 = vpack.c.b16 %v1478, %v1474
  %v1527 = vpack.c.b16 %v1479, %v1475
  %v1528 = vpack.c.b16 %v1480, %v1476
  %v1529 = vpack.c.b16 %v1485, %v1481
  %v1530 = vpack.c.b16 %v1486, %v1482
  %v1531 = vpack.c.b16 %v1487, %v1483
  %v1532 = vpack.c.b16 %v1488, %v1484
  %v1533 = vpack.c.b16 %v1493, %v1489
  %v1534 = vpack.c.b16 %v1494, %v1490
  %v1535 = vpack.c.b16 %v1495, %v1491
  %v1536 = vpack.c.b16 %v1496, %v1492
  %v1537 = vpack.c.b16 %v1501, %v1497
  %v1538 = vpack.c.b16 %v1502, %v1498
  %v1539 = vpack.c.b16 %v1503, %v1499
  %v1540 = vpack.c.b16 %v1504, %v1500
  %v1541 = vpack.c.b16 %v1509, %v1505
  %v1542 = vpack.c.b16 %v1510, %v1506
  %v1543 = vpack.c.b16 %v1511, %v1507
  %v1544 = vpack.c.b16 %v1512, %v1508
  %1577 = vmatprep.subr.bf16.mxu0 %v1514
  %1578 = vmatpush1.bf16.msra.mxu0 %v1513
  %1579 = vmatprep.subr.bf16.mxu0 %v1518
  %1580 = vmatpush1.bf16.msra.mxu0 %v1517
  %1581 = vmatprep.subr.bf16.mxu0 %v1522
  %1582 = vmatpush1.bf16.msra.mxu0 %v1521
  %1583 = vmatprep.subr.bf16.mxu0 %v1526
  %1584 = vmatpush1.bf16.msra.mxu0 %v1525
  %1585 = vmatprep.subr.bf16.mxu0 %v1530
  %1586 = vmatpush1.bf16.msra.mxu0 %v1529
  %1587 = vmatprep.subr.bf16.mxu0 %v1534
  %1588 = vmatpush1.bf16.msra.mxu0 %v1533
  %1589 = vmatprep.subr.bf16.mxu0 %v1538
  %1590 = vmatpush1.bf16.msra.mxu0 %v1537
  %1591 = vmatprep.subr.bf16.mxu0 %v1542
  %1592 = vmatpush1.bf16.msra.mxu0 %v1541
  %1593 = vmatprep.subr.bf16.mxu0 0
  %1594 = vmatpush1.bf16.msra.mxu0 0
  %1595 = vmatprep.subr.bf16.mxu0 0
  %1596 = vmatpush1.bf16.msra.mxu0 0
  %1597 = vmatprep.subr.bf16.mxu0 0
  %1598 = vmatpush1.bf16.msra.mxu0 0
  %1599 = vmatprep.subr.bf16.mxu0 0
  %1600 = vmatpush1.bf16.msra.mxu0 0
  %1601 = vmatprep.subr.bf16.mxu0 0
  %1602 = vmatpush1.bf16.msra.mxu0 0
  %1603 = vmatprep.subr.bf16.mxu0 0
  %1604 = vmatpush1.bf16.msra.mxu0 0
  %1605 = vmatprep.subr.bf16.mxu0 0
  %1606 = vmatpush1.bf16.msra.mxu0 0
  %1607 = vmatprep.subr.bf16.mxu0 0
  %1608 = vmatpush1.bf16.msra.mxu0 0
  %1609 = vmatprep.mubr.bf16.mxu0 0
  %1610 = vmatmul.mubr.bf16.gmra.mrb[0].mxu0 %v1384
  %v1611 = vpop.f32.mrb[0].mxu0
  %v1612 = vadd.f32 0.0, %v1611
  %v1613 = vpop.f32.mrb[0].mxu0
  %v1614 = vadd.f32 0.0, %v1613
  %v1615 = vpop.f32.mrb[0].mxu0
  %v1616 = vadd.f32 0.0, %v1615
  %v1617 = vpop.f32.mrb[0].mxu0
  %v1618 = vadd.f32 0.0, %v1617
  %1619 = vdwg.mxu0
  %1620 = vmatprep.subr.bf16.mxu0 %v1516
  %1621 = vmatpush1.bf16.msra.mxu0 %v1515
  %1622 = vmatprep.subr.bf16.mxu0 %v1520
  %1623 = vmatpush1.bf16.msra.mxu0 %v1519
  %1624 = vmatprep.subr.bf16.mxu0 %v1524
  %1625 = vmatpush1.bf16.msra.mxu0 %v1523
  %1626 = vmatprep.subr.bf16.mxu0 %v1528
  %1627 = vmatpush1.bf16.msra.mxu0 %v1527
  %1628 = vmatprep.subr.bf16.mxu0 %v1532
  %1629 = vmatpush1.bf16.msra.mxu0 %v1531
  %1630 = vmatprep.subr.bf16.mxu0 %v1536
  %1631 = vmatpush1.bf16.msra.mxu0 %v1535
  %1632 = vmatprep.subr.bf16.mxu0 %v1540
  %1633 = vmatpush1.bf16.msra.mxu0 %v1539
  %1634 = vmatprep.subr.bf16.mxu0 %v1544
  %1635 = vmatpush1.bf16.msra.mxu0 %v1543
  %1636 = vmatprep.subr.bf16.mxu0 0
  %1637 = vmatpush1.bf16.msra.mxu0 0
  %1638 = vmatprep.subr.bf16.mxu0 0
  %1639 = vmatpush1.bf16.msra.mxu0 0
  %1640 = vmatprep.subr.bf16.mxu0 0
  %1641 = vmatpush1.bf16.msra.mxu0 0
  %1642 = vmatprep.subr.bf16.mxu0 0
  %1643 = vmatpush1.bf16.msra.mxu0 0
  %1644 = vmatprep.subr.bf16.mxu0 0
  %1645 = vmatpush1.bf16.msra.mxu0 0
  %1646 = vmatprep.subr.bf16.mxu0 0
  %1647 = vmatpush1.bf16.msra.mxu0 0
  %1648 = vmatprep.subr.bf16.mxu0 0
  %1649 = vmatpush1.bf16.msra.mxu0 0
  %1650 = vmatprep.subr.bf16.mxu0 0
  %1651 = vmatpush1.bf16.msra.mxu0 0
  %1652 = vmatprep.mubr.bf16.mxu0 0
  %1653 = vmatmul.mubr.bf16.gmra.mrb[0].mxu0 %v1384
  %v1654 = vpop.f32.mrb[0].mxu0
  %v1655 = vadd.f32 0.0, %v1654
  %v1656 = vpop.f32.mrb[0].mxu0
  %v1657 = vadd.f32 0.0, %v1656
  %v1658 = vpop.f32.mrb[0].mxu0
  %v1659 = vadd.f32 0.0, %v1658
  %v1660 = vpop.f32.mrb[0].mxu0
  %v1661 = vadd.f32 0.0, %v1660
  %1662 = vdwg.mxu0
  %v1663 = vxor.u32 %v1612, 2147483648
  %v1664 = vxor.u32 %v1614, 2147483648
  %v1665 = vxor.u32 %v1616, 2147483648
  %v1666 = vxor.u32 %v1618, 2147483648
  %v1667 = vmul.f32 %v1663, 1.442695
  %v1668 = vpow.pop %v1667
  %v1669 = vmul.f32 %v1664, 1.442695
  %v1670 = vpow.pop %v1669
  %v1671 = vmul.f32 %v1665, 1.442695
  %v1672 = vpow.pop %v1671
  %v1673 = vmul.f32 %v1666, 1.442695
  %v1674 = vpow.pop %v1673
  %v1675 = vadd.f32 %v1668, 1.0
  %v1676 = vadd.f32 %v1670, 1.0
  %v1677 = vadd.f32 %v1672, 1.0
  %v1678 = vadd.f32 %v1674, 1.0
  %v1679 = vrcp.pop %v1675
  %v1680 = vmul.f32 1.0, %v1679
  %v1681 = vrcp.pop %v1676
  %v1682 = vmul.f32 1.0, %v1681
  %v1683 = vrcp.pop %v1677
  %v1684 = vmul.f32 1.0, %v1683
  %v1685 = vrcp.pop %v1678
  %v1686 = vmul.f32 1.0, %v1685
  %v1687 = vmul.f32 %v1612, %v1680
  %v1688 = vmul.f32 %v1614, %v1682
  %v1689 = vmul.f32 %v1616, %v1684
  %v1690 = vmul.f32 %v1618, %v1686
  %v1691 = vmul.f32 %v1687, %v1655
  %v1692 = vmul.f32 %v1688, %v1657
  %v1693 = vmul.f32 %v1689, %v1659
  %v1694 = vmul.f32 %v1690, %v1661
  %v1695 = vpack.c.bf16 %v1693, %v1691
  %v1696 = vpack.c.bf16 %v1694, %v1692
  %v1697 = vld [vmem:[%s6] sm:$0xf]
  %v1698 = vld [vmem:[%s6 + $0x4] sm:$0xf]
  %v1699 = vld [vmem:[%s6 + $0x8] sm:$0xf]
  %v1700 = vld [vmem:[%s6 + $0xc] sm:$0xf]
  %v1701 = vld [vmem:[%s6 + $0x10] sm:$0xf]
  %v1702 = vld [vmem:[%s6 + $0x14] sm:$0xf]
  %v1703 = vld [vmem:[%s6 + $0x18] sm:$0xf]
  %v1704 = vld [vmem:[%s6 + $0x1c] sm:$0xf]
  %v1705 = vld [vmem:[%s6 + $0x20] sm:$0xf]
  %v1706 = vld [vmem:[%s6 + $0x24] sm:$0xf]
  %v1707 = vld [vmem:[%s6 + $0x28] sm:$0xf]
  %v1708 = vld [vmem:[%s6 + $0x2c] sm:$0xf]
  %v1709 = vld [vmem:[%s6 + $0x30] sm:$0xf]
  %v1710 = vld [vmem:[%s6 + $0x34] sm:$0xf]
  %v1711 = vld [vmem:[%s6 + $0x38] sm:$0xf]
  %v1712 = vld [vmem:[%s6 + $0x3c] sm:$0xf]
  %v1713 = vld [vmem:[%s6 + $0x40] sm:$0xf]
  %v1714 = vld [vmem:[%s6 + $0x44] sm:$0xf]
  %v1715 = vld [vmem:[%s6 + $0x48] sm:$0xf]
  %v1716 = vld [vmem:[%s6 + $0x4c] sm:$0xf]
  %v1717 = vld [vmem:[%s6 + $0x50] sm:$0xf]
  %v1718 = vld [vmem:[%s6 + $0x54] sm:$0xf]
  %v1719 = vld [vmem:[%s6 + $0x58] sm:$0xf]
  %v1720 = vld [vmem:[%s6 + $0x5c] sm:$0xf]
  %v1721 = vld [vmem:[%s6 + $0x60] sm:$0xf]
  %v1722 = vld [vmem:[%s6 + $0x64] sm:$0xf]
  %v1723 = vld [vmem:[%s6 + $0x68] sm:$0xf]
  %v1724 = vld [vmem:[%s6 + $0x6c] sm:$0xf]
  %v1725 = vld [vmem:[%s6 + $0x70] sm:$0xf]
  %v1726 = vld [vmem:[%s6 + $0x74] sm:$0xf]
  %v1727 = vld [vmem:[%s6 + $0x78] sm:$0xf]
  %v1728 = vld [vmem:[%s6 + $0x7c] sm:$0xf]
  %v1761 = vunpack.c.l.b16 %v1697
  %v1762 = vunpack.c.l.b16 %v1698
  %v1763 = vunpack.c.l.b16 %v1699
  %v1764 = vunpack.c.l.b16 %v1700
  %v1765 = vunpack.c.l.b16 %v1701
  %v1766 = vunpack.c.l.b16 %v1702
  %v1767 = vunpack.c.l.b16 %v1703
  %v1768 = vunpack.c.l.b16 %v1704
  %v1769 = vunpack.c.l.b16 %v1705
  %v1770 = vunpack.c.l.b16 %v1706
  %v1771 = vunpack.c.l.b16 %v1707
  %v1772 = vunpack.c.l.b16 %v1708
  %v1773 = vunpack.c.l.b16 %v1709
  %v1774 = vunpack.c.l.b16 %v1710
  %v1775 = vunpack.c.l.b16 %v1711
  %v1776 = vunpack.c.l.b16 %v1712
  %v1777 = vunpack.c.l.b16 %v1713
  %v1778 = vunpack.c.l.b16 %v1714
  %v1779 = vunpack.c.l.b16 %v1715
  %v1780 = vunpack.c.l.b16 %v1716
  %v1781 = vunpack.c.l.b16 %v1717
  %v1782 = vunpack.c.l.b16 %v1718
  %v1783 = vunpack.c.l.b16 %v1719
  %v1784 = vunpack.c.l.b16 %v1720
  %v1785 = vunpack.c.l.b16 %v1721
  %v1786 = vunpack.c.l.b16 %v1722
  %v1787 = vunpack.c.l.b16 %v1723
  %v1788 = vunpack.c.l.b16 %v1724
  %v1789 = vunpack.c.l.b16 %v1725
  %v1790 = vunpack.c.l.b16 %v1726
  %v1791 = vunpack.c.l.b16 %v1727
  %v1792 = vunpack.c.l.b16 %v1728
  %v1793 = vpack.c.b16 %v1762, %v1761
  %v1794 = vpack.c.b16 %v1764, %v1763
  %v1795 = vpack.c.b16 %v1766, %v1765
  %v1796 = vpack.c.b16 %v1768, %v1767
  %v1797 = vpack.c.b16 %v1770, %v1769
  %v1798 = vpack.c.b16 %v1772, %v1771
  %v1799 = vpack.c.b16 %v1774, %v1773
  %v1800 = vpack.c.b16 %v1776, %v1775
  %v1801 = vpack.c.b16 %v1778, %v1777
  %v1802 = vpack.c.b16 %v1780, %v1779
  %v1803 = vpack.c.b16 %v1782, %v1781
  %v1804 = vpack.c.b16 %v1784, %v1783
  %v1805 = vpack.c.b16 %v1786, %v1785
  %v1806 = vpack.c.b16 %v1788, %v1787
  %v1807 = vpack.c.b16 %v1790, %v1789
  %v1808 = vpack.c.b16 %v1792, %v1791
  %1825 = vmatprep.subr.bf16.mxu0 0
  %1826 = vmatpush1.bf16.msra.mxu0 %v1793
  %1827 = vmatprep.subr.bf16.mxu0 0
  %1828 = vmatpush1.bf16.msra.mxu0 %v1794
  %1829 = vmatprep.subr.bf16.mxu0 0
  %1830 = vmatpush1.bf16.msra.mxu0 %v1795
  %1831 = vmatprep.subr.bf16.mxu0 0
  %1832 = vmatpush1.bf16.msra.mxu0 %v1796
  %1833 = vmatprep.subr.bf16.mxu0 0
  %1834 = vmatpush1.bf16.msra.mxu0 %v1797
  %1835 = vmatprep.subr.bf16.mxu0 0
  %1836 = vmatpush1.bf16.msra.mxu0 %v1798
  %1837 = vmatprep.subr.bf16.mxu0 0
  %1838 = vmatpush1.bf16.msra.mxu0 %v1799
  %1839 = vmatprep.subr.bf16.mxu0 0
  %1840 = vmatpush1.bf16.msra.mxu0 %v1800
  %1841 = vmatprep.subr.bf16.mxu0 0
  %1842 = vmatpush1.bf16.msra.mxu0 %v1801
  %1843 = vmatprep.subr.bf16.mxu0 0
  %1844 = vmatpush1.bf16.msra.mxu0 %v1802
  %1845 = vmatprep.subr.bf16.mxu0 0
  %1846 = vmatpush1.bf16.msra.mxu0 %v1803
  %1847 = vmatprep.subr.bf16.mxu0 0
  %1848 = vmatpush1.bf16.msra.mxu0 %v1804
  %1849 = vmatprep.subr.bf16.mxu0 0
  %1850 = vmatpush1.bf16.msra.mxu0 %v1805
  %1851 = vmatprep.subr.bf16.mxu0 0
  %1852 = vmatpush1.bf16.msra.mxu0 %v1806
  %1853 = vmatprep.subr.bf16.mxu0 0
  %1854 = vmatpush1.bf16.msra.mxu0 %v1807
  %1855 = vmatprep.subr.bf16.mxu0 0
  %1856 = vmatpush1.bf16.msra.mxu0 %v1808
  %1857 = vmatprep.mubr.bf16.mxu0 %v1696
  %1858 = vmatmul.mubr.bf16.gmra.mrb[0].mxu0 %v1695
  %v1859 = vpop.f32.mrb[0].mxu0
  %v1860 = vadd.f32 0.0, %v1859
  %v1861 = vpop.f32.mrb[0].mxu0
  %v1862 = vpop.f32.mrb[0].mxu0
  %v1863 = vadd.f32 0.0, %v1862
  %v1864 = vpop.f32.mrb[0].mxu0
  %1865 = vdwg.mxu0
  %v1866 = vadd.f32 %v1359, %v1860
  %v1867 = vadd.f32 %v1360, %v1863
  %1868 = vst [vmem:[%s8] sm:$0xff] %v1866
  %1869 = vst [vmem:[%s8 + $0x8] sm:$0xff] %v1867
  // Predicated region
  $region34: #{model_forward.4} parent=0 // pred_check
    _
  $region35: #{model_forward.4} parent=0 // pred_check_branch
    %1871 = sbr.rel (0) target = $region37
  $region36: #{model_forward.4} parent=0 // pred_region
    _
  $region37: #{model_forward.4} parent=0 // pred_fallthru
    _
  // Predicated region
  $region38: #{model_forward.4} parent=0 // pred_check
    _
  $region39: #{model_forward.4} parent=0 // pred_check_branch
    %1873 = sbr.rel (0) target = $region41
  $region40: #{model_forward.4} parent=0 // pred_region
    _
  $region41: #{model_forward.4} parent=0 // pred_fallthru
    _

</llo_original>
